<compile_context>
chip_gen: v5e
topology: v5e:2x2
jax: 0.10.0
libtpu: 0.0.40
codegen_flags: <defaults>
</compile_context>

<pallas_src>
import functools

import jax
import jax.numpy as jnp
from jax.experimental import pallas as pl
from jax.experimental.pallas import tpu as pltpu

LEAKY_SLOPE = 0.2
BN_EPS = 1e-5
_VMEM_LIMIT = 32 * 1024 * 1024      # scoped-default-sized; fits v7x (64 MiB phys)


# ----------------------------- Pallas kernel -------------------------------

def _make_matmul_kernel(prologue_bn, epilogue):
    """Tiled matmul with optional fused BN-affine+LeakyReLU prologue on X and
    bias + {leaky | masked-sigmoid} epilogue.

    NOTE: no pallas-specific primitives (program_id / reciprocal / ...) inside
    pl.when bodies — only standard jnp/lax ops and ref reads/writes — so the
    kernel lowers both natively on TPU and through the interpret fallback."""

    def kernel(*refs):
        idx = 0
        x_ref = refs[idx]; idx += 1
        if prologue_bn:
            xs_ref = refs[idx]; xt_ref = refs[idx + 1]; idx += 2
        w_ref = refs[idx]; idx += 1
        b_ref = refs[idx]; idx += 1
        if epilogue == "sigmoid_mask":
            m_ref = refs[idx]; idx += 1
        o_ref = refs[idx]; acc_ref = refs[idx + 1]

        @pl.when(pl.program_id(2) == 0)
        def _():
            acc_ref[...] = jnp.zeros_like(acc_ref)

        x = x_ref[...]
        if prologue_bn:
            # BN affine + LeakyReLU in f32 on the bf16-stored activation,
            # then back to bf16 for the MXU.
            xf = x.astype(jnp.float32) * xs_ref[...] + xt_ref[...]
            xf = jnp.where(xf > 0, xf, LEAKY_SLOPE * xf)
            x = xf.astype(jnp.bfloat16)

        acc_ref[...] += jnp.dot(x, w_ref[...],
                                preferred_element_type=jnp.float32)

        @pl.when(pl.program_id(2) == pl.num_programs(2) - 1)
        def _():
            y = acc_ref[...] + b_ref[...]                     # (tm,tn)+(1,tn)
            if epilogue == "leaky":
                y = jnp.where(y > 0, y, LEAKY_SLOPE * y)
            elif epilogue == "sigmoid_mask":
                m = m_ref[...]                                # 1.0 on dc columns
                sig = jax.nn.sigmoid(y)                       # EUP exp + recip
                y = m * sig + (1.0 - m) * y
            o_ref[...] = y.astype(o_ref.dtype)

    return kernel


def fused_matmul(x, w, bias, *, x_scale=None, x_shift=None, epilogue=None,
                 sig_mask=None, out_dtype=jnp.float32, tm=256, tn=256, tk=512):
    """out = epilogue( prologue(x) @ w + bias ), tiled P1+P3 pattern.

    x:(M,K), w:(K,N), bias:(N,).  Optional prologue (per-K-column BN affine +
    LeakyReLU) via x_scale/x_shift:(K,).  Optional per-N-column sigmoid mask.
    Operands fed to the MXU as bf16, accumulated in f32.  Tile sizes fall back
    to the full extent when they do not divide the dimension (always a legal
    block shape)."""
    M, K = x.shape
    Kw, N = w.shape
    assert K == Kw, (K, Kw)

    tm = tm if M % tm == 0 else M
    tn = tn if N % tn == 0 else N
    tk = tk if K % tk == 0 else K
    grid = (M // tm, N // tn, K // tk)

    x = x.astype(jnp.bfloat16)
    w = w.astype(jnp.bfloat16)
    b2 = bias.reshape(1, N).astype(jnp.float32)

    prologue_bn = x_scale is not None
    inputs = [x]
    in_specs = [pl.BlockSpec((tm, tk), lambda i, j, k: (i, k))]
    if prologue_bn:
        inputs += [x_scale.reshape(1, K).astype(jnp.float32),
                   x_shift.reshape(1, K).astype(jnp.float32)]
        in_specs += [pl.BlockSpec((1, tk), lambda i, j, k: (0, k)),
                     pl.BlockSpec((1, tk), lambda i, j, k: (0, k))]
    inputs += [w, b2]
    in_specs += [pl.BlockSpec((tk, tn), lambda i, j, k: (k, j)),
                 pl.BlockSpec((1, tn), lambda i, j, k: (0, j))]
    if epilogue == "sigmoid_mask":
        inputs += [sig_mask.reshape(1, N).astype(jnp.float32)]
        in_specs += [pl.BlockSpec((1, tn), lambda i, j, k: (0, j))]

    kernel = _make_matmul_kernel(prologue_bn, epilogue)

    out_itemsize = jnp.dtype(out_dtype).itemsize
    cost = pl.CostEstimate(
        flops=2 * M * N * K,
        transcendentals=M * N if epilogue == "sigmoid_mask" else 0,
        bytes_accessed=(M * K * 2 + K * N * 2 + N * 4 + M * N * out_itemsize
                        + (2 * K * 4 if prologue_bn else 0)
                        + (N * 4 if epilogue == "sigmoid_mask" else 0)))

    return pl.pallas_call(
        kernel,
        out_shape=jax.ShapeDtypeStruct((M, N), out_dtype),
        grid_spec=pltpu.PrefetchScalarGridSpec(
            num_scalar_prefetch=0,
            grid=grid,
            in_specs=in_specs,
            out_specs=pl.BlockSpec((tm, tn), lambda i, j, k: (i, j)),
            scratch_shapes=[pltpu.VMEM((tm, tn), jnp.float32)]),
        compiler_params=pltpu.CompilerParams(
            dimension_semantics=("parallel", "parallel", "arbitrary"),
            vmem_limit_bytes=_VMEM_LIMIT),
        cost_estimate=cost,
    )(*inputs)


# ------------------------------ JAX glue ------------------------------------

def im2col_nhwc(x, k, stride, pad):
    """x: (B,H,W,C) -> (B*Ho*Wo, k*k*C); column order = (kh, kw, Cin), Cin
    fastest (weights are permuted to match in prepare_params)."""
    B, H, W, C = x.shape
    xp = jnp.pad(x, ((0, 0), (pad, pad), (pad, pad), (0, 0)))
    Ho = (H + 2 * pad - k) // stride + 1
    Wo = (W + 2 * pad - k) // stride + 1
    cols = []
    for i in range(k):
        for j in range(k):
            cols.append(xp[:, i:i + Ho * stride:stride,
                           j:j + Wo * stride:stride, :])
    p = jnp.stack(cols, axis=3)                  # (B, Ho, Wo, k*k, C)
    return p.reshape(B * Ho * Wo, k * k * C), Ho, Wo


def prepare_params(params, input_size):
    """Fold every layout permutation into the weights, once, outside jit."""
    H2 = W2 = input_size // 4

    def conv_w(w):
        # (Cout, Cin, kh, kw) -> (kh*kw*Cin, Cout): matches im2col column order
        co, ci, kh, kw = w.shape
        return (jnp.transpose(w, (2, 3, 1, 0))
                .reshape(kh * kw * ci, co).astype(jnp.bfloat16))

    nfc, fdim = params["wfc1"].shape
    c2 = params["w2"].shape[0]
    # PyTorch flattens NCHW as (c, h, w); our activations flatten as (h, w, c).
    wfc1 = (params["wfc1"].reshape(nfc, c2, H2, W2)
            .transpose(0, 2, 3, 1).reshape(nfc, fdim)).T.astype(jnp.bfloat16)

    # Fuse + lane-pad the heads: columns [0, output_dim) = dc, then cl.
    output_dim = params["wdc"].shape[0]
    wh = jnp.concatenate([params["wdc"], params["wcl"]], axis=0).T   # (1024, nout)
    bh = jnp.concatenate([params["bdc"], params["bcl"]])
    nout = wh.shape[1]
    npad = max(128, -(-nout // 128) * 128)
    wh = jnp.pad(wh, ((0, 0), (0, npad - nout))).astype(jnp.bfloat16)
    bh = jnp.pad(bh, (0, npad - nout)).astype(jnp.float32)
    # Per-column mask: 1.0 on the dc (sigmoid) columns, 0.0 elsewhere.
    mh = (jnp.arange(npad) < output_dim).astype(jnp.float32)

    f32 = lambda a: a.astype(jnp.float32)
    return dict(
        w1=conv_w(params["w1"]), b1=f32(params["b1"]),
        w2=conv_w(params["w2"]), b2=f32(params["b2"]),
        g2=f32(params["g2"]), be2=f32(params["be2"]),
        wfc1=wfc1, bfc1=f32(params["bfc1"]),
        gfc1=f32(params["gfc1"]), befc1=f32(params["befc1"]),
        wh=wh, bh=bh, mh=mh,
    )


# --------------------------- Discriminator forward ---------------------------

def discriminator_forward(prep, x, *, output_dim, class_num):
    B = x.shape[0]
    x = jnp.transpose(x, (0, 2, 3, 1))           # NCHW -> NHWC once (raw input)

    # conv1 (k4 s2 p1) + LeakyReLU fused in the matmul epilogue
    p1, H1, W1 = im2col_nhwc(x, 4, 2, 1)
    c1 = prep["w1"].shape[1]
    h1 = fused_matmul(p1, prep["w1"], prep["b1"],
                      epilogue="leaky", out_dtype=jnp.bfloat16)
    h1 = h1.reshape(B, H1, W1, c1)               # free view, stays (h, w, c)

    # conv2 (k4 s2 p1); its BN + LeakyReLU are deferred into fc1's prologue
    p2, H2, W2 = im2col_nhwc(h1, 4, 2, 1)
    h2 = fused_matmul(p2, prep["w2"], prep["b2"],
                      epilogue=None, out_dtype=jnp.bfloat16)
    C2 = h2.shape[1]

    # BatchNorm2d batch statistics (training mode, biased var), per channel.
    # TODO(synk): per-channel sum/sumsq could be emitted by the conv2 kernel
    # itself to avoid this extra read of h2; kept as JAX glue for simplicity.
    h2f = h2.astype(jnp.float32)
    mean2 = jnp.mean(h2f, axis=0)
    var2 = jnp.var(h2f, axis=0)
    scale2 = prep["g2"] * jax.lax.rsqrt(var2 + BN_EPS)
    shift2 = prep["be2"] - mean2 * scale2
    sp = H2 * W2
    scale2_flat = jnp.tile(scale2, sp)           # flattened column order (h,w,c)
    shift2_flat = jnp.tile(shift2, sp)

    # fc1: BN2d affine + LeakyReLU fused as the X-prologue of the matmul
    xfc = h2.reshape(B, sp * C2)                 # free view (row-major)
    f = fused_matmul(xfc, prep["wfc1"], prep["bfc1"],
                     x_scale=scale2_flat, x_shift=shift2_flat,
                     epilogue=None, out_dtype=jnp.bfloat16)

    # BatchNorm1d batch statistics for fc1's output
    ff = f.astype(jnp.float32)
    mean1 = jnp.mean(ff, axis=0)
    var1 = jnp.var(ff, axis=0)
    scale1 = prep["gfc1"] * jax.lax.rsqrt(var1 + BN_EPS)
    shift1 = prep["befc1"] - mean1 * scale1

    # Fused heads: BN1d affine + LeakyReLU prologue, one lane-dense matmul,
    # sigmoid applied to the dc columns inside the kernel via the mask input.
    out = fused_matmul(f, prep["wh"], prep["bh"],
                       x_scale=scale1, x_shift=shift1,
                       epilogue="sigmoid_mask", sig_mask=prep["mh"],
                       out_dtype=jnp.float32)
    d = out[:, :output_dim]
    c = out[:, output_dim:output_dim + class_num]
    return d, c


# ------------------------- Pure-JAX reference check --------------------------

def reference_forward(params, x):
    leaky = lambda v: jnp.where(v > 0, v, LEAKY_SLOPE * v)

    def conv(x, w, b):
        y = jax.lax.conv_general_dilated(
            x, w, (2, 2), [(1, 1), (1, 1)],
            dimension_numbers=("NCHW", "OIHW", "NCHW"))
        return y + b[None, :, None, None]

    h = leaky(conv(x, params["w1"], params["b1"]))
    h = conv(h, params["w2"], params["b2"])
    m = jnp.mean(h, axis=(0, 2, 3), keepdims=True)
    v = jnp.var(h, axis=(0, 2, 3), keepdims=True)
    h = (h - m) / jnp.sqrt(v + BN_EPS)
    h = h * params["g2"][None, :, None, None] + params["be2"][None, :, None, None]
    h = leaky(h)
    B = x.shape[0]
    h = h.reshape(B, -1)
    f = h @ params["wfc1"].T + params["bfc1"]
    m = jnp.mean(f, axis=0)
    v = jnp.var(f, axis=0)
    f = leaky((f - m) / jnp.sqrt(v + BN_EPS) * params["gfc1"] + params["befc1"])
    d = jax.nn.sigmoid(f @ params["wdc"].T + params["bdc"])
    c = f @ params["wcl"].T + params["bcl"]
    return d, c


# ------------------------------- Parameters ----------------------------------

def init_params(key, input_dim=3, output_dim=1, input_size=16, class_num=10):
    ks = jax.random.split(key, 12)
    fdim = 128 * (input_size // 4) * (input_size // 4)

    def n(k, shape, scale=0.05):
        return scale * jax.random.normal(k, shape, jnp.float32)

    return dict(
        w1=n(ks[0], (64, input_dim, 4, 4)), b1=n(ks[1], (64,)),
        w2=n(ks[2], (128, 64, 4, 4)), b2=n(ks[3], (128,)),
        g2=1.0 + n(ks[4], (128,)), be2=n(ks[5], (128,)),
        wfc1=n(ks[6], (1024, fdim)), bfc1=n(ks[7], (1024,)),
        gfc1=1.0 + n(ks[8], (1024,)), befc1=n(ks[9], (1024,)),
        wdc=n(ks[10], (output_dim, 1024)),
        bdc=jnp.zeros((output_dim,), jnp.float32),
        wcl=n(ks[11], (class_num, 1024)),
        bcl=jnp.zeros((class_num,), jnp.float32),
    )


if __name__ == "__main__":
    # TODO(synk): BatchNorm uses training-mode batch statistics (PyTorch module
    # default .train()); the eval variant would just source running stats into
    # the same fused scale/shift prologue.
    key = jax.random.PRNGKey(0)
    pkey, xkey = jax.random.split(key)
    B, C, S, NCLS = 4, 3, 16, 10
    params = init_params(pkey, input_dim=C, output_dim=1,
                         input_size=S, class_num=NCLS)
    prep = prepare_params(params, input_size=S)
    x = jax.random.normal(xkey, (B, C, S, S), jnp.float32)

    fwd = jax.jit(functools.partial(discriminator_forward,
                                    output_dim=1, class_num=NCLS))
    d, c = fwd(prep, x)
    d, c = jax.block_until_ready((d, c))

    d_ref, c_ref = reference_forward(params, x)
    assert d.shape == (B, 1) and c.shape == (B, NCLS)

    # bf16 MXU operands (f32 accumulation) vs a pure-f32 reference: compare
    # with tolerances appropriate for mixed precision.
    max_d = float(jnp.max(jnp.abs(d - d_ref)))
    rel_c = float(jnp.linalg.norm(c - c_ref) /
                  (jnp.linalg.norm(c_ref) + 1e-12))
    assert max_d < 5e-2, f"d mismatch: max abs err {max_d}"
    assert rel_c < 5e-2, f"c mismatch: rel l2 err {rel_c}"

    print("KERNEL_OK")
</pallas_src>

<mosaic_0001>
module attributes {stable_mosaic.version = 11 : i64} {
  func.func @kernel(%arg0: i32, %arg1: i32, %arg2: i32, %arg3: memref<256x48xbf16, #tpu.memory_space<vmem>>, %arg4: memref<48x64xbf16, #tpu.memory_space<vmem>>, %arg5: memref<1x64xf32, #tpu.memory_space<vmem>>, %arg6: memref<256x64xbf16, #tpu.memory_space<vmem>>, %arg7: memref<256x64xf32, #tpu.memory_space<vmem>>) attributes {dimension_semantics = [#tpu.dimension_semantics<parallel>, #tpu.dimension_semantics<parallel>, #tpu.dimension_semantics<arbitrary>], iteration_bounds = array<i64: 1, 1, 1>, scalar_prefetch = 0 : i64, scratch_operands = 1 : i64, tpu.core_type = #tpu.core_type<tc>, window_params = [{transform_indices = @transform_0, window_bounds = array<i64: 256, 48>}, {transform_indices = @transform_1, window_bounds = array<i64: 48, 64>}, {transform_indices = @transform_2, window_bounds = array<i64: 1, 64>}, {transform_indices = @transform_3, window_bounds = array<i64: 256, 64>}]} {
    %c0_i32 = arith.constant 0 : i32
    %0 = arith.cmpi eq, %arg2, %c0_i32 : i32
    %1 = arith.extui %0 : i1 to i32
    %c0_i32_0 = arith.constant 0 : i32
    %2 = arith.cmpi ne, %1, %c0_i32_0 : i32
    scf.if %2 {
      %cst_10 = arith.constant 0.000000e+00 : f32
      %12 = vector.broadcast %cst_10 : f32 to vector<256x64xf32>
      %c0_11 = arith.constant 0 : index
      %c0_12 = arith.constant 0 : index
      %13 = vector.load %arg7[%c0_11, %c0_12] : memref<256x64xf32, #tpu.memory_space<vmem>>, vector<256x64xf32>
      tpu.vector_store %arg7[%c0_11, %c0_12], %12 {strides = array<i32>} : memref<256x64xf32, #tpu.memory_space<vmem>>, vector<256x64xf32>,
    } else {
    }
    %c0 = arith.constant 0 : index
    %c0_1 = arith.constant 0 : index
    %3 = vector.load %arg3[%c0, %c0_1] : memref<256x48xbf16, #tpu.memory_space<vmem>>, vector<256x48xbf16>
    %c0_2 = arith.constant 0 : index
    %c0_3 = arith.constant 0 : index
    %4 = vector.load %arg7[%c0_2, %c0_3] : memref<256x64xf32, #tpu.memory_space<vmem>>, vector<256x64xf32>
    %c0_4 = arith.constant 0 : index
    %c0_5 = arith.constant 0 : index
    %5 = vector.load %arg4[%c0_4, %c0_5] : memref<48x64xbf16, #tpu.memory_space<vmem>>, vector<48x64xbf16>
    %cst = arith.constant dense<0.000000e+00> : vector<256x64xf32>
    %6 = tpu.matmul %3, %5, %cst {dimension_numbers = #tpu.dot_dimension_numbers<[1], [0], [0], [1], [0, 0, 1, 1], [], []>} : vector<256x48xbf16>, vector<48x64xbf16>, vector<256x64xf32> -> vector<256x64xf32>
    %7 = arith.addf %4, %6 : vector<256x64xf32>
    %c0_6 = arith.constant 0 : index
    %c0_7 = arith.constant 0 : index
    %8 = vector.load %arg7[%c0_6, %c0_7] : memref<256x64xf32, #tpu.memory_space<vmem>>, vector<256x64xf32>
    tpu.vector_store %arg7[%c0_6, %c0_7], %7 {strides = array<i32>} : memref<256x64xf32, #tpu.memory_space<vmem>>, vector<256x64xf32>,
    %c0_i32_8 = arith.constant 0 : i32
    %9 = arith.cmpi eq, %arg2, %c0_i32_8 : i32
    %10 = arith.extui %9 : i1 to i32
    %c0_i32_9 = arith.constant 0 : i32
    %11 = arith.cmpi ne, %10, %c0_i32_9 : i32
    scf.if %11 {
      %c0_10 = arith.constant 0 : index
      %c0_11 = arith.constant 0 : index
      %12 = vector.load %arg7[%c0_10, %c0_11] : memref<256x64xf32, #tpu.memory_space<vmem>>, vector<256x64xf32>
      %c0_12 = arith.constant 0 : index
      %c0_13 = arith.constant 0 : index
      %13 = vector.load %arg5[%c0_12, %c0_13] : memref<1x64xf32, #tpu.memory_space<vmem>>, vector<1x64xf32>
      %14 = vector.broadcast %13 : vector<1x64xf32> to vector<256x64xf32>
      %15 = arith.addf %12, %14 : vector<256x64xf32>
      %cst_14 = arith.constant 0.000000e+00 : f32
      %16 = vector.broadcast %cst_14 : f32 to vector<256x64xf32>
      %17 = arith.cmpf ogt, %15, %16 : vector<256x64xf32>
      %cst_15 = arith.constant 2.000000e-01 : f32
      %18 = vector.broadcast %cst_15 : f32 to vector<256x64xf32>
      %19 = arith.mulf %18, %15 : vector<256x64xf32>
      %20 = arith.select %17, %15, %19 : vector<256x64xi1>, vector<256x64xf32>
      %21 = arith.truncf %20 : vector<256x64xf32> to vector<256x64xbf16>
      %c0_16 = arith.constant 0 : index
      %c0_17 = arith.constant 0 : index
      %22 = vector.load %arg6[%c0_16, %c0_17] : memref<256x64xbf16, #tpu.memory_space<vmem>>, vector<256x64xbf16>
      tpu.vector_store %arg6[%c0_16, %c0_17], %21 {strides = array<i32>} : memref<256x64xbf16, #tpu.memory_space<vmem>>, vector<256x64xbf16>,
    } else {
    }
    return
  }
  func.func @transform_0(%arg0: i32, %arg1: i32, %arg2: i32) -> (i32, i32) {
    %c0_i32 = arith.constant 0 : i32
    return %arg0, %arg2 : i32, i32
  }
  func.func @transform_1(%arg0: i32, %arg1: i32, %arg2: i32) -> (i32, i32) {
    %c0_i32 = arith.constant 0 : i32
    return %arg2, %arg1 : i32, i32
  }
  func.func @transform_2(%arg0: i32, %arg1: i32, %arg2: i32) -> (i32, i32) {
    %c0_i32 = arith.constant 0 : i32
    %c0_i32_0 = arith.constant 0 : i32
    return %c0_i32, %arg1 : i32, i32
  }
  func.func @transform_3(%arg0: i32, %arg1: i32, %arg2: i32) -> (i32, i32) {
    %c0_i32 = arith.constant 0 : i32
    return %arg0, %arg1 : i32, i32
  }
}

module attributes {stable_mosaic.version = 11 : i64} {
  func.func @kernel(%arg0: i32, %arg1: i32, %arg2: i32, %arg3: memref<64x512xbf16, #tpu.memory_space<vmem>>, %arg4: memref<512x128xbf16, #tpu.memory_space<vmem>>, %arg5: memref<1x128xf32, #tpu.memory_space<vmem>>, %arg6: memref<64x128xbf16, #tpu.memory_space<vmem>>, %arg7: memref<64x128xf32, #tpu.memory_space<vmem>>) attributes {dimension_semantics = [#tpu.dimension_semantics<parallel>, #tpu.dimension_semantics<parallel>, #tpu.dimension_semantics<arbitrary>], iteration_bounds = array<i64: 1, 1, 2>, scalar_prefetch = 0 : i64, scratch_operands = 1 : i64, tpu.core_type = #tpu.core_type<tc>, window_params = [{transform_indices = @transform_0, window_bounds = array<i64: 64, 512>}, {transform_indices = @transform_1, window_bounds = array<i64: 512, 128>}, {transform_indices = @transform_2, window_bounds = array<i64: 1, 128>}, {transform_indices = @transform_3, window_bounds = array<i64: 64, 128>}]} {
    %c0_i32 = arith.constant 0 : i32
    %0 = arith.cmpi eq, %arg2, %c0_i32 : i32
    %1 = arith.extui %0 : i1 to i32
    %c0_i32_0 = arith.constant 0 : i32
    %2 = arith.cmpi ne, %1, %c0_i32_0 : i32
    scf.if %2 {
      %cst_9 = arith.constant 0.000000e+00 : f32
      %12 = vector.broadcast %cst_9 : f32 to vector<64x128xf32>
      %c0_10 = arith.constant 0 : index
      %c0_11 = arith.constant 0 : index
      %13 = vector.load %arg7[%c0_10, %c0_11] : memref<64x128xf32, #tpu.memory_space<vmem>>, vector<64x128xf32>
      tpu.vector_store %arg7[%c0_10, %c0_11], %12 {strides = array<i32>} : memref<64x128xf32, #tpu.memory_space<vmem>>, vector<64x128xf32>,
    } else {
    }
    %c0 = arith.constant 0 : index
    %c0_1 = arith.constant 0 : index
    %3 = vector.load %arg3[%c0, %c0_1] : memref<64x512xbf16, #tpu.memory_space<vmem>>, vector<64x512xbf16>
    %c0_2 = arith.constant 0 : index
    %c0_3 = arith.constant 0 : index
    %4 = vector.load %arg7[%c0_2, %c0_3] : memref<64x128xf32, #tpu.memory_space<vmem>>, vector<64x128xf32>
    %c0_4 = arith.constant 0 : index
    %c0_5 = arith.constant 0 : index
    %5 = vector.load %arg4[%c0_4, %c0_5] : memref<512x128xbf16, #tpu.memory_space<vmem>>, vector<512x128xbf16>
    %cst = arith.constant dense<0.000000e+00> : vector<64x128xf32>
    %6 = tpu.matmul %3, %5, %cst {dimension_numbers = #tpu.dot_dimension_numbers<[1], [0], [0], [1], [0, 0, 1, 1], [], []>} : vector<64x512xbf16>, vector<512x128xbf16>, vector<64x128xf32> -> vector<64x128xf32>
    %7 = arith.addf %4, %6 : vector<64x128xf32>
    %c0_6 = arith.constant 0 : index
    %c0_7 = arith.constant 0 : index
    %8 = vector.load %arg7[%c0_6, %c0_7] : memref<64x128xf32, #tpu.memory_space<vmem>>, vector<64x128xf32>
    tpu.vector_store %arg7[%c0_6, %c0_7], %7 {strides = array<i32>} : memref<64x128xf32, #tpu.memory_space<vmem>>, vector<64x128xf32>,
    %c1_i32 = arith.constant 1 : i32
    %9 = arith.cmpi eq, %arg2, %c1_i32 : i32
    %10 = arith.extui %9 : i1 to i32
    %c0_i32_8 = arith.constant 0 : i32
    %11 = arith.cmpi ne, %10, %c0_i32_8 : i32
    scf.if %11 {
      %c0_9 = arith.constant 0 : index
      %c0_10 = arith.constant 0 : index
      %12 = vector.load %arg7[%c0_9, %c0_10] : memref<64x128xf32, #tpu.memory_space<vmem>>, vector<64x128xf32>
      %c0_11 = arith.constant 0 : index
      %c0_12 = arith.constant 0 : index
      %13 = vector.load %arg5[%c0_11, %c0_12] : memref<1x128xf32, #tpu.memory_space<vmem>>, vector<1x128xf32>
      %14 = vector.broadcast %13 : vector<1x128xf32> to vector<64x128xf32>
      %15 = arith.addf %12, %14 : vector<64x128xf32>
      %16 = arith.truncf %15 : vector<64x128xf32> to vector<64x128xbf16>
      %c0_13 = arith.constant 0 : index
      %c0_14 = arith.constant 0 : index
      %17 = vector.load %arg6[%c0_13, %c0_14] : memref<64x128xbf16, #tpu.memory_space<vmem>>, vector<64x128xbf16>
      tpu.vector_store %arg6[%c0_13, %c0_14], %16 {strides = array<i32>} : memref<64x128xbf16, #tpu.memory_space<vmem>>, vector<64x128xbf16>,
    } else {
    }
    return
  }
  func.func @transform_0(%arg0: i32, %arg1: i32, %arg2: i32) -> (i32, i32) {
    %c0_i32 = arith.constant 0 : i32
    return %arg0, %arg2 : i32, i32
  }
  func.func @transform_1(%arg0: i32, %arg1: i32, %arg2: i32) -> (i32, i32) {
    %c0_i32 = arith.constant 0 : i32
    return %arg2, %arg1 : i32, i32
  }
  func.func @transform_2(%arg0: i32, %arg1: i32, %arg2: i32) -> (i32, i32) {
    %c0_i32 = arith.constant 0 : i32
    %c0_i32_0 = arith.constant 0 : i32
    return %c0_i32, %arg1 : i32, i32
  }
  func.func @transform_3(%arg0: i32, %arg1: i32, %arg2: i32) -> (i32, i32) {
    %c0_i32 = arith.constant 0 : i32
    return %arg0, %arg1 : i32, i32
  }
}

module attributes {stable_mosaic.version = 11 : i64} {
  func.func @kernel(%arg0: i32, %arg1: i32, %arg2: i32, %arg3: memref<4x512xbf16, #tpu.memory_space<vmem>>, %arg4: memref<1x512xf32, #tpu.memory_space<vmem>>, %arg5: memref<1x512xf32, #tpu.memory_space<vmem>>, %arg6: memref<512x256xbf16, #tpu.memory_space<vmem>>, %arg7: memref<1x256xf32, #tpu.memory_space<vmem>>, %arg8: memref<4x256xbf16, #tpu.memory_space<vmem>>, %arg9: memref<4x256xf32, #tpu.memory_space<vmem>>) attributes {dimension_semantics = [#tpu.dimension_semantics<parallel>, #tpu.dimension_semantics<parallel>, #tpu.dimension_semantics<arbitrary>], iteration_bounds = array<i64: 1, 4, 4>, scalar_prefetch = 0 : i64, scratch_operands = 1 : i64, tpu.core_type = #tpu.core_type<tc>, window_params = [{transform_indices = @transform_0, window_bounds = array<i64: 4, 512>}, {transform_indices = @transform_1, window_bounds = array<i64: 1, 512>}, {transform_indices = @transform_2, window_bounds = array<i64: 1, 512>}, {transform_indices = @transform_3, window_bounds = array<i64: 512, 256>}, {transform_indices = @transform_4, window_bounds = array<i64: 1, 256>}, {transform_indices = @transform_5, window_bounds = array<i64: 4, 256>}]} {
    %c0_i32 = arith.constant 0 : i32
    %0 = arith.cmpi eq, %arg2, %c0_i32 : i32
    %1 = arith.extui %0 : i1 to i32
    %c0_i32_0 = arith.constant 0 : i32
    %2 = arith.cmpi ne, %1, %c0_i32_0 : i32
    scf.if %2 {
      %cst_15 = arith.constant 0.000000e+00 : f32
      %25 = vector.broadcast %cst_15 : f32 to vector<4x256xf32>
      %c0_16 = arith.constant 0 : index
      %c0_17 = arith.constant 0 : index
      %26 = vector.load %arg9[%c0_16, %c0_17] : memref<4x256xf32, #tpu.memory_space<vmem>>, vector<4x256xf32>
      tpu.vector_store %arg9[%c0_16, %c0_17], %25 {strides = array<i32>} : memref<4x256xf32, #tpu.memory_space<vmem>>, vector<4x256xf32>,
    } else {
    }
    %c0 = arith.constant 0 : index
    %c0_1 = arith.constant 0 : index
    %3 = vector.load %arg3[%c0, %c0_1] : memref<4x512xbf16, #tpu.memory_space<vmem>>, vector<4x512xbf16>
    %4 = arith.extf %3 : vector<4x512xbf16> to vector<4x512xf32>
    %c0_2 = arith.constant 0 : index
    %c0_3 = arith.constant 0 : index
    %5 = vector.load %arg4[%c0_2, %c0_3] : memref<1x512xf32, #tpu.memory_space<vmem>>, vector<1x512xf32>
    %6 = vector.broadcast %5 : vector<1x512xf32> to vector<4x512xf32>
    %7 = arith.mulf %4, %6 : vector<4x512xf32>
    %c0_4 = arith.constant 0 : index
    %c0_5 = arith.constant 0 : index
    %8 = vector.load %arg5[%c0_4, %c0_5] : memref<1x512xf32, #tpu.memory_space<vmem>>, vector<1x512xf32>
    %9 = vector.broadcast %8 : vector<1x512xf32> to vector<4x512xf32>
    %10 = arith.addf %7, %9 : vector<4x512xf32>
    %cst = arith.constant 0.000000e+00 : f32
    %11 = vector.broadcast %cst : f32 to vector<4x512xf32>
    %12 = arith.cmpf ogt, %10, %11 : vector<4x512xf32>
    %cst_6 = arith.constant 2.000000e-01 : f32
    %13 = vector.broadcast %cst_6 : f32 to vector<4x512xf32>
    %14 = arith.mulf %13, %10 : vector<4x512xf32>
    %15 = arith.select %12, %10, %14 : vector<4x512xi1>, vector<4x512xf32>
    %16 = arith.truncf %15 : vector<4x512xf32> to vector<4x512xbf16>
    %c0_7 = arith.constant 0 : index
    %c0_8 = arith.constant 0 : index
    %17 = vector.load %arg9[%c0_7, %c0_8] : memref<4x256xf32, #tpu.memory_space<vmem>>, vector<4x256xf32>
    %c0_9 = arith.constant 0 : index
    %c0_10 = arith.constant 0 : index
    %18 = vector.load %arg6[%c0_9, %c0_10] : memref<512x256xbf16, #tpu.memory_space<vmem>>, vector<512x256xbf16>
    %cst_11 = arith.constant dense<0.000000e+00> : vector<4x256xf32>
    %19 = tpu.matmul %16, %18, %cst_11 {dimension_numbers = #tpu.dot_dimension_numbers<[1], [0], [0], [1], [0, 0, 1, 1], [], []>} : vector<4x512xbf16>, vector<512x256xbf16>, vector<4x256xf32> -> vector<4x256xf32>
    %20 = arith.addf %17, %19 : vector<4x256xf32>
    %c0_12 = arith.constant 0 : index
    %c0_13 = arith.constant 0 : index
    %21 = vector.load %arg9[%c0_12, %c0_13] : memref<4x256xf32, #tpu.memory_space<vmem>>, vector<4x256xf32>
    tpu.vector_store %arg9[%c0_12, %c0_13], %20 {strides = array<i32>} : memref<4x256xf32, #tpu.memory_space<vmem>>, vector<4x256xf32>,
    %c3_i32 = arith.constant 3 : i32
    %22 = arith.cmpi eq, %arg2, %c3_i32 : i32
    %23 = arith.extui %22 : i1 to i32
    %c0_i32_14 = arith.constant 0 : i32
    %24 = arith.cmpi ne, %23, %c0_i32_14 : i32
    scf.if %24 {
      %c0_15 = arith.constant 0 : index
      %c0_16 = arith.constant 0 : index
      %25 = vector.load %arg9[%c0_15, %c0_16] : memref<4x256xf32, #tpu.memory_space<vmem>>, vector<4x256xf32>
      %c0_17 = arith.constant 0 : index
      %c0_18 = arith.constant 0 : index
      %26 = vector.load %arg7[%c0_17, %c0_18] : memref<1x256xf32, #tpu.memory_space<vmem>>, vector<1x256xf32>
      %27 = vector.broadcast %26 : vector<1x256xf32> to vector<4x256xf32>
      %28 = arith.addf %25, %27 : vector<4x256xf32>
      %29 = arith.truncf %28 : vector<4x256xf32> to vector<4x256xbf16>
      %c0_19 = arith.constant 0 : index
      %c0_20 = arith.constant 0 : index
      %30 = vector.load %arg8[%c0_19, %c0_20] : memref<4x256xbf16, #tpu.memory_space<vmem>>, vector<4x256xbf16>
      tpu.vector_store %arg8[%c0_19, %c0_20], %29 {strides = array<i32>} : memref<4x256xbf16, #tpu.memory_space<vmem>>, vector<4x256xbf16>,
    } else {
    }
    return
  }
  func.func @transform_0(%arg0: i32, %arg1: i32, %arg2: i32) -> (i32, i32) {
    %c0_i32 = arith.constant 0 : i32
    return %arg0, %arg2 : i32, i32
  }
  func.func @transform_1(%arg0: i32, %arg1: i32, %arg2: i32) -> (i32, i32) {
    %c0_i32 = arith.constant 0 : i32
    %c0_i32_0 = arith.constant 0 : i32
    return %c0_i32, %arg2 : i32, i32
  }
  func.func @transform_2(%arg0: i32, %arg1: i32, %arg2: i32) -> (i32, i32) {
    %c0_i32 = arith.constant 0 : i32
    %c0_i32_0 = arith.constant 0 : i32
    return %c0_i32, %arg2 : i32, i32
  }
  func.func @transform_3(%arg0: i32, %arg1: i32, %arg2: i32) -> (i32, i32) {
    %c0_i32 = arith.constant 0 : i32
    return %arg2, %arg1 : i32, i32
  }
  func.func @transform_4(%arg0: i32, %arg1: i32, %arg2: i32) -> (i32, i32) {
    %c0_i32 = arith.constant 0 : i32
    %c0_i32_0 = arith.constant 0 : i32
    return %c0_i32, %arg1 : i32, i32
  }
  func.func @transform_5(%arg0: i32, %arg1: i32, %arg2: i32) -> (i32, i32) {
    %c0_i32 = arith.constant 0 : i32
    return %arg0, %arg1 : i32, i32
  }
}

module attributes {stable_mosaic.version = 11 : i64} {
  func.func @kernel(%arg0: i32, %arg1: i32, %arg2: i32, %arg3: memref<4x512xbf16, #tpu.memory_space<vmem>>, %arg4: memref<1x512xf32, #tpu.memory_space<vmem>>, %arg5: memref<1x512xf32, #tpu.memory_space<vmem>>, %arg6: memref<512x128xbf16, #tpu.memory_space<vmem>>, %arg7: memref<1x128xf32, #tpu.memory_space<vmem>>, %arg8: memref<1x128xf32, #tpu.memory_space<vmem>>, %arg9: memref<4x128xf32, #tpu.memory_space<vmem>>, %arg10: memref<4x128xf32, #tpu.memory_space<vmem>>) attributes {dimension_semantics = [#tpu.dimension_semantics<parallel>, #tpu.dimension_semantics<parallel>, #tpu.dimension_semantics<arbitrary>], iteration_bounds = array<i64: 1, 1, 2>, scalar_prefetch = 0 : i64, scratch_operands = 1 : i64, tpu.core_type = #tpu.core_type<tc>, window_params = [{transform_indices = @transform_0, window_bounds = array<i64: 4, 512>}, {transform_indices = @transform_1, window_bounds = array<i64: 1, 512>}, {transform_indices = @transform_2, window_bounds = array<i64: 1, 512>}, {transform_indices = @transform_3, window_bounds = array<i64: 512, 128>}, {transform_indices = @transform_4, window_bounds = array<i64: 1, 128>}, {transform_indices = @transform_5, window_bounds = array<i64: 1, 128>}, {transform_indices = @transform_6, window_bounds = array<i64: 4, 128>}]} {
    %c0_i32 = arith.constant 0 : i32
    %0 = arith.cmpi eq, %arg2, %c0_i32 : i32
    %1 = arith.extui %0 : i1 to i32
    %c0_i32_0 = arith.constant 0 : i32
    %2 = arith.cmpi ne, %1, %c0_i32_0 : i32
    scf.if %2 {
      %cst_15 = arith.constant 0.000000e+00 : f32
      %25 = vector.broadcast %cst_15 : f32 to vector<4x128xf32>
      %c0_16 = arith.constant 0 : index
      %c0_17 = arith.constant 0 : index
      %26 = vector.load %arg10[%c0_16, %c0_17] : memref<4x128xf32, #tpu.memory_space<vmem>>, vector<4x128xf32>
      tpu.vector_store %arg10[%c0_16, %c0_17], %25 {strides = array<i32>} : memref<4x128xf32, #tpu.memory_space<vmem>>, vector<4x128xf32>,
    } else {
    }
    %c0 = arith.constant 0 : index
    %c0_1 = arith.constant 0 : index
    %3 = vector.load %arg3[%c0, %c0_1] : memref<4x512xbf16, #tpu.memory_space<vmem>>, vector<4x512xbf16>
    %4 = arith.extf %3 : vector<4x512xbf16> to vector<4x512xf32>
    %c0_2 = arith.constant 0 : index
    %c0_3 = arith.constant 0 : index
    %5 = vector.load %arg4[%c0_2, %c0_3] : memref<1x512xf32, #tpu.memory_space<vmem>>, vector<1x512xf32>
    %6 = vector.broadcast %5 : vector<1x512xf32> to vector<4x512xf32>
    %7 = arith.mulf %4, %6 : vector<4x512xf32>
    %c0_4 = arith.constant 0 : index
    %c0_5 = arith.constant 0 : index
    %8 = vector.load %arg5[%c0_4, %c0_5] : memref<1x512xf32, #tpu.memory_space<vmem>>, vector<1x512xf32>
    %9 = vector.broadcast %8 : vector<1x512xf32> to vector<4x512xf32>
    %10 = arith.addf %7, %9 : vector<4x512xf32>
    %cst = arith.constant 0.000000e+00 : f32
    %11 = vector.broadcast %cst : f32 to vector<4x512xf32>
    %12 = arith.cmpf ogt, %10, %11 : vector<4x512xf32>
    %cst_6 = arith.constant 2.000000e-01 : f32
    %13 = vector.broadcast %cst_6 : f32 to vector<4x512xf32>
    %14 = arith.mulf %13, %10 : vector<4x512xf32>
    %15 = arith.select %12, %10, %14 : vector<4x512xi1>, vector<4x512xf32>
    %16 = arith.truncf %15 : vector<4x512xf32> to vector<4x512xbf16>
    %c0_7 = arith.constant 0 : index
    %c0_8 = arith.constant 0 : index
    %17 = vector.load %arg10[%c0_7, %c0_8] : memref<4x128xf32, #tpu.memory_space<vmem>>, vector<4x128xf32>
    %c0_9 = arith.constant 0 : index
    %c0_10 = arith.constant 0 : index
    %18 = vector.load %arg6[%c0_9, %c0_10] : memref<512x128xbf16, #tpu.memory_space<vmem>>, vector<512x128xbf16>
    %cst_11 = arith.constant dense<0.000000e+00> : vector<4x128xf32>
    %19 = tpu.matmul %16, %18, %cst_11 {dimension_numbers = #tpu.dot_dimension_numbers<[1], [0], [0], [1], [0, 0, 1, 1], [], []>} : vector<4x512xbf16>, vector<512x128xbf16>, vector<4x128xf32> -> vector<4x128xf32>
    %20 = arith.addf %17, %19 : vector<4x128xf32>
    %c0_12 = arith.constant 0 : index
    %c0_13 = arith.constant 0 : index
    %21 = vector.load %arg10[%c0_12, %c0_13] : memref<4x128xf32, #tpu.memory_space<vmem>>, vector<4x128xf32>
    tpu.vector_store %arg10[%c0_12, %c0_13], %20 {strides = array<i32>} : memref<4x128xf32, #tpu.memory_space<vmem>>, vector<4x128xf32>,
    %c1_i32 = arith.constant 1 : i32
    %22 = arith.cmpi eq, %arg2, %c1_i32 : i32
    %23 = arith.extui %22 : i1 to i32
    %c0_i32_14 = arith.constant 0 : i32
    %24 = arith.cmpi ne, %23, %c0_i32_14 : i32
    scf.if %24 {
      %c0_15 = arith.constant 0 : index
      %c0_16 = arith.constant 0 : index
      %25 = vector.load %arg10[%c0_15, %c0_16] : memref<4x128xf32, #tpu.memory_space<vmem>>, vector<4x128xf32>
      %c0_17 = arith.constant 0 : index
      %c0_18 = arith.constant 0 : index
      %26 = vector.load %arg7[%c0_17, %c0_18] : memref<1x128xf32, #tpu.memory_space<vmem>>, vector<1x128xf32>
      %27 = vector.broadcast %26 : vector<1x128xf32> to vector<4x128xf32>
      %28 = arith.addf %25, %27 : vector<4x128xf32>
      %c0_19 = arith.constant 0 : index
      %c0_20 = arith.constant 0 : index
      %29 = vector.load %arg8[%c0_19, %c0_20] : memref<1x128xf32, #tpu.memory_space<vmem>>, vector<1x128xf32>
      %30 = arith.negf %28 : vector<4x128xf32>
      %31 = math.exp %30 : vector<4x128xf32>
      %cst_21 = arith.constant 1.000000e+00 : f32
      %32 = vector.broadcast %cst_21 : f32 to vector<4x128xf32>
      %33 = arith.addf %32, %31 : vector<4x128xf32>
      %34 = arith.divf %32, %33 : vector<4x128xf32>
      %35 = vector.broadcast %29 : vector<1x128xf32> to vector<4x128xf32>
      %36 = arith.mulf %35, %34 : vector<4x128xf32>
      %cst_22 = arith.constant 1.000000e+00 : f32
      %37 = vector.broadcast %cst_22 : f32 to vector<1x128xf32>
      %38 = arith.subf %37, %29 : vector<1x128xf32>
      %39 = vector.broadcast %38 : vector<1x128xf32> to vector<4x128xf32>
      %40 = arith.mulf %39, %28 : vector<4x128xf32>
      %41 = arith.addf %36, %40 : vector<4x128xf32>
      %c0_23 = arith.constant 0 : index
      %c0_24 = arith.constant 0 : index
      %42 = vector.load %arg9[%c0_23, %c0_24] : memref<4x128xf32, #tpu.memory_space<vmem>>, vector<4x128xf32>
      tpu.vector_store %arg9[%c0_23, %c0_24], %41 {strides = array<i32>} : memref<4x128xf32, #tpu.memory_space<vmem>>, vector<4x128xf32>,
    } else {
    }
    return
  }
  func.func @transform_0(%arg0: i32, %arg1: i32, %arg2: i32) -> (i32, i32) {
    %c0_i32 = arith.constant 0 : i32
    return %arg0, %arg2 : i32, i32
  }
  func.func @transform_1(%arg0: i32, %arg1: i32, %arg2: i32) -> (i32, i32) {
    %c0_i32 = arith.constant 0 : i32
    %c0_i32_0 = arith.constant 0 : i32
    return %c0_i32, %arg2 : i32, i32
  }
  func.func @transform_2(%arg0: i32, %arg1: i32, %arg2: i32) -> (i32, i32) {
    %c0_i32 = arith.constant 0 : i32
    %c0_i32_0 = arith.constant 0 : i32
    return %c0_i32, %arg2 : i32, i32
  }
  func.func @transform_3(%arg0: i32, %arg1: i32, %arg2: i32) -> (i32, i32) {
    %c0_i32 = arith.constant 0 : i32
    return %arg2, %arg1 : i32, i32
  }
  func.func @transform_4(%arg0: i32, %arg1: i32, %arg2: i32) -> (i32, i32) {
    %c0_i32 = arith.constant 0 : i32
    %c0_i32_0 = arith.constant 0 : i32
    return %c0_i32, %arg1 : i32, i32
  }
  func.func @transform_5(%arg0: i32, %arg1: i32, %arg2: i32) -> (i32, i32) {
    %c0_i32 = arith.constant 0 : i32
    %c0_i32_0 = arith.constant 0 : i32
    return %c0_i32, %arg1 : i32, i32
  }
  func.func @transform_6(%arg0: i32, %arg1: i32, %arg2: i32) -> (i32, i32) {
    %c0_i32 = arith.constant 0 : i32
    return %arg0, %arg1 : i32, i32
  }
}

</mosaic_0001>

<llo_original>
// kernel: discriminator_forward.4
$region0: #{discriminator_forward.4}
  #allocation0 [shape = 'u32[]', space=smem, size = 0x4, offset = 0x4, fixed_abs, tag = 'smem constant byte address 0x4 - core index']
  #allocation1 [shape = 'u32[72,128]{1,0:T(1,128)}', space=vmem, size = 0x9000, scoped, tag = 'internal scratch']
  #allocation2 [shape = 'f32[256,64]{1,0:T(8,128)}', space=vmem, size = 0x20000, scoped, tag = 'scratch operand']
  %s0 = inlined_call_operand.vmem [shape: bf16[256,48], index: 0, kind: input, shape index: {}]
  %s1 = inlined_call_operand.hbm [shape: bf16[48,64], index: 1, kind: input, shape index: {}]
  %s2 = inlined_call_operand.hbm [shape: f32[1,64], index: 2, kind: input, shape index: {}]
  %s3 = inlined_call_operand.vmem [shape: bf16[256,64], index: 3, kind: output, shape index: {}]
  %s4 = sld [smem:[#allocation0]]
  $region38: #{discriminator_forward.4} parent=0
    _
  %s6 = ssub.s32 1, %s4
  %s7 = scalar_select 0, %s6, %s4
  $region1: #{discriminator_forward.4} parent=0
    #allocation3 [shape = 'u8[12288]{0}', space=vmem, size = 0x3000, scoped, tag = 'input window, operand 1, single buffered']
    #allocation4 [shape = 's32[1]{0}', space=sflag, size = 0x4, scoped, tag = 'scoped memory for discriminator_forward.4']
    #allocation5 [shape = 'u8[512]{0}', space=vmem, size = 0x400, scoped, tag = 'input window, operand 2, single buffered']
    #allocation6 [shape = 's32[1]{0}', space=sflag, size = 0x4, scoped, tag = 'scoped memory for discriminator_forward.4']
    %8 = vsyncpa [#allocation4], 0
    %9 = vsyncpa [#allocation6], 0
    // Predicated region
    $region2: #{discriminator_forward.4} parent=1 // pred_check
      _
    $region3: #{discriminator_forward.4} parent=1 // pred_check_branch
      %11 = sbr.rel (0) target = $region5
    $region4: #{discriminator_forward.4} parent=1 // pred_region
      _
    $region5: #{discriminator_forward.4} parent=1 // pred_fallthru
      _
    // Predicated region
    $region6: #{discriminator_forward.4} parent=1 // pred_check
      _
    $region7: #{discriminator_forward.4} parent=1 // pred_check_branch
      %13 = sbr.rel (0) target = $region9
    $region8: #{discriminator_forward.4} parent=1 // pred_region
      %15 = vsyncadd [#allocation4], 0
      %s16 = sshll.u32 %s1, 4
      %s17 = int_to_ptr.hbm [resolvable:$true] %s16
      %s18 = sshll.u32 [#allocation3], 4
      %s19 = int_to_ptr.vmem [resolvable:$true] %s18
      %24 = dma.hbm_to_vmem [thread:$0]  %s17, 384, %s19, [#allocation4], 64, 64, 4
    $region9: #{discriminator_forward.4} parent=1 // pred_fallthru
      _
    // Predicated region
    $region10: #{discriminator_forward.4} parent=1 // pred_check
      _
    $region11: #{discriminator_forward.4} parent=1 // pred_check_branch
      %26 = sbr.rel (0) target = $region13
    $region12: #{discriminator_forward.4} parent=1 // pred_region
      %28 = vsyncadd [#allocation6], 0
      %s30 = sshll.u32 %s2, 4
      %s31 = int_to_ptr.hbm [resolvable:$true] %s30
      %s32 = sshll.u32 [#allocation5], 4
      %s33 = int_to_ptr.vmem [resolvable:$true] %s32
      %35 = dma.hbm_to_vmem [thread:$0]  %s31, 16, %s33, [#allocation6]
    $region13: #{discriminator_forward.4} parent=1 // pred_fallthru
      _
    // Predicated region
    $region14: #{discriminator_forward.4} parent=1 // pred_check
      _
    $region15: #{discriminator_forward.4} parent=1 // pred_check_branch
      %37 = sbr.rel (0) target = $region17
    $region16: #{discriminator_forward.4} parent=1 // pred_region
      %39 = dma.done [#allocation4], 384
    $region17: #{discriminator_forward.4} parent=1 // pred_fallthru
      _
    // Predicated region
    $region18: #{discriminator_forward.4} parent=1 // pred_check
      _
    $region19: #{discriminator_forward.4} parent=1 // pred_check_branch
      %41 = sbr.rel (0) target = $region21
    $region20: #{discriminator_forward.4} parent=1 // pred_region
      %43 = dma.done [#allocation6], 16
    $region21: #{discriminator_forward.4} parent=1 // pred_fallthru
      _
    %p45 = scmp.eq.s32.totalorder 0, 0
    // Predicated region
    $region22: #{discriminator_forward.4} parent=1 // pred_check
      %p46 = pneg %p45
    $region23: #{discriminator_forward.4} parent=1 // pred_check_branch
      %48 = sbr.rel (%p46) target = $region25
    $region24: #{discriminator_forward.4} parent=1 // pred_region
      %vm49 = vcmask 523264
      %50 = vst.msk [vmem:[#allocation2] sm:$0xff] %vm49, 0.0
      %51 = vst.msk [vmem:[#allocation2 + $0x8] sm:$0xff] %vm49, 0.0
      %52 = vst.msk [vmem:[#allocation2 + $0x10] sm:$0xff] %vm49, 0.0
      %53 = vst.msk [vmem:[#allocation2 + $0x18] sm:$0xff] %vm49, 0.0
      %54 = vst.msk [vmem:[#allocation2 + $0x20] sm:$0xff] %vm49, 0.0
      %55 = vst.msk [vmem:[#allocation2 + $0x28] sm:$0xff] %vm49, 0.0
      %56 = vst.msk [vmem:[#allocation2 + $0x30] sm:$0xff] %vm49, 0.0
      %57 = vst.msk [vmem:[#allocation2 + $0x38] sm:$0xff] %vm49, 0.0
      %58 = vst.msk [vmem:[#allocation2 + $0x40] sm:$0xff] %vm49, 0.0
      %59 = vst.msk [vmem:[#allocation2 + $0x48] sm:$0xff] %vm49, 0.0
      %60 = vst.msk [vmem:[#allocation2 + $0x50] sm:$0xff] %vm49, 0.0
      %61 = vst.msk [vmem:[#allocation2 + $0x58] sm:$0xff] %vm49, 0.0
      %62 = vst.msk [vmem:[#allocation2 + $0x60] sm:$0xff] %vm49, 0.0
      %63 = vst.msk [vmem:[#allocation2 + $0x68] sm:$0xff] %vm49, 0.0
      %64 = vst.msk [vmem:[#allocation2 + $0x70] sm:$0xff] %vm49, 0.0
      %65 = vst.msk [vmem:[#allocation2 + $0x78] sm:$0xff] %vm49, 0.0
      %66 = vst.msk [vmem:[#allocation2 + $0x80] sm:$0xff] %vm49, 0.0
      %67 = vst.msk [vmem:[#allocation2 + $0x88] sm:$0xff] %vm49, 0.0
      %68 = vst.msk [vmem:[#allocation2 + $0x90] sm:$0xff] %vm49, 0.0
      %69 = vst.msk [vmem:[#allocation2 + $0x98] sm:$0xff] %vm49, 0.0
      %70 = vst.msk [vmem:[#allocation2 + $0xa0] sm:$0xff] %vm49, 0.0
      %71 = vst.msk [vmem:[#allocation2 + $0xa8] sm:$0xff] %vm49, 0.0
      %72 = vst.msk [vmem:[#allocation2 + $0xb0] sm:$0xff] %vm49, 0.0
      %73 = vst.msk [vmem:[#allocation2 + $0xb8] sm:$0xff] %vm49, 0.0
      %74 = vst.msk [vmem:[#allocation2 + $0xc0] sm:$0xff] %vm49, 0.0
      %75 = vst.msk [vmem:[#allocation2 + $0xc8] sm:$0xff] %vm49, 0.0
      %76 = vst.msk [vmem:[#allocation2 + $0xd0] sm:$0xff] %vm49, 0.0
      %77 = vst.msk [vmem:[#allocation2 + $0xd8] sm:$0xff] %vm49, 0.0
      %78 = vst.msk [vmem:[#allocation2 + $0xe0] sm:$0xff] %vm49, 0.0
      %79 = vst.msk [vmem:[#allocation2 + $0xe8] sm:$0xff] %vm49, 0.0
      %80 = vst.msk [vmem:[#allocation2 + $0xf0] sm:$0xff] %vm49, 0.0
      %81 = vst.msk [vmem:[#allocation2 + $0xf8] sm:$0xff] %vm49, 0.0
    $region25: #{discriminator_forward.4} parent=1 // pred_fallthru
      _
    %v82 = vld [vmem:[%s0] sm:$0xf]
    %v83 = vld [vmem:[%s0 + $0x4] sm:$0xf]
    %v84 = vld [vmem:[%s0 + $0x8] sm:$0xf]
    %v85 = vld [vmem:[%s0 + $0xc] sm:$0xf]
    %v86 = vld [vmem:[%s0 + $0x10] sm:$0xf]
    %v87 = vld [vmem:[%s0 + $0x14] sm:$0xf]
    %v88 = vld [vmem:[%s0 + $0x18] sm:$0xf]
    %v89 = vld [vmem:[%s0 + $0x1c] sm:$0xf]
    %v90 = vld [vmem:[%s0 + $0x20] sm:$0xf]
    %v91 = vld [vmem:[%s0 + $0x24] sm:$0xf]
    %v92 = vld [vmem:[%s0 + $0x28] sm:$0xf]
    %v93 = vld [vmem:[%s0 + $0x2c] sm:$0xf]
    %v94 = vld [vmem:[%s0 + $0x30] sm:$0xf]
    %v95 = vld [vmem:[%s0 + $0x34] sm:$0xf]
    %v96 = vld [vmem:[%s0 + $0x38] sm:$0xf]
    %v97 = vld [vmem:[%s0 + $0x3c] sm:$0xf]
    %v98 = vld [vmem:[%s0 + $0x40] sm:$0xf]
    %v99 = vld [vmem:[%s0 + $0x44] sm:$0xf]
    %v100 = vld [vmem:[%s0 + $0x48] sm:$0xf]
    %v101 = vld [vmem:[%s0 + $0x4c] sm:$0xf]
    %v102 = vld [vmem:[%s0 + $0x50] sm:$0xf]
    %v103 = vld [vmem:[%s0 + $0x54] sm:$0xf]
    %v104 = vld [vmem:[%s0 + $0x58] sm:$0xf]
    %v105 = vld [vmem:[%s0 + $0x5c] sm:$0xf]
    %v106 = vld [vmem:[%s0 + $0x60] sm:$0xf]
    %v107 = vld [vmem:[%s0 + $0x64] sm:$0xf]
    %v108 = vld [vmem:[%s0 + $0x68] sm:$0xf]
    %v109 = vld [vmem:[%s0 + $0x6c] sm:$0xf]
    %v110 = vld [vmem:[%s0 + $0x70] sm:$0xf]
    %v111 = vld [vmem:[%s0 + $0x74] sm:$0xf]
    %v112 = vld [vmem:[%s0 + $0x78] sm:$0xf]
    %v113 = vld [vmem:[%s0 + $0x7c] sm:$0xf]
    %v114 = vld [vmem:[#allocation2] sm:$0xff]
    %v115 = vld [vmem:[#allocation2 + $0x8] sm:$0xff]
    %v116 = vld [vmem:[#allocation2 + $0x10] sm:$0xff]
    %v117 = vld [vmem:[#allocation2 + $0x18] sm:$0xff]
    %v118 = vld [vmem:[#allocation2 + $0x20] sm:$0xff]
    %v119 = vld [vmem:[#allocation2 + $0x28] sm:$0xff]
    %v120 = vld [vmem:[#allocation2 + $0x30] sm:$0xff]
    %v121 = vld [vmem:[#allocation2 + $0x38] sm:$0xff]
    %v122 = vld [vmem:[#allocation2 + $0x40] sm:$0xff]
    %v123 = vld [vmem:[#allocation2 + $0x48] sm:$0xff]
    %v124 = vld [vmem:[#allocation2 + $0x50] sm:$0xff]
    %v125 = vld [vmem:[#allocation2 + $0x58] sm:$0xff]
    %v126 = vld [vmem:[#allocation2 + $0x60] sm:$0xff]
    %v127 = vld [vmem:[#allocation2 + $0x68] sm:$0xff]
    %v128 = vld [vmem:[#allocation2 + $0x70] sm:$0xff]
    %v129 = vld [vmem:[#allocation2 + $0x78] sm:$0xff]
    %v130 = vld [vmem:[#allocation2 + $0x80] sm:$0xff]
    %v131 = vld [vmem:[#allocation2 + $0x88] sm:$0xff]
    %v132 = vld [vmem:[#allocation2 + $0x90] sm:$0xff]
    %v133 = vld [vmem:[#allocation2 + $0x98] sm:$0xff]
    %v134 = vld [vmem:[#allocation2 + $0xa0] sm:$0xff]
    %v135 = vld [vmem:[#allocation2 + $0xa8] sm:$0xff]
    %v136 = vld [vmem:[#allocation2 + $0xb0] sm:$0xff]
    %v137 = vld [vmem:[#allocation2 + $0xb8] sm:$0xff]
    %v138 = vld [vmem:[#allocation2 + $0xc0] sm:$0xff]
    %v139 = vld [vmem:[#allocation2 + $0xc8] sm:$0xff]
    %v140 = vld [vmem:[#allocation2 + $0xd0] sm:$0xff]
    %v141 = vld [vmem:[#allocation2 + $0xd8] sm:$0xff]
    %v142 = vld [vmem:[#allocation2 + $0xe0] sm:$0xff]
    %v143 = vld [vmem:[#allocation2 + $0xe8] sm:$0xff]
    %v144 = vld [vmem:[#allocation2 + $0xf0] sm:$0xff]
    %v145 = vld [vmem:[#allocation2 + $0xf8] sm:$0xff]
    %v146 = vld [vmem:[#allocation3] sm:$0xf]
    %v147 = vld [vmem:[#allocation3 + $0x4] sm:$0xf]
    %v148 = vld [vmem:[#allocation3 + $0x8] sm:$0xf]
    %v149 = vld [vmem:[#allocation3 + $0xc] sm:$0xf]
    %v150 = vld [vmem:[#allocation3 + $0x10] sm:$0xf]
    %v151 = vld [vmem:[#allocation3 + $0x14] sm:$0xf]
    %v184 = vunpack.c.l.b16 %v82
    %v185 = vunpack.c.l.b16 %v83
    %v186 = vunpack.c.l.b16 %v84
    %v187 = vunpack.c.l.b16 %v85
    %v188 = vunpack.c.l.b16 %v86
    %v189 = vunpack.c.l.b16 %v87
    %v190 = vunpack.c.l.b16 %v88
    %v191 = vunpack.c.l.b16 %v89
    %v192 = vunpack.c.l.b16 %v90
    %v193 = vunpack.c.l.b16 %v91
    %v194 = vunpack.c.l.b16 %v92
    %v195 = vunpack.c.l.b16 %v93
    %v196 = vunpack.c.l.b16 %v94
    %v197 = vunpack.c.l.b16 %v95
    %v198 = vunpack.c.l.b16 %v96
    %v199 = vunpack.c.l.b16 %v97
    %v200 = vunpack.c.l.b16 %v98
    %v201 = vunpack.c.l.b16 %v99
    %v202 = vunpack.c.l.b16 %v100
    %v203 = vunpack.c.l.b16 %v101
    %v204 = vunpack.c.l.b16 %v102
    %v205 = vunpack.c.l.b16 %v103
    %v206 = vunpack.c.l.b16 %v104
    %v207 = vunpack.c.l.b16 %v105
    %v208 = vunpack.c.l.b16 %v106
    %v209 = vunpack.c.l.b16 %v107
    %v210 = vunpack.c.l.b16 %v108
    %v211 = vunpack.c.l.b16 %v109
    %v212 = vunpack.c.l.b16 %v110
    %v213 = vunpack.c.l.b16 %v111
    %v214 = vunpack.c.l.b16 %v112
    %v215 = vunpack.c.l.b16 %v113
    %v216 = vpack.c.b16 %v185, %v184
    %v217 = vpack.c.b16 %v187, %v186
    %v218 = vpack.c.b16 %v189, %v188
    %v219 = vpack.c.b16 %v191, %v190
    %v220 = vpack.c.b16 %v193, %v192
    %v221 = vpack.c.b16 %v195, %v194
    %v222 = vpack.c.b16 %v197, %v196
    %v223 = vpack.c.b16 %v199, %v198
    %v224 = vpack.c.b16 %v201, %v200
    %v225 = vpack.c.b16 %v203, %v202
    %v226 = vpack.c.b16 %v205, %v204
    %v227 = vpack.c.b16 %v207, %v206
    %v228 = vpack.c.b16 %v209, %v208
    %v229 = vpack.c.b16 %v211, %v210
    %v230 = vpack.c.b16 %v213, %v212
    %v231 = vpack.c.b16 %v215, %v214
    %v238 = vunpack.c.l.b16 %v146
    %v239 = vunpack.c.l.b16 %v147
    %v240 = vunpack.c.l.b16 %v148
    %v241 = vunpack.c.l.b16 %v149
    %v242 = vunpack.c.l.b16 %v150
    %v243 = vunpack.c.l.b16 %v151
    %v244 = vpack.c.b16 %v239, %v238
    %v245 = vpack.c.b16 %v241, %v240
    %v246 = vpack.c.b16 %v243, %v242
    %vm250 = vcmask 392192
    %v252 = vsel %vm250, %v216, 0
    %v255 = vsel %vm250, %v217, 0
    %v258 = vsel %vm250, %v218, 0
    %v261 = vsel %vm250, %v219, 0
    %v264 = vsel %vm250, %v220, 0
    %v267 = vsel %vm250, %v221, 0
    %v270 = vsel %vm250, %v222, 0
    %v273 = vsel %vm250, %v223, 0
    %v276 = vsel %vm250, %v224, 0
    %v279 = vsel %vm250, %v225, 0
    %v282 = vsel %vm250, %v226, 0
    %v285 = vsel %vm250, %v227, 0
    %v288 = vsel %vm250, %v228, 0
    %v291 = vsel %vm250, %v229, 0
    %v294 = vsel %vm250, %v230, 0
    %v297 = vsel %vm250, %v231, 0
    %299 = vmatpush.bf16.msra.mxu0 0
    %300 = vmatpush.bf16.msra.mxu0 0
    %301 = vmatpush.bf16.msra.mxu0 0
    %302 = vmatpush.bf16.msra.mxu0 0
    %303 = vmatpush.bf16.msra.mxu0 0
    %304 = vmatpush.bf16.msra.mxu0 %v246
    %305 = vmatpush.bf16.msra.mxu0 %v245
    %306 = vmatpush.bf16.msra.mxu0 %v244
    %307 = vmatmul.bf16.gmra.mxu0 %v252
    %v308 = vpop.f32.mrf.mxu0
    %v309 = vadd.f32 0.0, %v308
    %v310 = vpop.f32.mrf.mxu0
    %v311 = vadd.f32 0.0, %v310
    %312 = vmatmul.bf16.gmra.mxu0 %v255
    %v313 = vpop.f32.mrf.mxu0
    %v314 = vadd.f32 0.0, %v313
    %v315 = vpop.f32.mrf.mxu0
    %v316 = vadd.f32 0.0, %v315
    %317 = vmatmul.bf16.gmra.mxu0 %v258
    %v318 = vpop.f32.mrf.mxu0
    %v319 = vadd.f32 0.0, %v318
    %v320 = vpop.f32.mrf.mxu0
    %v321 = vadd.f32 0.0, %v320
    %322 = vmatmul.bf16.gmra.mxu0 %v261
    %v323 = vpop.f32.mrf.mxu0
    %v324 = vadd.f32 0.0, %v323
    %v325 = vpop.f32.mrf.mxu0
    %v326 = vadd.f32 0.0, %v325
    %327 = vmatmul.bf16.gmra.mxu0 %v264
    %v328 = vpop.f32.mrf.mxu0
    %v329 = vadd.f32 0.0, %v328
    %v330 = vpop.f32.mrf.mxu0
    %v331 = vadd.f32 0.0, %v330
    %332 = vmatmul.bf16.gmra.mxu0 %v267
    %v333 = vpop.f32.mrf.mxu0
    %v334 = vadd.f32 0.0, %v333
    %v335 = vpop.f32.mrf.mxu0
    %v336 = vadd.f32 0.0, %v335
    %337 = vmatmul.bf16.gmra.mxu0 %v270
    %v338 = vpop.f32.mrf.mxu0
    %v339 = vadd.f32 0.0, %v338
    %v340 = vpop.f32.mrf.mxu0
    %v341 = vadd.f32 0.0, %v340
    %342 = vmatmul.bf16.gmra.mxu0 %v273
    %v343 = vpop.f32.mrf.mxu0
    %v344 = vadd.f32 0.0, %v343
    %v345 = vpop.f32.mrf.mxu0
    %v346 = vadd.f32 0.0, %v345
    %347 = vmatmul.bf16.gmra.mxu0 %v276
    %v348 = vpop.f32.mrf.mxu0
    %v349 = vadd.f32 0.0, %v348
    %v350 = vpop.f32.mrf.mxu0
    %v351 = vadd.f32 0.0, %v350
    %352 = vmatmul.bf16.gmra.mxu0 %v279
    %v353 = vpop.f32.mrf.mxu0
    %v354 = vadd.f32 0.0, %v353
    %v355 = vpop.f32.mrf.mxu0
    %v356 = vadd.f32 0.0, %v355
    %357 = vmatmul.bf16.gmra.mxu0 %v282
    %v358 = vpop.f32.mrf.mxu0
    %v359 = vadd.f32 0.0, %v358
    %v360 = vpop.f32.mrf.mxu0
    %v361 = vadd.f32 0.0, %v360
    %362 = vmatmul.bf16.gmra.mxu0 %v285
    %v363 = vpop.f32.mrf.mxu0
    %v364 = vadd.f32 0.0, %v363
    %v365 = vpop.f32.mrf.mxu0
    %v366 = vadd.f32 0.0, %v365
    %367 = vmatmul.bf16.gmra.mxu0 %v288
    %v368 = vpop.f32.mrf.mxu0
    %v369 = vadd.f32 0.0, %v368
    %v370 = vpop.f32.mrf.mxu0
    %v371 = vadd.f32 0.0, %v370
    %372 = vmatmul.bf16.gmra.mxu0 %v291
    %v373 = vpop.f32.mrf.mxu0
    %v374 = vadd.f32 0.0, %v373
    %v375 = vpop.f32.mrf.mxu0
    %v376 = vadd.f32 0.0, %v375
    %377 = vmatmul.bf16.gmra.mxu0 %v294
    %v378 = vpop.f32.mrf.mxu0
    %v379 = vadd.f32 0.0, %v378
    %v380 = vpop.f32.mrf.mxu0
    %v381 = vadd.f32 0.0, %v380
    %382 = vmatmul.bf16.gmra.mxu0 %v297
    %v383 = vpop.f32.mrf.mxu0
    %v384 = vadd.f32 0.0, %v383
    %v385 = vpop.f32.mrf.mxu0
    %v386 = vadd.f32 0.0, %v385
    %387 = vdwg.mxu0
    %v388 = vadd.f32 %v114, %v309
    %v389 = vadd.f32 %v115, %v311
    %v390 = vadd.f32 %v116, %v314
    %v391 = vadd.f32 %v117, %v316
    %v392 = vadd.f32 %v118, %v319
    %v393 = vadd.f32 %v119, %v321
    %v394 = vadd.f32 %v120, %v324
    %v395 = vadd.f32 %v121, %v326
    %v396 = vadd.f32 %v122, %v329
    %v397 = vadd.f32 %v123, %v331
    %v398 = vadd.f32 %v124, %v334
    %v399 = vadd.f32 %v125, %v336
    %v400 = vadd.f32 %v126, %v339
    %v401 = vadd.f32 %v127, %v341
    %v402 = vadd.f32 %v128, %v344
    %v403 = vadd.f32 %v129, %v346
    %v404 = vadd.f32 %v130, %v349
    %v405 = vadd.f32 %v131, %v351
    %v406 = vadd.f32 %v132, %v354
    %v407 = vadd.f32 %v133, %v356
    %v408 = vadd.f32 %v134, %v359
    %v409 = vadd.f32 %v135, %v361
    %v410 = vadd.f32 %v136, %v364
    %v411 = vadd.f32 %v137, %v366
    %v412 = vadd.f32 %v138, %v369
    %v413 = vadd.f32 %v139, %v371
    %v414 = vadd.f32 %v140, %v374
    %v415 = vadd.f32 %v141, %v376
    %v416 = vadd.f32 %v142, %v379
    %v417 = vadd.f32 %v143, %v381
    %v418 = vadd.f32 %v144, %v384
    %v419 = vadd.f32 %v145, %v386
    %vm420 = vcmask 523264
    %421 = vst.msk [vmem:[#allocation2] sm:$0xff] %vm420, %v388
    %422 = vst.msk [vmem:[#allocation2 + $0x8] sm:$0xff] %vm420, %v389
    %423 = vst.msk [vmem:[#allocation2 + $0x10] sm:$0xff] %vm420, %v390
    %424 = vst.msk [vmem:[#allocation2 + $0x18] sm:$0xff] %vm420, %v391
    %425 = vst.msk [vmem:[#allocation2 + $0x20] sm:$0xff] %vm420, %v392
    %426 = vst.msk [vmem:[#allocation2 + $0x28] sm:$0xff] %vm420, %v393
    %427 = vst.msk [vmem:[#allocation2 + $0x30] sm:$0xff] %vm420, %v394
    %428 = vst.msk [vmem:[#allocation2 + $0x38] sm:$0xff] %vm420, %v395
    %429 = vst.msk [vmem:[#allocation2 + $0x40] sm:$0xff] %vm420, %v396
    %430 = vst.msk [vmem:[#allocation2 + $0x48] sm:$0xff] %vm420, %v397
    %431 = vst.msk [vmem:[#allocation2 + $0x50] sm:$0xff] %vm420, %v398
    %432 = vst.msk [vmem:[#allocation2 + $0x58] sm:$0xff] %vm420, %v399
    %433 = vst.msk [vmem:[#allocation2 + $0x60] sm:$0xff] %vm420, %v400
    %434 = vst.msk [vmem:[#allocation2 + $0x68] sm:$0xff] %vm420, %v401
    %435 = vst.msk [vmem:[#allocation2 + $0x70] sm:$0xff] %vm420, %v402
    %436 = vst.msk [vmem:[#allocation2 + $0x78] sm:$0xff] %vm420, %v403
    %437 = vst.msk [vmem:[#allocation2 + $0x80] sm:$0xff] %vm420, %v404
    %438 = vst.msk [vmem:[#allocation2 + $0x88] sm:$0xff] %vm420, %v405
    %439 = vst.msk [vmem:[#allocation2 + $0x90] sm:$0xff] %vm420, %v406
    %440 = vst.msk [vmem:[#allocation2 + $0x98] sm:$0xff] %vm420, %v407
    %441 = vst.msk [vmem:[#allocation2 + $0xa0] sm:$0xff] %vm420, %v408
    %442 = vst.msk [vmem:[#allocation2 + $0xa8] sm:$0xff] %vm420, %v409
    %443 = vst.msk [vmem:[#allocation2 + $0xb0] sm:$0xff] %vm420, %v410
    %444 = vst.msk [vmem:[#allocation2 + $0xb8] sm:$0xff] %vm420, %v411
    %445 = vst.msk [vmem:[#allocation2 + $0xc0] sm:$0xff] %vm420, %v412
    %446 = vst.msk [vmem:[#allocation2 + $0xc8] sm:$0xff] %vm420, %v413
    %447 = vst.msk [vmem:[#allocation2 + $0xd0] sm:$0xff] %vm420, %v414
    %448 = vst.msk [vmem:[#allocation2 + $0xd8] sm:$0xff] %vm420, %v415
    %449 = vst.msk [vmem:[#allocation2 + $0xe0] sm:$0xff] %vm420, %v416
    %450 = vst.msk [vmem:[#allocation2 + $0xe8] sm:$0xff] %vm420, %v417
    %451 = vst.msk [vmem:[#allocation2 + $0xf0] sm:$0xff] %vm420, %v418
    %452 = vst.msk [vmem:[#allocation2 + $0xf8] sm:$0xff] %vm420, %v419
    // Predicated region
    $region26: #{discriminator_forward.4} parent=1 // pred_check
      %p453 = pneg %p45
    $region27: #{discriminator_forward.4} parent=1 // pred_check_branch
      %455 = sbr.rel (%p453) target = $region29
    $region28: #{discriminator_forward.4} parent=1 // pred_region
      %v456 = vld [vmem:[#allocation2] sm:$0xff]
      %v457 = vld [vmem:[#allocation2 + $0x8] sm:$0xff]
      %v458 = vld [vmem:[#allocation2 + $0x10] sm:$0xff]
      %v459 = vld [vmem:[#allocation2 + $0x18] sm:$0xff]
      %v460 = vld [vmem:[#allocation2 + $0x20] sm:$0xff]
      %v461 = vld [vmem:[#allocation2 + $0x28] sm:$0xff]
      %v462 = vld [vmem:[#allocation2 + $0x30] sm:$0xff]
      %v463 = vld [vmem:[#allocation2 + $0x38] sm:$0xff]
      %v464 = vld [vmem:[#allocation2 + $0x40] sm:$0xff]
      %v465 = vld [vmem:[#allocation2 + $0x48] sm:$0xff]
      %v466 = vld [vmem:[#allocation2 + $0x50] sm:$0xff]
      %v467 = vld [vmem:[#allocation2 + $0x58] sm:$0xff]
      %v468 = vld [vmem:[#allocation2 + $0x60] sm:$0xff]
      %v469 = vld [vmem:[#allocation2 + $0x68] sm:$0xff]
      %v470 = vld [vmem:[#allocation2 + $0x70] sm:$0xff]
      %v471 = vld [vmem:[#allocation2 + $0x78] sm:$0xff]
      %v472 = vld [vmem:[#allocation2 + $0x80] sm:$0xff]
      %v473 = vld [vmem:[#allocation2 + $0x88] sm:$0xff]
      %v474 = vld [vmem:[#allocation2 + $0x90] sm:$0xff]
      %v475 = vld [vmem:[#allocation2 + $0x98] sm:$0xff]
      %v476 = vld [vmem:[#allocation2 + $0xa0] sm:$0xff]
      %v477 = vld [vmem:[#allocation2 + $0xa8] sm:$0xff]
      %v478 = vld [vmem:[#allocation2 + $0xb0] sm:$0xff]
      %v479 = vld [vmem:[#allocation2 + $0xb8] sm:$0xff]
      %v480 = vld [vmem:[#allocation2 + $0xc0] sm:$0xff]
      %v481 = vld [vmem:[#allocation2 + $0xc8] sm:$0xff]
      %v482 = vld [vmem:[#allocation2 + $0xd0] sm:$0xff]
      %v483 = vld [vmem:[#allocation2 + $0xd8] sm:$0xff]
      %v484 = vld [vmem:[#allocation2 + $0xe0] sm:$0xff]
      %v485 = vld [vmem:[#allocation2 + $0xe8] sm:$0xff]
      %v486 = vld [vmem:[#allocation2 + $0xf0] sm:$0xff]
      %v487 = vld [vmem:[#allocation2 + $0xf8] sm:$0xff]
      %v488 = vld [vmem:[#allocation5] sm:$0x1]
      %v490 = vperm.slane %v488, 0
      %v492 = vadd.f32 %v456, %v490
      %v493 = vadd.f32 %v457, %v490
      %v494 = vadd.f32 %v458, %v490
      %v495 = vadd.f32 %v459, %v490
      %v496 = vadd.f32 %v460, %v490
      %v497 = vadd.f32 %v461, %v490
      %v498 = vadd.f32 %v462, %v490
      %v499 = vadd.f32 %v463, %v490
      %v500 = vadd.f32 %v464, %v490
      %v501 = vadd.f32 %v465, %v490
      %v502 = vadd.f32 %v466, %v490
      %v503 = vadd.f32 %v467, %v490
      %v504 = vadd.f32 %v468, %v490
      %v505 = vadd.f32 %v469, %v490
      %v506 = vadd.f32 %v470, %v490
      %v507 = vadd.f32 %v471, %v490
      %v508 = vadd.f32 %v472, %v490
      %v509 = vadd.f32 %v473, %v490
      %v510 = vadd.f32 %v474, %v490
      %v511 = vadd.f32 %v475, %v490
      %v512 = vadd.f32 %v476, %v490
      %v513 = vadd.f32 %v477, %v490
      %v514 = vadd.f32 %v478, %v490
      %v515 = vadd.f32 %v479, %v490
      %v516 = vadd.f32 %v480, %v490
      %v517 = vadd.f32 %v481, %v490
      %v518 = vadd.f32 %v482, %v490
      %v519 = vadd.f32 %v483, %v490
      %v520 = vadd.f32 %v484, %v490
      %v521 = vadd.f32 %v485, %v490
      %v522 = vadd.f32 %v486, %v490
      %v523 = vadd.f32 %v487, %v490
      %vm524 = vcmp.gt.f32.partialorder %v492, 0.0
      %vm525 = vcmp.gt.f32.partialorder %v493, 0.0
      %vm526 = vcmp.gt.f32.partialorder %v494, 0.0
      %vm527 = vcmp.gt.f32.partialorder %v495, 0.0
      %vm528 = vcmp.gt.f32.partialorder %v496, 0.0
      %vm529 = vcmp.gt.f32.partialorder %v497, 0.0
      %vm530 = vcmp.gt.f32.partialorder %v498, 0.0
      %vm531 = vcmp.gt.f32.partialorder %v499, 0.0
      %vm532 = vcmp.gt.f32.partialorder %v500, 0.0
      %vm533 = vcmp.gt.f32.partialorder %v501, 0.0
      %vm534 = vcmp.gt.f32.partialorder %v502, 0.0
      %vm535 = vcmp.gt.f32.partialorder %v503, 0.0
      %vm536 = vcmp.gt.f32.partialorder %v504, 0.0
      %vm537 = vcmp.gt.f32.partialorder %v505, 0.0
      %vm538 = vcmp.gt.f32.partialorder %v506, 0.0
      %vm539 = vcmp.gt.f32.partialorder %v507, 0.0
      %vm540 = vcmp.gt.f32.partialorder %v508, 0.0
      %vm541 = vcmp.gt.f32.partialorder %v509, 0.0
      %vm542 = vcmp.gt.f32.partialorder %v510, 0.0
      %vm543 = vcmp.gt.f32.partialorder %v511, 0.0
      %vm544 = vcmp.gt.f32.partialorder %v512, 0.0
      %vm545 = vcmp.gt.f32.partialorder %v513, 0.0
      %vm546 = vcmp.gt.f32.partialorder %v514, 0.0
      %vm547 = vcmp.gt.f32.partialorder %v515, 0.0
      %vm548 = vcmp.gt.f32.partialorder %v516, 0.0
      %vm549 = vcmp.gt.f32.partialorder %v517, 0.0
      %vm550 = vcmp.gt.f32.partialorder %v518, 0.0
      %vm551 = vcmp.gt.f32.partialorder %v519, 0.0
      %vm552 = vcmp.gt.f32.partialorder %v520, 0.0
      %vm553 = vcmp.gt.f32.partialorder %v521, 0.0
      %vm554 = vcmp.gt.f32.partialorder %v522, 0.0
      %vm555 = vcmp.gt.f32.partialorder %v523, 0.0
      %v556 = vmul.f32 %v492, 0.2
      %v557 = vmul.f32 %v493, 0.2
      %v558 = vmul.f32 %v494, 0.2
      %v559 = vmul.f32 %v495, 0.2
      %v560 = vmul.f32 %v496, 0.2
      %v561 = vmul.f32 %v497, 0.2
      %v562 = vmul.f32 %v498, 0.2
      %v563 = vmul.f32 %v499, 0.2
      %v564 = vmul.f32 %v500, 0.2
      %v565 = vmul.f32 %v501, 0.2
      %v566 = vmul.f32 %v502, 0.2
      %v567 = vmul.f32 %v503, 0.2
      %v568 = vmul.f32 %v504, 0.2
      %v569 = vmul.f32 %v505, 0.2
      %v570 = vmul.f32 %v506, 0.2
      %v571 = vmul.f32 %v507, 0.2
      %v572 = vmul.f32 %v508, 0.2
      %v573 = vmul.f32 %v509, 0.2
      %v574 = vmul.f32 %v510, 0.2
      %v575 = vmul.f32 %v511, 0.2
      %v576 = vmul.f32 %v512, 0.2
      %v577 = vmul.f32 %v513, 0.2
      %v578 = vmul.f32 %v514, 0.2
      %v579 = vmul.f32 %v515, 0.2
      %v580 = vmul.f32 %v516, 0.2
      %v581 = vmul.f32 %v517, 0.2
      %v582 = vmul.f32 %v518, 0.2
      %v583 = vmul.f32 %v519, 0.2
      %v584 = vmul.f32 %v520, 0.2
      %v585 = vmul.f32 %v521, 0.2
      %v586 = vmul.f32 %v522, 0.2
      %v587 = vmul.f32 %v523, 0.2
      %v588 = vsel %vm524, %v492, %v556
      %v589 = vsel %vm525, %v493, %v557
      %v590 = vsel %vm526, %v494, %v558
      %v591 = vsel %vm527, %v495, %v559
      %v592 = vsel %vm528, %v496, %v560
      %v593 = vsel %vm529, %v497, %v561
      %v594 = vsel %vm530, %v498, %v562
      %v595 = vsel %vm531, %v499, %v563
      %v596 = vsel %vm532, %v500, %v564
      %v597 = vsel %vm533, %v501, %v565
      %v598 = vsel %vm534, %v502, %v566
      %v599 = vsel %vm535, %v503, %v567
      %v600 = vsel %vm536, %v504, %v568
      %v601 = vsel %vm537, %v505, %v569
      %v602 = vsel %vm538, %v506, %v570
      %v603 = vsel %vm539, %v507, %v571
      %v604 = vsel %vm540, %v508, %v572
      %v605 = vsel %vm541, %v509, %v573
      %v606 = vsel %vm542, %v510, %v574
      %v607 = vsel %vm543, %v511, %v575
      %v608 = vsel %vm544, %v512, %v576
      %v609 = vsel %vm545, %v513, %v577
      %v610 = vsel %vm546, %v514, %v578
      %v611 = vsel %vm547, %v515, %v579
      %v612 = vsel %vm548, %v516, %v580
      %v613 = vsel %vm549, %v517, %v581
      %v614 = vsel %vm550, %v518, %v582
      %v615 = vsel %vm551, %v519, %v583
      %v616 = vsel %vm552, %v520, %v584
      %v617 = vsel %vm553, %v521, %v585
      %v618 = vsel %vm554, %v522, %v586
      %v619 = vsel %vm555, %v523, %v587
      %v620 = vpack.c.bf16 %v588, %v588
      %v621 = vpack.c.bf16 %v589, %v589
      %v622 = vpack.c.bf16 %v590, %v590
      %v623 = vpack.c.bf16 %v591, %v591
      %v624 = vpack.c.bf16 %v592, %v592
      %v625 = vpack.c.bf16 %v593, %v593
      %v626 = vpack.c.bf16 %v594, %v594
      %v627 = vpack.c.bf16 %v595, %v595
      %v628 = vpack.c.bf16 %v596, %v596
      %v629 = vpack.c.bf16 %v597, %v597
      %v630 = vpack.c.bf16 %v598, %v598
      %v631 = vpack.c.bf16 %v599, %v599
      %v632 = vpack.c.bf16 %v600, %v600
      %v633 = vpack.c.bf16 %v601, %v601
      %v634 = vpack.c.bf16 %v602, %v602
      %v635 = vpack.c.bf16 %v603, %v603
      %v636 = vpack.c.bf16 %v604, %v604
      %v637 = vpack.c.bf16 %v605, %v605
      %v638 = vpack.c.bf16 %v606, %v606
      %v639 = vpack.c.bf16 %v607, %v607
      %v640 = vpack.c.bf16 %v608, %v608
      %v641 = vpack.c.bf16 %v609, %v609
      %v642 = vpack.c.bf16 %v610, %v610
      %v643 = vpack.c.bf16 %v611, %v611
      %v644 = vpack.c.bf16 %v612, %v612
      %v645 = vpack.c.bf16 %v613, %v613
      %v646 = vpack.c.bf16 %v614, %v614
      %v647 = vpack.c.bf16 %v615, %v615
      %v648 = vpack.c.bf16 %v616, %v616
      %v649 = vpack.c.bf16 %v617, %v617
      %v650 = vpack.c.bf16 %v618, %v618
      %v651 = vpack.c.bf16 %v619, %v619
      %vm652 = vcmask 519168
      %653 = vst.msk [vmem:[%s3] sm:$0xf] %vm652, %v620
      %654 = vst.msk [vmem:[%s3 + $0x4] sm:$0xf] %vm652, %v621
      %655 = vst.msk [vmem:[%s3 + $0x8] sm:$0xf] %vm652, %v622
      %656 = vst.msk [vmem:[%s3 + $0xc] sm:$0xf] %vm652, %v623
      %657 = vst.msk [vmem:[%s3 + $0x10] sm:$0xf] %vm652, %v624
      %658 = vst.msk [vmem:[%s3 + $0x14] sm:$0xf] %vm652, %v625
      %659 = vst.msk [vmem:[%s3 + $0x18] sm:$0xf] %vm652, %v626
      %660 = vst.msk [vmem:[%s3 + $0x1c] sm:$0xf] %vm652, %v627
      %661 = vst.msk [vmem:[%s3 + $0x20] sm:$0xf] %vm652, %v628
      %662 = vst.msk [vmem:[%s3 + $0x24] sm:$0xf] %vm652, %v629
      %663 = vst.msk [vmem:[%s3 + $0x28] sm:$0xf] %vm652, %v630
      %664 = vst.msk [vmem:[%s3 + $0x2c] sm:$0xf] %vm652, %v631
      %665 = vst.msk [vmem:[%s3 + $0x30] sm:$0xf] %vm652, %v632
      %666 = vst.msk [vmem:[%s3 + $0x34] sm:$0xf] %vm652, %v633
      %667 = vst.msk [vmem:[%s3 + $0x38] sm:$0xf] %vm652, %v634
      %668 = vst.msk [vmem:[%s3 + $0x3c] sm:$0xf] %vm652, %v635
      %669 = vst.msk [vmem:[%s3 + $0x40] sm:$0xf] %vm652, %v636
      %670 = vst.msk [vmem:[%s3 + $0x44] sm:$0xf] %vm652, %v637
      %671 = vst.msk [vmem:[%s3 + $0x48] sm:$0xf] %vm652, %v638
      %672 = vst.msk [vmem:[%s3 + $0x4c] sm:$0xf] %vm652, %v639
      %673 = vst.msk [vmem:[%s3 + $0x50] sm:$0xf] %vm652, %v640
      %674 = vst.msk [vmem:[%s3 + $0x54] sm:$0xf] %vm652, %v641
      %675 = vst.msk [vmem:[%s3 + $0x58] sm:$0xf] %vm652, %v642
      %676 = vst.msk [vmem:[%s3 + $0x5c] sm:$0xf] %vm652, %v643
      %677 = vst.msk [vmem:[%s3 + $0x60] sm:$0xf] %vm652, %v644
      %678 = vst.msk [vmem:[%s3 + $0x64] sm:$0xf] %vm652, %v645
      %679 = vst.msk [vmem:[%s3 + $0x68] sm:$0xf] %vm652, %v646
      %680 = vst.msk [vmem:[%s3 + $0x6c] sm:$0xf] %vm652, %v647
      %681 = vst.msk [vmem:[%s3 + $0x70] sm:$0xf] %vm652, %v648
      %682 = vst.msk [vmem:[%s3 + $0x74] sm:$0xf] %vm652, %v649
      %683 = vst.msk [vmem:[%s3 + $0x78] sm:$0xf] %vm652, %v650
      %684 = vst.msk [vmem:[%s3 + $0x7c] sm:$0xf] %vm652, %v651
    $region29: #{discriminator_forward.4} parent=1 // pred_fallthru
      _
    // Predicated region
    $region30: #{discriminator_forward.4} parent=1 // pred_check
      _
    $region31: #{discriminator_forward.4} parent=1 // pred_check_branch
      %686 = sbr.rel (0) target = $region33
    $region32: #{discriminator_forward.4} parent=1 // pred_region
      _
    $region33: #{discriminator_forward.4} parent=1 // pred_fallthru
      _
    // Predicated region
    $region34: #{discriminator_forward.4} parent=1 // pred_check
      _
    $region35: #{discriminator_forward.4} parent=1 // pred_check_branch
      %688 = sbr.rel (0) target = $region37
    $region36: #{discriminator_forward.4} parent=1 // pred_region
      _
    $region37: #{discriminator_forward.4} parent=1 // pred_fallthru
      _
    %689 = vsyncpa [#allocation4], 1
    %690 = vsyncpa [#allocation6], 1

// kernel: discriminator_forward.5
$region0: #{discriminator_forward.5}
  #allocation0 [shape = 'u32[]', space=smem, size = 0x4, offset = 0x4, fixed_abs, tag = 'smem constant byte address 0x4 - core index']
  #allocation1 [shape = 'u32[72,128]{1,0:T(1,128)}', space=vmem, size = 0x9000, scoped, tag = 'internal scratch']
  #allocation2 [shape = 'f32[64,128]{1,0:T(8,128)}', space=vmem, size = 0x8000, scoped, tag = 'scratch operand']
  %s0 = inlined_call_operand.vmem [shape: bf16[64,1024], index: 0, kind: input, shape index: {}]
  %s1 = inlined_call_operand.vmem [shape: bf16[1024,128], index: 1, kind: input, shape index: {}]
  %s2 = inlined_call_operand.vmem [shape: f32[1,128], index: 2, kind: input, shape index: {}]
  %s3 = inlined_call_operand.vmem [shape: bf16[64,128], index: 3, kind: output, shape index: {}]
  %s4 = sld [smem:[#allocation0]]
  $region76: #{discriminator_forward.5} parent=0
    _
  %s6 = ssub.s32 1, %s4
  %s7 = scalar_select 0, %s6, %s4
  $region1: #{discriminator_forward.5} parent=0
    #allocation3 [shape = 'u8[131072]{0}', space=vmem, size = 0x20000, scoped, tag = 'input window, operand 0']
    loop: start=0, step=1, limit=4
    $region2: #{discriminator_forward.5} parent=1 // loop_pre_header
      _
    $region3: #{discriminator_forward.5} parent=1 // loop_header
      %s9 = sphi 0, %s13
      %p10 = scmp.ge.s32.totalorder %s9, 4
      %s16 = sphi 0, %s35
      %s17 = sphi 0, %s31
      %s18 = sphi 0, %s27
      %s19 = sphi 0, %s16
      %s20 = sphi 0, %s17
      %s21 = sphi 0, %s18
      %s22 = sphi 0, %s19
      %s23 = sphi 0, %s20
      %s24 = sphi 0, %s21
      %s40 = sphi 0, %s42
      %s43 = sphi 0, %s40
      %s44 = sphi 0, %s43
      %s60 = sphi 0, %s44
      %s68 = sphi 0, %s70
      %s71 = sphi 0, %s68
      %s72 = sphi 0, %s71
      %s88 = sphi 0, %s72
      %s94 = sphi 0, %s96
      %s97 = sphi 0, %s94
      %s98 = sphi 0, %s97
      %s114 = sphi 0, %s98
      %s122 = sphi 0, %s124
      %s125 = sphi 0, %s122
      %s126 = sphi 0, %s125
      %s142 = sphi 0, %s126
    $region4: #{discriminator_forward.5} parent=1 // loop_header_branch
      %12 = sbr.rel (%p10) target = $region8
    $region5: #{discriminator_forward.5} parent=1 // loop_body
      %s14 = ssub.s32 %s9, 1
      %s15 = ssub.s32 %s9, 2
      %s25 = sadd.s32 1, %s18
      %p26 = scmp.ge.s32.totalorder %s25, 2
      %s27 = scalar_select %p26, 0, %s25
      %s28 = sadd.s32 1, %s17
      %s29 = scalar_select %p26, %s28, %s17
      %p30 = scmp.ge.s32.totalorder %s29, 1
      %s31 = scalar_select %p30, 0, %s29
      %s32 = sadd.s32 1, %s16
      %s33 = scalar_select %p30, %s32, %s16
      %p34 = scmp.ge.s32.totalorder %s33, 1
      %s35 = scalar_select %p34, 0, %s33
      %s36 = ssub.s32 %s16, %s35
      %s37 = ssub.s32 %s18, %s27
      %s38 = sor.u32 %s36, %s37
      %p39 = scmp.eq.s32.totalorder %s38, 0
      %s41 = sadd.s32 %s40, 1
      %s42 = scalar_select %p39, %s40, %s41
      %p45 = pneg %p39
      %p46 = scmp.eq.s32.totalorder %s9, 1
      %p47 = por %p45, %p46
      %p48 = scmp.ne.s32.totalorder %s40, %s43
      %p49 = scmp.eq.s32.totalorder %s9, 0
      %p50 = por %p48, %p49
      %p51 = scmp.ne.s32.totalorder %s40, %s43
      %p52 = scmp.eq.s32.totalorder %s14, 1
      %p53 = por %p51, %p52
      %p54 = scmp.ne.s32.totalorder %s43, %s44
      %p55 = scmp.eq.s32.totalorder %s14, 0
      %p56 = por %p54, %p55
      %p57 = scmp.ne.s32.totalorder %s43, %s44
      %p58 = scmp.eq.s32.totalorder %s15, 1
      %p59 = por %p57, %p58
      %p61 = scmp.ne.s32.totalorder %s44, %s60
      %p62 = scmp.eq.s32.totalorder %s15, 0
      %p63 = por %p61, %p62
      %s64 = ssub.s32 %s18, %s27
      %s65 = ssub.s32 %s17, %s31
      %s66 = sor.u32 %s64, %s65
      %p67 = scmp.eq.s32.totalorder %s66, 0
      %s69 = sadd.s32 %s68, 1
      %s70 = scalar_select %p67, %s68, %s69
      %p73 = pneg %p67
      %p74 = scmp.eq.s32.totalorder %s9, 1
      %p75 = por %p73, %p74
      %p76 = scmp.ne.s32.totalorder %s68, %s71
      %p77 = scmp.eq.s32.totalorder %s9, 0
      %p78 = por %p76, %p77
      %p79 = scmp.ne.s32.totalorder %s68, %s71
      %p80 = scmp.eq.s32.totalorder %s14, 1
      %p81 = por %p79, %p80
      %p82 = scmp.ne.s32.totalorder %s71, %s72
      %p83 = scmp.eq.s32.totalorder %s14, 0
      %p84 = por %p82, %p83
      %p85 = scmp.ne.s32.totalorder %s71, %s72
      %p86 = scmp.eq.s32.totalorder %s15, 1
      %p87 = por %p85, %p86
      %p89 = scmp.ne.s32.totalorder %s72, %s88
      %p90 = scmp.eq.s32.totalorder %s15, 0
      %p91 = por %p89, %p90
      %s92 = ssub.s32 %s17, %s31
      %p93 = scmp.eq.s32.totalorder %s92, 0
      %s95 = sadd.s32 %s94, 1
      %s96 = scalar_select %p93, %s94, %s95
      %p99 = pneg %p93
      %p100 = scmp.eq.s32.totalorder %s9, 1
      %p101 = por %p99, %p100
      %p102 = scmp.ne.s32.totalorder %s94, %s97
      %p103 = scmp.eq.s32.totalorder %s9, 0
      %p104 = por %p102, %p103
      %p105 = scmp.ne.s32.totalorder %s94, %s97
      %p106 = scmp.eq.s32.totalorder %s14, 1
      %p107 = por %p105, %p106
      %p108 = scmp.ne.s32.totalorder %s97, %s98
      %p109 = scmp.eq.s32.totalorder %s14, 0
      %p110 = por %p108, %p109
      %p111 = scmp.ne.s32.totalorder %s97, %s98
      %p112 = scmp.eq.s32.totalorder %s15, 1
      %p113 = por %p111, %p112
      %p115 = scmp.ne.s32.totalorder %s98, %s114
      %p116 = scmp.eq.s32.totalorder %s15, 0
      %p117 = por %p115, %p116
      %s118 = ssub.s32 %s16, %s35
      %s119 = ssub.s32 %s17, %s31
      %s120 = sor.u32 %s118, %s119
      %p121 = scmp.eq.s32.totalorder %s120, 0
      %s123 = sadd.s32 %s122, 1
      %s124 = scalar_select %p121, %s122, %s123
      %p127 = pneg %p121
      %p128 = scmp.eq.s32.totalorder %s9, 1
      %p129 = por %p127, %p128
      %p130 = scmp.ne.s32.totalorder %s122, %s125
      %p131 = scmp.eq.s32.totalorder %s9, 0
      %p132 = por %p130, %p131
      %p133 = scmp.ne.s32.totalorder %s122, %s125
      %p134 = scmp.eq.s32.totalorder %s14, 1
      %p135 = por %p133, %p134
      %p136 = scmp.ne.s32.totalorder %s125, %s126
      %p137 = scmp.eq.s32.totalorder %s14, 0
      %p138 = por %p136, %p137
      %p139 = scmp.ne.s32.totalorder %s125, %s126
      %p140 = scmp.eq.s32.totalorder %s15, 1
      %p141 = por %p139, %p140
      %p143 = scmp.ne.s32.totalorder %s126, %s142
      %p144 = scmp.eq.s32.totalorder %s15, 0
      %p145 = por %p143, %p144
      %p146 = scmp.le.s32.totalorder 1, %s9
      %p147 = scmp.lt.s32.totalorder %s9, 3
      %p148 = pnand %p146, %p147
      %p149 = pneg %p148
      // Predicated region
      $region9: #{discriminator_forward.5} parent=5 // pred_check
        _
      $region10: #{discriminator_forward.5} parent=5 // pred_check_branch
        %151 = sbr.rel (%p148) target = $region12
      $region11: #{discriminator_forward.5} parent=5 // pred_region
        %s152 = ssub.s32 %s9, 1
        // Predicated region
        $region13: #{discriminator_forward.5} parent=11 // pred_check
          %p153 = pneg %p110
        $region14: #{discriminator_forward.5} parent=11 // pred_check_branch
          %155 = sbr.rel (%p153) target = $region16
        $region15: #{discriminator_forward.5} parent=11 // pred_region
          %p156 = scmp.lt.s32.totalorder %s20, 0
          %s157 = scalar_select %p156, %s20, 0
          %s158 = scalar_lea.vmem %s2, %s157
        $region16: #{discriminator_forward.5} parent=11 // pred_fallthru
          _
      $region12: #{discriminator_forward.5} parent=5 // pred_fallthru
        _
      %p159 = scmp.lt.s32.totalorder %s9, 2
      // Predicated region
      $region17: #{discriminator_forward.5} parent=5 // pred_check
        %p160 = pneg %p159
      $region18: #{discriminator_forward.5} parent=5 // pred_check_branch
        %162 = sbr.rel (%p160) target = $region20
      $region19: #{discriminator_forward.5} parent=5 // pred_region
        // Predicated region
        $region21: #{discriminator_forward.5} parent=19 // pred_check
          %p163 = pneg %p50
        $region22: #{discriminator_forward.5} parent=19 // pred_check_branch
          %165 = sbr.rel (%p163) target = $region24
        $region23: #{discriminator_forward.5} parent=19 // pred_region
          %s166 = sand.u32 %s40, 1
          %s167 = sand.u32 %s40, 1
          %s168 = smul.addr %s167, 128
          %s169 = scalar_lea.vmem [#allocation3], %s168
          %s170 = smul.u32 8, %s16
          %s171 = smul.u32 4, %s18
          %s172 = smul.addr %s170, 8
          %s173 = sadd.s32 %s171, %s172
          %s174 = smul.addr %s173, 4
          %s175 = scalar_lea.vmem %s0, %s174
          // Predicated region
          $region25: #{discriminator_forward.5} parent=23 // pred_check
            _
          $region26: #{discriminator_forward.5} parent=23 // pred_check_branch
            %177 = sbr.rel (0) target = $region28
          $region27: #{discriminator_forward.5} parent=23 // pred_region
            // Predicated region
            $region29: #{discriminator_forward.5} parent=27 // pred_check
              _
            $region30: #{discriminator_forward.5} parent=27 // pred_check_branch
              %179 = sbr.rel (0) target = $region32
            $region31: #{discriminator_forward.5} parent=27 // pred_region
              loop: start=0, step=1, limit=1
              $region33: #{discriminator_forward.5} parent=31 // loop_pre_header
                _
              $region34: #{discriminator_forward.5} parent=31 // loop_header
                %s181 = sphi 0, %s185
                %p182 = scmp.ge.s32.totalorder %s181, 1
                %s186 = sphi %s175, %s175
                %s187 = sphi %s169, %s169
              $region35: #{discriminator_forward.5} parent=31 // loop_header_branch
                %184 = sbr.rel (%p182) target = $region39
              $region36: #{discriminator_forward.5} parent=31 // loop_body
                %v188 = vld [vmem:[%s186] sm:$0xff]
                %189 = vst [vmem:[%s187] sm:$0xff] %v188
                %v190 = vld [vmem:[%s186 + $0x8] sm:$0xff]
                %191 = vst [vmem:[%s187 + $0x8] sm:$0xff] %v190
                %v192 = vld [vmem:[%s186 + $0x20] sm:$0xff]
                %193 = vst [vmem:[%s187 + $0x10] sm:$0xff] %v192
                %v194 = vld [vmem:[%s186 + $0x28] sm:$0xff]
                %195 = vst [vmem:[%s187 + $0x18] sm:$0xff] %v194
                %v196 = vld [vmem:[%s186 + $0x40] sm:$0xff]
                %197 = vst [vmem:[%s187 + $0x20] sm:$0xff] %v196
                %v198 = vld [vmem:[%s186 + $0x48] sm:$0xff]
                %199 = vst [vmem:[%s187 + $0x28] sm:$0xff] %v198
                %v200 = vld [vmem:[%s186 + $0x60] sm:$0xff]
                %201 = vst [vmem:[%s187 + $0x30] sm:$0xff] %v200
                %v202 = vld [vmem:[%s186 + $0x68] sm:$0xff]
                %203 = vst [vmem:[%s187 + $0x38] sm:$0xff] %v202
                %v204 = vld [vmem:[%s186 + $0x80] sm:$0xff]
                %205 = vst [vmem:[%s187 + $0x40] sm:$0xff] %v204
                %v206 = vld [vmem:[%s186 + $0x88] sm:$0xff]
                %207 = vst [vmem:[%s187 + $0x48] sm:$0xff] %v206
                %v208 = vld [vmem:[%s186 + $0xa0] sm:$0xff]
                %209 = vst [vmem:[%s187 + $0x50] sm:$0xff] %v208
                %v210 = vld [vmem:[%s186 + $0xa8] sm:$0xff]
                %211 = vst [vmem:[%s187 + $0x58] sm:$0xff] %v210
                %v212 = vld [vmem:[%s186 + $0xc0] sm:$0xff]
                %213 = vst [vmem:[%s187 + $0x60] sm:$0xff] %v212
                %v214 = vld [vmem:[%s186 + $0xc8] sm:$0xff]
                %215 = vst [vmem:[%s187 + $0x68] sm:$0xff] %v214
                %v216 = vld [vmem:[%s186 + $0xe0] sm:$0xff]
                %217 = vst [vmem:[%s187 + $0x70] sm:$0xff] %v216
                %v218 = vld [vmem:[%s186 + $0xe8] sm:$0xff]
                %219 = vst [vmem:[%s187 + $0x78] sm:$0xff] %v218
              $region37: #{discriminator_forward.5} parent=31 // loop_footer
                %s185 = sadd.s32 1, %s181
              $region38: #{discriminator_forward.5} parent=31 // loop_footer_branch
                %180 = sbr.rel target = $region34
              $region39: #{discriminator_forward.5} parent=31 // loop_exit
                _
            $region32: #{discriminator_forward.5} parent=27 // pred_fallthru
              _
            // Predicated region
            $region40: #{discriminator_forward.5} parent=27 // pred_check
              _
            $region41: #{discriminator_forward.5} parent=27 // pred_check_branch
              %221 = sbr.rel target = $region43
            $region42: #{discriminator_forward.5} parent=27 // pred_region
              _
            $region43: #{discriminator_forward.5} parent=27 // pred_fallthru
              _
          $region28: #{discriminator_forward.5} parent=23 // pred_fallthru
            _
          %222 = vnop
        $region24: #{discriminator_forward.5} parent=19 // pred_fallthru
          _
        // Predicated region
        $region44: #{discriminator_forward.5} parent=19 // pred_check
          %p223 = pneg %p78
        $region45: #{discriminator_forward.5} parent=19 // pred_check_branch
          %225 = sbr.rel (%p223) target = $region47
        $region46: #{discriminator_forward.5} parent=19 // pred_region
          %s226 = smul.u32 64, %s18
          %p227 = scmp.lt.s32.totalorder %s226, 127
          %s228 = scalar_select %p227, %s226, 127
          %p229 = scmp.lt.s32.totalorder %s17, 0
          %s230 = scalar_select %p229, %s17, 0
          %s231 = sadd.s32 %s230, %s228
          %s232 = smul.addr %s231, 4
          %s233 = scalar_lea.vmem %s1, %s232
          %s234 = smul.u32 64, %s18
        $region47: #{discriminator_forward.5} parent=19 // pred_fallthru
          _
      $region20: #{discriminator_forward.5} parent=5 // pred_fallthru
        _
      %p235 = scmp.le.s32.totalorder 1, %s9
      %p236 = scmp.lt.s32.totalorder %s9, 3
      %p237 = pnand %p235, %p236
      %p238 = pneg %p237
      // Predicated region
      $region48: #{discriminator_forward.5} parent=5 // pred_check
        _
      $region49: #{discriminator_forward.5} parent=5 // pred_check_branch
        %240 = sbr.rel (%p237) target = $region51
      $region50: #{discriminator_forward.5} parent=5 // pred_region
        %s241 = ssub.s32 %s9, 1
        %s242 = sand.u32 %s43, 1
        %s243 = sand.u32 %s43, 1
        %s244 = smul.addr %s243, 128
        %s245 = scalar_lea.vmem [#allocation3], %s244
        // Predicated region
        $region52: #{discriminator_forward.5} parent=50 // pred_check
          %p246 = pneg %p56
        $region53: #{discriminator_forward.5} parent=50 // pred_check_branch
          %248 = sbr.rel (%p246) target = $region55
        $region54: #{discriminator_forward.5} parent=50 // pred_region
          _
        $region55: #{discriminator_forward.5} parent=50 // pred_fallthru
          _
        %s249 = sand.u32 %s43, 1
        %s250 = sand.u32 %s43, 1
        %s251 = smul.addr %s250, 128
        %s252 = scalar_lea.vmem [#allocation3], %s251
        %p253 = pneg %p56
        %p254 = pneg %p53
        %s255 = smul.u32 64, %s21
        %p256 = scmp.lt.s32.totalorder %s255, 127
        %s257 = scalar_select %p256, %s255, 127
        %p258 = scmp.lt.s32.totalorder %s20, 0
        %s259 = scalar_select %p258, %s20, 0
        %s260 = sadd.s32 %s259, %s257
        %s261 = smul.addr %s260, 4
        %s262 = scalar_lea.vmem %s1, %s261
        %p263 = pneg %p84
        %p264 = pneg %p81
        %p265 = scmp.lt.s32.totalorder %s20, 0
        %s266 = scalar_select %p265, %s20, 0
        %s267 = scalar_lea.vmem %s2, %s266
        %p268 = pneg %p110
        %p269 = pneg %p107
        %p270 = pneg %p138
        %p271 = pneg %p135
        %s272 = smul.u32 8, %s19
        %p273 = scmp.lt.s32.totalorder %s272, 7
        %s274 = scalar_select %p273, %s272, 7
        %p275 = scmp.lt.s32.totalorder %s20, 0
        %s276 = scalar_select %p275, %s20, 0
        %s277 = sadd.s32 %s276, %s274
        %s278 = smul.addr %s277, 4
        %s279 = scalar_lea.vmem %s3, %s278
        %s280 = smul.u32 8, %s19
        %s281 = smul.u32 4, %s21
        %s282 = smul.u32 64, %s21
        %p283 = scmp.lt.s32.totalorder %s282, 127
        %s284 = scalar_select %p283, %s282, 127
        %p285 = scmp.lt.s32.totalorder %s20, 0
        %s286 = scalar_select %p285, %s20, 0
        %s287 = sadd.s32 %s286, %s284
        %s288 = smul.addr %s287, 4
        %s289 = scalar_lea.vmem %s1, %s288
        %s290 = smul.u32 64, %s21
        %p291 = scmp.lt.s32.totalorder %s20, 0
        %s292 = scalar_select %p291, %s20, 0
        %s293 = scalar_lea.vmem %s2, %s292
        %s294 = smul.u32 8, %s19
        %p295 = scmp.lt.s32.totalorder %s294, 7
        %s296 = scalar_select %p295, %s294, 7
        %p297 = scmp.lt.s32.totalorder %s20, 0
        %s298 = scalar_select %p297, %s20, 0
        %s299 = sadd.s32 %s298, %s296
        %s300 = smul.addr %s299, 4
        %s301 = scalar_lea.vmem %s3, %s300
        %s302 = smul.u32 8, %s19
        %p303 = scmp.eq.s32.totalorder %s21, 0
        // Predicated region
        $region56: #{discriminator_forward.5} parent=50 // pred_check
          %p304 = pneg %p303
        $region57: #{discriminator_forward.5} parent=50 // pred_check_branch
          %306 = sbr.rel (%p304) target = $region59
        $region58: #{discriminator_forward.5} parent=50 // pred_region
          %307 = vst [vmem:[#allocation2] sm:$0xff] 0.0
          %308 = vst [vmem:[#allocation2 + $0x8] sm:$0xff] 0.0
          %309 = vst [vmem:[#allocation2 + $0x10] sm:$0xff] 0.0
          %310 = vst [vmem:[#allocation2 + $0x18] sm:$0xff] 0.0
          %311 = vst [vmem:[#allocation2 + $0x20] sm:$0xff] 0.0
          %312 = vst [vmem:[#allocation2 + $0x28] sm:$0xff] 0.0
          %313 = vst [vmem:[#allocation2 + $0x30] sm:$0xff] 0.0
          %314 = vst [vmem:[#allocation2 + $0x38] sm:$0xff] 0.0
        $region59: #{discriminator_forward.5} parent=50 // pred_fallthru
          _
        %v315 = vld [vmem:[%s245] sm:$0xff]
        %v316 = vld [vmem:[%s245 + $0x8] sm:$0xff]
        %v317 = vld [vmem:[%s245 + $0x10] sm:$0xff]
        %v318 = vld [vmem:[%s245 + $0x18] sm:$0xff]
        %v319 = vld [vmem:[%s245 + $0x20] sm:$0xff]
        %v320 = vld [vmem:[%s245 + $0x28] sm:$0xff]
        %v321 = vld [vmem:[%s245 + $0x30] sm:$0xff]
        %v322 = vld [vmem:[%s245 + $0x38] sm:$0xff]
        %v323 = vld [vmem:[%s245 + $0x40] sm:$0xff]
        %v324 = vld [vmem:[%s245 + $0x48] sm:$0xff]
        %v325 = vld [vmem:[%s245 + $0x50] sm:$0xff]
        %v326 = vld [vmem:[%s245 + $0x58] sm:$0xff]
        %v327 = vld [vmem:[%s245 + $0x60] sm:$0xff]
        %v328 = vld [vmem:[%s245 + $0x68] sm:$0xff]
        %v329 = vld [vmem:[%s245 + $0x70] sm:$0xff]
        %v330 = vld [vmem:[%s245 + $0x78] sm:$0xff]
        %v331 = vld [vmem:[#allocation2] sm:$0xff]
        %v332 = vld [vmem:[#allocation2 + $0x8] sm:$0xff]
        %v333 = vld [vmem:[#allocation2 + $0x10] sm:$0xff]
        %v334 = vld [vmem:[#allocation2 + $0x18] sm:$0xff]
        %v335 = vld [vmem:[#allocation2 + $0x20] sm:$0xff]
        %v336 = vld [vmem:[#allocation2 + $0x28] sm:$0xff]
        %v337 = vld [vmem:[#allocation2 + $0x30] sm:$0xff]
        %v338 = vld [vmem:[#allocation2 + $0x38] sm:$0xff]
        %v339 = vld [vmem:[%s289] sm:$0xf]
        %v340 = vld [vmem:[%s289 + $0x4] sm:$0xf]
        %v341 = vld [vmem:[%s289 + $0x8] sm:$0xf]
        %v342 = vld [vmem:[%s289 + $0xc] sm:$0xf]
        %v343 = vld [vmem:[%s289 + $0x10] sm:$0xf]
        %v344 = vld [vmem:[%s289 + $0x14] sm:$0xf]
        %v345 = vld [vmem:[%s289 + $0x18] sm:$0xf]
        %v346 = vld [vmem:[%s289 + $0x1c] sm:$0xf]
        %v347 = vld [vmem:[%s289 + $0x20] sm:$0xf]
        %v348 = vld [vmem:[%s289 + $0x24] sm:$0xf]
        %v349 = vld [vmem:[%s289 + $0x28] sm:$0xf]
        %v350 = vld [vmem:[%s289 + $0x2c] sm:$0xf]
        %v351 = vld [vmem:[%s289 + $0x30] sm:$0xf]
        %v352 = vld [vmem:[%s289 + $0x34] sm:$0xf]
        %v353 = vld [vmem:[%s289 + $0x38] sm:$0xf]
        %v354 = vld [vmem:[%s289 + $0x3c] sm:$0xf]
        %v355 = vld [vmem:[%s289 + $0x40] sm:$0xf]
        %v356 = vld [vmem:[%s289 + $0x44] sm:$0xf]
        %v357 = vld [vmem:[%s289 + $0x48] sm:$0xf]
        %v358 = vld [vmem:[%s289 + $0x4c] sm:$0xf]
        %v359 = vld [vmem:[%s289 + $0x50] sm:$0xf]
        %v360 = vld [vmem:[%s289 + $0x54] sm:$0xf]
        %v361 = vld [vmem:[%s289 + $0x58] sm:$0xf]
        %v362 = vld [vmem:[%s289 + $0x5c] sm:$0xf]
        %v363 = vld [vmem:[%s289 + $0x60] sm:$0xf]
        %v364 = vld [vmem:[%s289 + $0x64] sm:$0xf]
        %v365 = vld [vmem:[%s289 + $0x68] sm:$0xf]
        %v366 = vld [vmem:[%s289 + $0x6c] sm:$0xf]
        %v367 = vld [vmem:[%s289 + $0x70] sm:$0xf]
        %v368 = vld [vmem:[%s289 + $0x74] sm:$0xf]
        %v369 = vld [vmem:[%s289 + $0x78] sm:$0xf]
        %v370 = vld [vmem:[%s289 + $0x7c] sm:$0xf]
        %v371 = vld [vmem:[%s289 + $0x80] sm:$0xf]
        %v372 = vld [vmem:[%s289 + $0x84] sm:$0xf]
        %v373 = vld [vmem:[%s289 + $0x88] sm:$0xf]
        %v374 = vld [vmem:[%s289 + $0x8c] sm:$0xf]
        %v375 = vld [vmem:[%s289 + $0x90] sm:$0xf]
        %v376 = vld [vmem:[%s289 + $0x94] sm:$0xf]
        %v377 = vld [vmem:[%s289 + $0x98] sm:$0xf]
        %v378 = vld [vmem:[%s289 + $0x9c] sm:$0xf]
        %v379 = vld [vmem:[%s289 + $0xa0] sm:$0xf]
        %v380 = vld [vmem:[%s289 + $0xa4] sm:$0xf]
        %v381 = vld [vmem:[%s289 + $0xa8] sm:$0xf]
        %v382 = vld [vmem:[%s289 + $0xac] sm:$0xf]
        %v383 = vld [vmem:[%s289 + $0xb0] sm:$0xf]
        %v384 = vld [vmem:[%s289 + $0xb4] sm:$0xf]
        %v385 = vld [vmem:[%s289 + $0xb8] sm:$0xf]
        %v386 = vld [vmem:[%s289 + $0xbc] sm:$0xf]
        %v387 = vld [vmem:[%s289 + $0xc0] sm:$0xf]
        %v388 = vld [vmem:[%s289 + $0xc4] sm:$0xf]
        %v389 = vld [vmem:[%s289 + $0xc8] sm:$0xf]
        %v390 = vld [vmem:[%s289 + $0xcc] sm:$0xf]
        %v391 = vld [vmem:[%s289 + $0xd0] sm:$0xf]
        %v392 = vld [vmem:[%s289 + $0xd4] sm:$0xf]
        %v393 = vld [vmem:[%s289 + $0xd8] sm:$0xf]
        %v394 = vld [vmem:[%s289 + $0xdc] sm:$0xf]
        %v395 = vld [vmem:[%s289 + $0xe0] sm:$0xf]
        %v396 = vld [vmem:[%s289 + $0xe4] sm:$0xf]
        %v397 = vld [vmem:[%s289 + $0xe8] sm:$0xf]
        %v398 = vld [vmem:[%s289 + $0xec] sm:$0xf]
        %v399 = vld [vmem:[%s289 + $0xf0] sm:$0xf]
        %v400 = vld [vmem:[%s289 + $0xf4] sm:$0xf]
        %v401 = vld [vmem:[%s289 + $0xf8] sm:$0xf]
        %v402 = vld [vmem:[%s289 + $0xfc] sm:$0xf]
        %v419 = vunpack.c.l.b16 %v315
        %v420 = vunpack.c.h.b16 %v315
        %v421 = vunpack.c.l.b16 %v316
        %v422 = vunpack.c.h.b16 %v316
        %v423 = vunpack.c.l.b16 %v317
        %v424 = vunpack.c.h.b16 %v317
        %v425 = vunpack.c.l.b16 %v318
        %v426 = vunpack.c.h.b16 %v318
        %v427 = vunpack.c.l.b16 %v319
        %v428 = vunpack.c.h.b16 %v319
        %v429 = vunpack.c.l.b16 %v320
        %v430 = vunpack.c.h.b16 %v320
        %v431 = vunpack.c.l.b16 %v321
        %v432 = vunpack.c.h.b16 %v321
        %v433 = vunpack.c.l.b16 %v322
        %v434 = vunpack.c.h.b16 %v322
        %v435 = vunpack.c.l.b16 %v323
        %v436 = vunpack.c.h.b16 %v323
        %v437 = vunpack.c.l.b16 %v324
        %v438 = vunpack.c.h.b16 %v324
        %v439 = vunpack.c.l.b16 %v325
        %v440 = vunpack.c.h.b16 %v325
        %v441 = vunpack.c.l.b16 %v326
        %v442 = vunpack.c.h.b16 %v326
        %v443 = vunpack.c.l.b16 %v327
        %v444 = vunpack.c.h.b16 %v327
        %v445 = vunpack.c.l.b16 %v328
        %v446 = vunpack.c.h.b16 %v328
        %v447 = vunpack.c.l.b16 %v329
        %v448 = vunpack.c.h.b16 %v329
        %v449 = vunpack.c.l.b16 %v330
        %v450 = vunpack.c.h.b16 %v330
        %v451 = vpack.c.b16 %v423, %v419
        %v452 = vpack.c.b16 %v424, %v420
        %v453 = vpack.c.b16 %v425, %v421
        %v454 = vpack.c.b16 %v426, %v422
        %v455 = vpack.c.b16 %v431, %v427
        %v456 = vpack.c.b16 %v432, %v428
        %v457 = vpack.c.b16 %v433, %v429
        %v458 = vpack.c.b16 %v434, %v430
        %v459 = vpack.c.b16 %v439, %v435
        %v460 = vpack.c.b16 %v440, %v436
        %v461 = vpack.c.b16 %v441, %v437
        %v462 = vpack.c.b16 %v442, %v438
        %v463 = vpack.c.b16 %v447, %v443
        %v464 = vpack.c.b16 %v448, %v444
        %v465 = vpack.c.b16 %v449, %v445
        %v466 = vpack.c.b16 %v450, %v446
        %v547 = vunpack.c.l.b16 %v339
        %v548 = vunpack.c.l.b16 %v340
        %v549 = vunpack.c.l.b16 %v341
        %v550 = vunpack.c.l.b16 %v342
        %v551 = vunpack.c.l.b16 %v343
        %v552 = vunpack.c.l.b16 %v344
        %v553 = vunpack.c.l.b16 %v345
        %v554 = vunpack.c.l.b16 %v346
        %v555 = vunpack.c.l.b16 %v347
        %v556 = vunpack.c.l.b16 %v348
        %v557 = vunpack.c.l.b16 %v349
        %v558 = vunpack.c.l.b16 %v350
        %v559 = vunpack.c.l.b16 %v351
        %v560 = vunpack.c.l.b16 %v352
        %v561 = vunpack.c.l.b16 %v353
        %v562 = vunpack.c.l.b16 %v354
        %v563 = vunpack.c.l.b16 %v355
        %v564 = vunpack.c.l.b16 %v356
        %v565 = vunpack.c.l.b16 %v357
        %v566 = vunpack.c.l.b16 %v358
        %v567 = vunpack.c.l.b16 %v359
        %v568 = vunpack.c.l.b16 %v360
        %v569 = vunpack.c.l.b16 %v361
        %v570 = vunpack.c.l.b16 %v362
        %v571 = vunpack.c.l.b16 %v363
        %v572 = vunpack.c.l.b16 %v364
        %v573 = vunpack.c.l.b16 %v365
        %v574 = vunpack.c.l.b16 %v366
        %v575 = vunpack.c.l.b16 %v367
        %v576 = vunpack.c.l.b16 %v368
        %v577 = vunpack.c.l.b16 %v369
        %v578 = vunpack.c.l.b16 %v370
        %v579 = vunpack.c.l.b16 %v371
        %v580 = vunpack.c.l.b16 %v372
        %v581 = vunpack.c.l.b16 %v373
        %v582 = vunpack.c.l.b16 %v374
        %v583 = vunpack.c.l.b16 %v375
        %v584 = vunpack.c.l.b16 %v376
        %v585 = vunpack.c.l.b16 %v377
        %v586 = vunpack.c.l.b16 %v378
        %v587 = vunpack.c.l.b16 %v379
        %v588 = vunpack.c.l.b16 %v380
        %v589 = vunpack.c.l.b16 %v381
        %v590 = vunpack.c.l.b16 %v382
        %v591 = vunpack.c.l.b16 %v383
        %v592 = vunpack.c.l.b16 %v384
        %v593 = vunpack.c.l.b16 %v385
        %v594 = vunpack.c.l.b16 %v386
        %v595 = vunpack.c.l.b16 %v387
        %v596 = vunpack.c.l.b16 %v388
        %v597 = vunpack.c.l.b16 %v389
        %v598 = vunpack.c.l.b16 %v390
        %v599 = vunpack.c.l.b16 %v391
        %v600 = vunpack.c.l.b16 %v392
        %v601 = vunpack.c.l.b16 %v393
        %v602 = vunpack.c.l.b16 %v394
        %v603 = vunpack.c.l.b16 %v395
        %v604 = vunpack.c.l.b16 %v396
        %v605 = vunpack.c.l.b16 %v397
        %v606 = vunpack.c.l.b16 %v398
        %v607 = vunpack.c.l.b16 %v399
        %v608 = vunpack.c.l.b16 %v400
        %v609 = vunpack.c.l.b16 %v401
        %v610 = vunpack.c.l.b16 %v402
        %v611 = vpack.c.b16 %v548, %v547
        %v612 = vpack.c.b16 %v550, %v549
        %v613 = vpack.c.b16 %v552, %v551
        %v614 = vpack.c.b16 %v554, %v553
        %v615 = vpack.c.b16 %v556, %v555
        %v616 = vpack.c.b16 %v558, %v557
        %v617 = vpack.c.b16 %v560, %v559
        %v618 = vpack.c.b16 %v562, %v561
        %v619 = vpack.c.b16 %v564, %v563
        %v620 = vpack.c.b16 %v566, %v565
        %v621 = vpack.c.b16 %v568, %v567
        %v622 = vpack.c.b16 %v570, %v569
        %v623 = vpack.c.b16 %v572, %v571
        %v624 = vpack.c.b16 %v574, %v573
        %v625 = vpack.c.b16 %v576, %v575
        %v626 = vpack.c.b16 %v578, %v577
        %v627 = vpack.c.b16 %v580, %v579
        %v628 = vpack.c.b16 %v582, %v581
        %v629 = vpack.c.b16 %v584, %v583
        %v630 = vpack.c.b16 %v586, %v585
        %v631 = vpack.c.b16 %v588, %v587
        %v632 = vpack.c.b16 %v590, %v589
        %v633 = vpack.c.b16 %v592, %v591
        %v634 = vpack.c.b16 %v594, %v593
        %v635 = vpack.c.b16 %v596, %v595
        %v636 = vpack.c.b16 %v598, %v597
        %v637 = vpack.c.b16 %v600, %v599
        %v638 = vpack.c.b16 %v602, %v601
        %v639 = vpack.c.b16 %v604, %v603
        %v640 = vpack.c.b16 %v606, %v605
        %v641 = vpack.c.b16 %v608, %v607
        %v642 = vpack.c.b16 %v610, %v609
        %675 = vmatpush.bf16.msra.mxu0 %v618
        %676 = vmatpush.bf16.msra.mxu0 %v617
        %677 = vmatpush.bf16.msra.mxu0 %v616
        %678 = vmatpush.bf16.msra.mxu0 %v615
        %679 = vmatpush.bf16.msra.mxu0 %v614
        %680 = vmatpush.bf16.msra.mxu0 %v613
        %681 = vmatpush.bf16.msra.mxu0 %v612
        %682 = vmatpush.bf16.msra.mxu0 %v611
        %683 = vmatmul.bf16.gmra.mxu0 %v451
        %v684 = vpop.f32.mrf.mxu0
        %v685 = vadd.f32 0.0, %v684
        %v686 = vpop.f32.mrf.mxu0
        %v687 = vadd.f32 0.0, %v686
        %688 = vmatmul.bf16.gmra.mxu0 %v455
        %v689 = vpop.f32.mrf.mxu0
        %v690 = vadd.f32 0.0, %v689
        %v691 = vpop.f32.mrf.mxu0
        %v692 = vadd.f32 0.0, %v691
        %693 = vmatmul.bf16.gmra.mxu0 %v459
        %v694 = vpop.f32.mrf.mxu0
        %v695 = vadd.f32 0.0, %v694
        %v696 = vpop.f32.mrf.mxu0
        %v697 = vadd.f32 0.0, %v696
        %698 = vmatmul.bf16.gmra.mxu0 %v463
        %v699 = vpop.f32.mrf.mxu0
        %v700 = vadd.f32 0.0, %v699
        %v701 = vpop.f32.mrf.mxu0
        %v702 = vadd.f32 0.0, %v701
        %703 = vdwg.mxu0
        %704 = vmatpush.bf16.msra.mxu0 %v626
        %705 = vmatpush.bf16.msra.mxu0 %v625
        %706 = vmatpush.bf16.msra.mxu0 %v624
        %707 = vmatpush.bf16.msra.mxu0 %v623
        %708 = vmatpush.bf16.msra.mxu0 %v622
        %709 = vmatpush.bf16.msra.mxu0 %v621
        %710 = vmatpush.bf16.msra.mxu0 %v620
        %711 = vmatpush.bf16.msra.mxu0 %v619
        %712 = vmatmul.bf16.gmra.mxu0 %v452
        %v713 = vpop.f32.mrf.mxu0
        %v714 = vadd.f32 %v685, %v713
        %v715 = vpop.f32.mrf.mxu0
        %v716 = vadd.f32 %v687, %v715
        %717 = vmatmul.bf16.gmra.mxu0 %v456
        %v718 = vpop.f32.mrf.mxu0
        %v719 = vadd.f32 %v690, %v718
        %v720 = vpop.f32.mrf.mxu0
        %v721 = vadd.f32 %v692, %v720
        %722 = vmatmul.bf16.gmra.mxu0 %v460
        %v723 = vpop.f32.mrf.mxu0
        %v724 = vadd.f32 %v695, %v723
        %v725 = vpop.f32.mrf.mxu0
        %v726 = vadd.f32 %v697, %v725
        %727 = vmatmul.bf16.gmra.mxu0 %v464
        %v728 = vpop.f32.mrf.mxu0
        %v729 = vadd.f32 %v700, %v728
        %v730 = vpop.f32.mrf.mxu0
        %v731 = vadd.f32 %v702, %v730
        %732 = vdwg.mxu0
        %733 = vmatpush.bf16.msra.mxu0 %v634
        %734 = vmatpush.bf16.msra.mxu0 %v633
        %735 = vmatpush.bf16.msra.mxu0 %v632
        %736 = vmatpush.bf16.msra.mxu0 %v631
        %737 = vmatpush.bf16.msra.mxu0 %v630
        %738 = vmatpush.bf16.msra.mxu0 %v629
        %739 = vmatpush.bf16.msra.mxu0 %v628
        %740 = vmatpush.bf16.msra.mxu0 %v627
        %741 = vmatmul.bf16.gmra.mxu0 %v453
        %v742 = vpop.f32.mrf.mxu0
        %v743 = vadd.f32 %v714, %v742
        %v744 = vpop.f32.mrf.mxu0
        %v745 = vadd.f32 %v716, %v744
        %746 = vmatmul.bf16.gmra.mxu0 %v457
        %v747 = vpop.f32.mrf.mxu0
        %v748 = vadd.f32 %v719, %v747
        %v749 = vpop.f32.mrf.mxu0
        %v750 = vadd.f32 %v721, %v749
        %751 = vmatmul.bf16.gmra.mxu0 %v461
        %v752 = vpop.f32.mrf.mxu0
        %v753 = vadd.f32 %v724, %v752
        %v754 = vpop.f32.mrf.mxu0
        %v755 = vadd.f32 %v726, %v754
        %756 = vmatmul.bf16.gmra.mxu0 %v465
        %v757 = vpop.f32.mrf.mxu0
        %v758 = vadd.f32 %v729, %v757
        %v759 = vpop.f32.mrf.mxu0
        %v760 = vadd.f32 %v731, %v759
        %761 = vdwg.mxu0
        %762 = vmatpush.bf16.msra.mxu0 %v642
        %763 = vmatpush.bf16.msra.mxu0 %v641
        %764 = vmatpush.bf16.msra.mxu0 %v640
        %765 = vmatpush.bf16.msra.mxu0 %v639
        %766 = vmatpush.bf16.msra.mxu0 %v638
        %767 = vmatpush.bf16.msra.mxu0 %v637
        %768 = vmatpush.bf16.msra.mxu0 %v636
        %769 = vmatpush.bf16.msra.mxu0 %v635
        %770 = vmatmul.bf16.gmra.mxu0 %v454
        %v771 = vpop.f32.mrf.mxu0
        %v772 = vadd.f32 %v743, %v771
        %v773 = vpop.f32.mrf.mxu0
        %v774 = vadd.f32 %v745, %v773
        %775 = vmatmul.bf16.gmra.mxu0 %v458
        %v776 = vpop.f32.mrf.mxu0
        %v777 = vadd.f32 %v748, %v776
        %v778 = vpop.f32.mrf.mxu0
        %v779 = vadd.f32 %v750, %v778
        %780 = vmatmul.bf16.gmra.mxu0 %v462
        %v781 = vpop.f32.mrf.mxu0
        %v782 = vadd.f32 %v753, %v781
        %v783 = vpop.f32.mrf.mxu0
        %v784 = vadd.f32 %v755, %v783
        %785 = vmatmul.bf16.gmra.mxu0 %v466
        %v786 = vpop.f32.mrf.mxu0
        %v787 = vadd.f32 %v758, %v786
        %v788 = vpop.f32.mrf.mxu0
        %v789 = vadd.f32 %v760, %v788
        %790 = vdwg.mxu0
        %v791 = vadd.f32 %v331, %v772
        %v792 = vadd.f32 %v332, %v774
        %v793 = vadd.f32 %v333, %v777
        %v794 = vadd.f32 %v334, %v779
        %v795 = vadd.f32 %v335, %v782
        %v796 = vadd.f32 %v336, %v784
        %v797 = vadd.f32 %v337, %v787
        %v798 = vadd.f32 %v338, %v789
        %799 = vst [vmem:[#allocation2] sm:$0xff] %v791
        %800 = vst [vmem:[#allocation2 + $0x8] sm:$0xff] %v792
        %801 = vst [vmem:[#allocation2 + $0x10] sm:$0xff] %v793
        %802 = vst [vmem:[#allocation2 + $0x18] sm:$0xff] %v794
        %803 = vst [vmem:[#allocation2 + $0x20] sm:$0xff] %v795
        %804 = vst [vmem:[#allocation2 + $0x28] sm:$0xff] %v796
        %805 = vst [vmem:[#allocation2 + $0x30] sm:$0xff] %v797
        %806 = vst [vmem:[#allocation2 + $0x38] sm:$0xff] %v798
        %p807 = scmp.eq.s32.totalorder %s21, 1
        // Predicated region
        $region60: #{discriminator_forward.5} parent=50 // pred_check
          %p808 = pneg %p807
        $region61: #{discriminator_forward.5} parent=50 // pred_check_branch
          %810 = sbr.rel (%p808) target = $region63
        $region62: #{discriminator_forward.5} parent=50 // pred_region
          %v811 = vld [vmem:[#allocation2] sm:$0xff]
          %v812 = vld [vmem:[#allocation2 + $0x8] sm:$0xff]
          %v813 = vld [vmem:[#allocation2 + $0x10] sm:$0xff]
          %v814 = vld [vmem:[#allocation2 + $0x18] sm:$0xff]
          %v815 = vld [vmem:[#allocation2 + $0x20] sm:$0xff]
          %v816 = vld [vmem:[#allocation2 + $0x28] sm:$0xff]
          %v817 = vld [vmem:[#allocation2 + $0x30] sm:$0xff]
          %v818 = vld [vmem:[#allocation2 + $0x38] sm:$0xff]
          %v819 = vld [vmem:[%s293] sm:$0x1]
          %v821 = vperm.slane %v819, 0
          %v823 = vadd.f32 %v811, %v821
          %v824 = vadd.f32 %v812, %v821
          %v825 = vadd.f32 %v813, %v821
          %v826 = vadd.f32 %v814, %v821
          %v827 = vadd.f32 %v815, %v821
          %v828 = vadd.f32 %v816, %v821
          %v829 = vadd.f32 %v817, %v821
          %v830 = vadd.f32 %v818, %v821
          %v831 = vpack.c.bf16 %v823, %v823
          %v832 = vpack.c.bf16 %v824, %v824
          %v833 = vpack.c.bf16 %v825, %v825
          %v834 = vpack.c.bf16 %v826, %v826
          %v835 = vpack.c.bf16 %v827, %v827
          %v836 = vpack.c.bf16 %v828, %v828
          %v837 = vpack.c.bf16 %v829, %v829
          %v838 = vpack.c.bf16 %v830, %v830
          %839 = vst [vmem:[%s301] sm:$0xf] %v831
          %840 = vst [vmem:[%s301 + $0x4] sm:$0xf] %v832
          %841 = vst [vmem:[%s301 + $0x8] sm:$0xf] %v833
          %842 = vst [vmem:[%s301 + $0xc] sm:$0xf] %v834
          %843 = vst [vmem:[%s301 + $0x10] sm:$0xf] %v835
          %844 = vst [vmem:[%s301 + $0x14] sm:$0xf] %v836
          %845 = vst [vmem:[%s301 + $0x18] sm:$0xf] %v837
          %846 = vst [vmem:[%s301 + $0x1c] sm:$0xf] %v838
        $region63: #{discriminator_forward.5} parent=50 // pred_fallthru
          _
        %s847 = smul.u32 8, %s19
        %p848 = scmp.lt.s32.totalorder %s847, 7
        %s849 = scalar_select %p848, %s847, 7
        %p850 = scmp.lt.s32.totalorder %s20, 0
        %s851 = scalar_select %p850, %s20, 0
        %s852 = sadd.s32 %s851, %s849
        %s853 = smul.addr %s852, 4
        %s854 = scalar_lea.vmem %s3, %s853
        // Predicated region
        $region64: #{discriminator_forward.5} parent=50 // pred_check
          %p855 = pneg %p135
        $region65: #{discriminator_forward.5} parent=50 // pred_check_branch
          %857 = sbr.rel (%p855) target = $region67
        $region66: #{discriminator_forward.5} parent=50 // pred_region
          %s858 = smul.u32 8, %s19
        $region67: #{discriminator_forward.5} parent=50 // pred_fallthru
          _
        // Predicated region
        $region68: #{discriminator_forward.5} parent=50 // pred_check
          %p859 = pneg %p135
        $region69: #{discriminator_forward.5} parent=50 // pred_check_branch
          %861 = sbr.rel (%p859) target = $region71
        $region70: #{discriminator_forward.5} parent=50 // pred_region
          %s862 = smul.u32 8, %s19
          %p863 = scmp.lt.s32.totalorder %s862, 7
          %s864 = scalar_select %p863, %s862, 7
          %p865 = scmp.lt.s32.totalorder %s20, 0
          %s866 = scalar_select %p865, %s20, 0
          %s867 = sadd.s32 %s866, %s864
          %s868 = smul.addr %s867, 4
          %s869 = scalar_lea.vmem %s3, %s868
        $region71: #{discriminator_forward.5} parent=50 // pred_fallthru
          _
      $region51: #{discriminator_forward.5} parent=5 // pred_fallthru
        _
      %p870 = scmp.le.s32.totalorder 2, %s9
      // Predicated region
      $region72: #{discriminator_forward.5} parent=5 // pred_check
        %p871 = pneg %p870
      $region73: #{discriminator_forward.5} parent=5 // pred_check_branch
        %873 = sbr.rel (%p871) target = $region75
      $region74: #{discriminator_forward.5} parent=5 // pred_region
        %s874 = ssub.s32 %s9, 2
      $region75: #{discriminator_forward.5} parent=5 // pred_fallthru
        _
    $region6: #{discriminator_forward.5} parent=1 // loop_footer
      %s13 = sadd.s32 1, %s9
    $region7: #{discriminator_forward.5} parent=1 // loop_footer_branch
      %8 = sbr.rel target = $region3
    $region8: #{discriminator_forward.5} parent=1 // loop_exit
      _

// kernel: tile.13
$region0: #{tile.13}
  #allocation0 [shape = 's32[1]{0}', space=sflag, size = 0x4, scoped, tag = 'scoped memory for tile.13']
  %s0 = inlined_call_operand.vmem [shape: f32[128], index: 0, kind: input, shape index: {}]
  %s1 = inlined_call_operand.vmem [shape: f32[16,128], index: 1, kind: output, shape index: {}]
  // Predicated region
  $region2: #{tile.13} parent=0 // pred_check
    _
  $region3: #{tile.13} parent=0 // pred_check_branch
    %3 = sbr.rel (0) target = $region5
  $region4: #{tile.13} parent=0 // pred_region
    _
  $region5: #{tile.13} parent=0 // pred_fallthru
    _
  %v4 = vld [vmem:[%s0] ss:$0 sm:$0xff]
  %5 = vst [vmem:[%s1] sm:$0xff] %v4
  %s6 = scalar_lea.vmem %s1, 8
  %7 = vst [vmem:[%s6] sm:$0xff] %v4

// kernel: discriminator_forward.6
$region0: #{discriminator_forward.6}
  #allocation0 [shape = 'u32[]', space=smem, size = 0x4, offset = 0x4, fixed_abs, tag = 'smem constant byte address 0x4 - core index']
  #allocation1 [shape = 'u32[72,128]{1,0:T(1,128)}', space=vmem, size = 0x9000, scoped, tag = 'internal scratch']
  #allocation2 [shape = 'f32[4,256]{1,0:T(4,128)}', space=vmem, size = 0x1000, scoped, tag = 'scratch operand']
  %s0 = inlined_call_operand.vmem [shape: bf16[4,2048], index: 0, kind: input, shape index: {}]
  %s1 = inlined_call_operand.vmem [shape: f32[1,2048], index: 1, kind: input, shape index: {}]
  %s2 = inlined_call_operand.vmem [shape: f32[1,2048], index: 2, kind: input, shape index: {}]
  %s3 = inlined_call_operand.vmem [shape: bf16[2048,1024], index: 3, kind: input, shape index: {}]
  %s4 = inlined_call_operand.vmem [shape: f32[1,1024], index: 4, kind: input, shape index: {}]
  %s5 = inlined_call_operand.vmem [shape: bf16[4,1024], index: 5, kind: output, shape index: {}]
  %s6 = sld [smem:[#allocation0]]
  $region99: #{discriminator_forward.6} parent=0
    _
  %s8 = ssub.s32 1, %s6
  %s9 = scalar_select 0, %s8, %s6
  $region1: #{discriminator_forward.6} parent=0
    #allocation3 [shape = 'u8[524288]{0}', space=vmem, size = 0x80000, scoped, tag = 'input window, operand 3']
    loop: start=0, step=1, limit=18
    $region2: #{discriminator_forward.6} parent=1 // loop_pre_header
      _
    $region3: #{discriminator_forward.6} parent=1 // loop_header
      %s11 = sphi 0, %s15
      %p12 = scmp.ge.s32.totalorder %s11, 18
      %s18 = sphi 0, %s37
      %s19 = sphi 0, %s33
      %s20 = sphi 0, %s29
      %s21 = sphi 0, %s18
      %s22 = sphi 0, %s19
      %s23 = sphi 0, %s20
      %s24 = sphi 0, %s21
      %s25 = sphi 0, %s22
      %s26 = sphi 0, %s23
      %s42 = sphi 0, %s44
      %s45 = sphi 0, %s42
      %s46 = sphi 0, %s45
      %s62 = sphi 0, %s46
      %s68 = sphi 0, %s70
      %s71 = sphi 0, %s68
      %s72 = sphi 0, %s71
      %s88 = sphi 0, %s72
      %s94 = sphi 0, %s96
      %s97 = sphi 0, %s94
      %s98 = sphi 0, %s97
      %s114 = sphi 0, %s98
      %s122 = sphi 0, %s124
      %s125 = sphi 0, %s122
      %s126 = sphi 0, %s125
      %s142 = sphi 0, %s126
      %s148 = sphi 0, %s150
      %s151 = sphi 0, %s148
      %s152 = sphi 0, %s151
      %s168 = sphi 0, %s152
      %s176 = sphi 0, %s178
      %s179 = sphi 0, %s176
      %s180 = sphi 0, %s179
      %s196 = sphi 0, %s180
    $region4: #{discriminator_forward.6} parent=1 // loop_header_branch
      %14 = sbr.rel (%p12) target = $region8
    $region5: #{discriminator_forward.6} parent=1 // loop_body
      %s16 = ssub.s32 %s11, 1
      %s17 = ssub.s32 %s11, 2
      %s27 = sadd.s32 1, %s20
      %p28 = scmp.ge.s32.totalorder %s27, 4
      %s29 = scalar_select %p28, 0, %s27
      %s30 = sadd.s32 1, %s19
      %s31 = scalar_select %p28, %s30, %s19
      %p32 = scmp.ge.s32.totalorder %s31, 4
      %s33 = scalar_select %p32, 0, %s31
      %s34 = sadd.s32 1, %s18
      %s35 = scalar_select %p32, %s34, %s18
      %p36 = scmp.ge.s32.totalorder %s35, 1
      %s37 = scalar_select %p36, 0, %s35
      %s38 = ssub.s32 %s18, %s37
      %s39 = ssub.s32 %s20, %s29
      %s40 = sor.u32 %s38, %s39
      %p41 = scmp.eq.s32.totalorder %s40, 0
      %s43 = sadd.s32 %s42, 1
      %s44 = scalar_select %p41, %s42, %s43
      %p47 = pneg %p41
      %p48 = scmp.eq.s32.totalorder %s11, 15
      %p49 = por %p47, %p48
      %p50 = scmp.ne.s32.totalorder %s42, %s45
      %p51 = scmp.eq.s32.totalorder %s11, 0
      %p52 = por %p50, %p51
      %p53 = scmp.ne.s32.totalorder %s42, %s45
      %p54 = scmp.eq.s32.totalorder %s16, 15
      %p55 = por %p53, %p54
      %p56 = scmp.ne.s32.totalorder %s45, %s46
      %p57 = scmp.eq.s32.totalorder %s16, 0
      %p58 = por %p56, %p57
      %p59 = scmp.ne.s32.totalorder %s45, %s46
      %p60 = scmp.eq.s32.totalorder %s17, 15
      %p61 = por %p59, %p60
      %p63 = scmp.ne.s32.totalorder %s46, %s62
      %p64 = scmp.eq.s32.totalorder %s17, 0
      %p65 = por %p63, %p64
      %s66 = ssub.s32 %s20, %s29
      %p67 = scmp.eq.s32.totalorder %s66, 0
      %s69 = sadd.s32 %s68, 1
      %s70 = scalar_select %p67, %s68, %s69
      %p73 = pneg %p67
      %p74 = scmp.eq.s32.totalorder %s11, 15
      %p75 = por %p73, %p74
      %p76 = scmp.ne.s32.totalorder %s68, %s71
      %p77 = scmp.eq.s32.totalorder %s11, 0
      %p78 = por %p76, %p77
      %p79 = scmp.ne.s32.totalorder %s68, %s71
      %p80 = scmp.eq.s32.totalorder %s16, 15
      %p81 = por %p79, %p80
      %p82 = scmp.ne.s32.totalorder %s71, %s72
      %p83 = scmp.eq.s32.totalorder %s16, 0
      %p84 = por %p82, %p83
      %p85 = scmp.ne.s32.totalorder %s71, %s72
      %p86 = scmp.eq.s32.totalorder %s17, 15
      %p87 = por %p85, %p86
      %p89 = scmp.ne.s32.totalorder %s72, %s88
      %p90 = scmp.eq.s32.totalorder %s17, 0
      %p91 = por %p89, %p90
      %s92 = ssub.s32 %s20, %s29
      %p93 = scmp.eq.s32.totalorder %s92, 0
      %s95 = sadd.s32 %s94, 1
      %s96 = scalar_select %p93, %s94, %s95
      %p99 = pneg %p93
      %p100 = scmp.eq.s32.totalorder %s11, 15
      %p101 = por %p99, %p100
      %p102 = scmp.ne.s32.totalorder %s94, %s97
      %p103 = scmp.eq.s32.totalorder %s11, 0
      %p104 = por %p102, %p103
      %p105 = scmp.ne.s32.totalorder %s94, %s97
      %p106 = scmp.eq.s32.totalorder %s16, 15
      %p107 = por %p105, %p106
      %p108 = scmp.ne.s32.totalorder %s97, %s98
      %p109 = scmp.eq.s32.totalorder %s16, 0
      %p110 = por %p108, %p109
      %p111 = scmp.ne.s32.totalorder %s97, %s98
      %p112 = scmp.eq.s32.totalorder %s17, 15
      %p113 = por %p111, %p112
      %p115 = scmp.ne.s32.totalorder %s98, %s114
      %p116 = scmp.eq.s32.totalorder %s17, 0
      %p117 = por %p115, %p116
      %s118 = ssub.s32 %s20, %s29
      %s119 = ssub.s32 %s19, %s33
      %s120 = sor.u32 %s118, %s119
      %p121 = scmp.eq.s32.totalorder %s120, 0
      %s123 = sadd.s32 %s122, 1
      %s124 = scalar_select %p121, %s122, %s123
      %p127 = pneg %p121
      %p128 = scmp.eq.s32.totalorder %s11, 15
      %p129 = por %p127, %p128
      %p130 = scmp.ne.s32.totalorder %s122, %s125
      %p131 = scmp.eq.s32.totalorder %s11, 0
      %p132 = por %p130, %p131
      %p133 = scmp.ne.s32.totalorder %s122, %s125
      %p134 = scmp.eq.s32.totalorder %s16, 15
      %p135 = por %p133, %p134
      %p136 = scmp.ne.s32.totalorder %s125, %s126
      %p137 = scmp.eq.s32.totalorder %s16, 0
      %p138 = por %p136, %p137
      %p139 = scmp.ne.s32.totalorder %s125, %s126
      %p140 = scmp.eq.s32.totalorder %s17, 15
      %p141 = por %p139, %p140
      %p143 = scmp.ne.s32.totalorder %s126, %s142
      %p144 = scmp.eq.s32.totalorder %s17, 0
      %p145 = por %p143, %p144
      %s146 = ssub.s32 %s19, %s33
      %p147 = scmp.eq.s32.totalorder %s146, 0
      %s149 = sadd.s32 %s148, 1
      %s150 = scalar_select %p147, %s148, %s149
      %p153 = pneg %p147
      %p154 = scmp.eq.s32.totalorder %s11, 15
      %p155 = por %p153, %p154
      %p156 = scmp.ne.s32.totalorder %s148, %s151
      %p157 = scmp.eq.s32.totalorder %s11, 0
      %p158 = por %p156, %p157
      %p159 = scmp.ne.s32.totalorder %s148, %s151
      %p160 = scmp.eq.s32.totalorder %s16, 15
      %p161 = por %p159, %p160
      %p162 = scmp.ne.s32.totalorder %s151, %s152
      %p163 = scmp.eq.s32.totalorder %s16, 0
      %p164 = por %p162, %p163
      %p165 = scmp.ne.s32.totalorder %s151, %s152
      %p166 = scmp.eq.s32.totalorder %s17, 15
      %p167 = por %p165, %p166
      %p169 = scmp.ne.s32.totalorder %s152, %s168
      %p170 = scmp.eq.s32.totalorder %s17, 0
      %p171 = por %p169, %p170
      %s172 = ssub.s32 %s18, %s37
      %s173 = ssub.s32 %s19, %s33
      %s174 = sor.u32 %s172, %s173
      %p175 = scmp.eq.s32.totalorder %s174, 0
      %s177 = sadd.s32 %s176, 1
      %s178 = scalar_select %p175, %s176, %s177
      %p181 = pneg %p175
      %p182 = scmp.eq.s32.totalorder %s11, 15
      %p183 = por %p181, %p182
      %p184 = scmp.ne.s32.totalorder %s176, %s179
      %p185 = scmp.eq.s32.totalorder %s11, 0
      %p186 = por %p184, %p185
      %p187 = scmp.ne.s32.totalorder %s176, %s179
      %p188 = scmp.eq.s32.totalorder %s16, 15
      %p189 = por %p187, %p188
      %p190 = scmp.ne.s32.totalorder %s179, %s180
      %p191 = scmp.eq.s32.totalorder %s16, 0
      %p192 = por %p190, %p191
      %p193 = scmp.ne.s32.totalorder %s179, %s180
      %p194 = scmp.eq.s32.totalorder %s17, 15
      %p195 = por %p193, %p194
      %p197 = scmp.ne.s32.totalorder %s180, %s196
      %p198 = scmp.eq.s32.totalorder %s17, 0
      %p199 = por %p197, %p198
      %p200 = scmp.le.s32.totalorder 1, %s11
      %p201 = scmp.lt.s32.totalorder %s11, 17
      %p202 = pnand %p200, %p201
      %p203 = pneg %p202
      // Predicated region
      $region9: #{discriminator_forward.6} parent=5 // pred_check
        _
      $region10: #{discriminator_forward.6} parent=5 // pred_check_branch
        %205 = sbr.rel (%p202) target = $region12
      $region11: #{discriminator_forward.6} parent=5 // pred_region
        %s206 = ssub.s32 %s11, 1
      $region12: #{discriminator_forward.6} parent=5 // pred_fallthru
        _
      %p207 = scmp.lt.s32.totalorder %s11, 16
      // Predicated region
      $region13: #{discriminator_forward.6} parent=5 // pred_check
        %p208 = pneg %p207
      $region14: #{discriminator_forward.6} parent=5 // pred_check_branch
        %210 = sbr.rel (%p208) target = $region16
      $region15: #{discriminator_forward.6} parent=5 // pred_region
        // Predicated region
        $region17: #{discriminator_forward.6} parent=15 // pred_check
          %p211 = pneg %p52
        $region18: #{discriminator_forward.6} parent=15 // pred_check_branch
          %213 = sbr.rel (%p211) target = $region20
        $region19: #{discriminator_forward.6} parent=15 // pred_region
          %s214 = smul.u32 4, %s20
          %p215 = scmp.lt.s32.totalorder %s18, 0
          %s216 = scalar_select %p215, %s18, 0
          %p217 = scmp.lt.s32.totalorder %s214, 15
          %s218 = scalar_select %p217, %s214, 15
          %s219 = smul.addr %s216, 16
          %s220 = sadd.s32 %s218, %s219
          %s221 = smul.addr %s220, 2
          %s222 = scalar_lea.vmem %s0, %s221
          %s223 = smul.u32 4, %s20
        $region20: #{discriminator_forward.6} parent=15 // pred_fallthru
          _
        // Predicated region
        $region21: #{discriminator_forward.6} parent=15 // pred_check
          %p224 = pneg %p78
        $region22: #{discriminator_forward.6} parent=15 // pred_check_branch
          %226 = sbr.rel (%p224) target = $region24
        $region23: #{discriminator_forward.6} parent=15 // pred_region
          %s227 = smul.u32 4, %s20
          %p228 = scmp.lt.s32.totalorder %s227, 15
          %s229 = scalar_select %p228, %s227, 15
          %s230 = scalar_lea.vmem %s1, %s229
          %s231 = smul.u32 4, %s20
        $region24: #{discriminator_forward.6} parent=15 // pred_fallthru
          _
        // Predicated region
        $region25: #{discriminator_forward.6} parent=15 // pred_check
          %p232 = pneg %p104
        $region26: #{discriminator_forward.6} parent=15 // pred_check_branch
          %234 = sbr.rel (%p232) target = $region28
        $region27: #{discriminator_forward.6} parent=15 // pred_region
          %s235 = smul.u32 4, %s20
          %p236 = scmp.lt.s32.totalorder %s235, 15
          %s237 = scalar_select %p236, %s235, 15
          %s238 = scalar_lea.vmem %s2, %s237
          %s239 = smul.u32 4, %s20
        $region28: #{discriminator_forward.6} parent=15 // pred_fallthru
          _
        // Predicated region
        $region29: #{discriminator_forward.6} parent=15 // pred_check
          %p240 = pneg %p132
        $region30: #{discriminator_forward.6} parent=15 // pred_check_branch
          %242 = sbr.rel (%p240) target = $region32
        $region31: #{discriminator_forward.6} parent=15 // pred_region
          %s243 = sand.u32 %s122, 1
          %s244 = sand.u32 %s122, 1
          %s245 = smul.addr %s244, 512
          %s246 = scalar_lea.vmem [#allocation3], %s245
          %s247 = smul.u32 64, %s20
          %s248 = smul.u32 2, %s19
          %s249 = smul.addr %s247, 8
          %s250 = sadd.s32 %s248, %s249
          %s251 = smul.addr %s250, 4
          %s252 = scalar_lea.vmem %s3, %s251
          // Predicated region
          $region33: #{discriminator_forward.6} parent=31 // pred_check
            _
          $region34: #{discriminator_forward.6} parent=31 // pred_check_branch
            %254 = sbr.rel (0) target = $region36
          $region35: #{discriminator_forward.6} parent=31 // pred_region
            // Predicated region
            $region37: #{discriminator_forward.6} parent=35 // pred_check
              _
            $region38: #{discriminator_forward.6} parent=35 // pred_check_branch
              %256 = sbr.rel (0) target = $region40
            $region39: #{discriminator_forward.6} parent=35 // pred_region
              // Predicated region
              $region52: #{discriminator_forward.6} parent=39 // pred_check
                _
              $region53: #{discriminator_forward.6} parent=39 // pred_check_branch
                %398 = sbr.rel (0) target = $region55
              $region54: #{discriminator_forward.6} parent=39 // pred_region
                loop: start=0, step=1, limit=1
                $region56: #{discriminator_forward.6} parent=54 // loop_pre_header
                  _
                $region57: #{discriminator_forward.6} parent=54 // loop_header
                  %s400 = sphi 0, %s404
                  %p401 = scmp.ge.s32.totalorder %s400, 1
                  %s405 = sphi %s252, %s252
                  %s406 = sphi %s246, %s246
                $region58: #{discriminator_forward.6} parent=54 // loop_header_branch
                  %403 = sbr.rel (%p401) target = $region62
                $region59: #{discriminator_forward.6} parent=54 // loop_body
                  %v407 = vld [vmem:[%s405] sm:$0xff]
                  %408 = vst [vmem:[%s406] sm:$0xff] %v407
                  %v409 = vld [vmem:[%s405 + $0x20] sm:$0xff]
                  %410 = vst [vmem:[%s406 + $0x8] sm:$0xff] %v409
                  %v411 = vld [vmem:[%s405 + $0x40] sm:$0xff]
                  %412 = vst [vmem:[%s406 + $0x10] sm:$0xff] %v411
                  %v413 = vld [vmem:[%s405 + $0x60] sm:$0xff]
                  %414 = vst [vmem:[%s406 + $0x18] sm:$0xff] %v413
                  %v415 = vld [vmem:[%s405 + $0x80] sm:$0xff]
                  %416 = vst [vmem:[%s406 + $0x20] sm:$0xff] %v415
                  %v417 = vld [vmem:[%s405 + $0xa0] sm:$0xff]
                  %418 = vst [vmem:[%s406 + $0x28] sm:$0xff] %v417
                  %v419 = vld [vmem:[%s405 + $0xc0] sm:$0xff]
                  %420 = vst [vmem:[%s406 + $0x30] sm:$0xff] %v419
                  %v421 = vld [vmem:[%s405 + $0xe0] sm:$0xff]
                  %422 = vst [vmem:[%s406 + $0x38] sm:$0xff] %v421
                  %v423 = vld [vmem:[%s405 + $0x100] sm:$0xff]
                  %424 = vst [vmem:[%s406 + $0x40] sm:$0xff] %v423
                  %v425 = vld [vmem:[%s405 + $0x120] sm:$0xff]
                  %426 = vst [vmem:[%s406 + $0x48] sm:$0xff] %v425
                  %v427 = vld [vmem:[%s405 + $0x140] sm:$0xff]
                  %428 = vst [vmem:[%s406 + $0x50] sm:$0xff] %v427
                  %v429 = vld [vmem:[%s405 + $0x160] sm:$0xff]
                  %430 = vst [vmem:[%s406 + $0x58] sm:$0xff] %v429
                  %v431 = vld [vmem:[%s405 + $0x180] sm:$0xff]
                  %432 = vst [vmem:[%s406 + $0x60] sm:$0xff] %v431
                  %v433 = vld [vmem:[%s405 + $0x1a0] sm:$0xff]
                  %434 = vst [vmem:[%s406 + $0x68] sm:$0xff] %v433
                  %v435 = vld [vmem:[%s405 + $0x1c0] sm:$0xff]
                  %436 = vst [vmem:[%s406 + $0x70] sm:$0xff] %v435
                  %v437 = vld [vmem:[%s405 + $0x1e0] sm:$0xff]
                  %438 = vst [vmem:[%s406 + $0x78] sm:$0xff] %v437
                  %v439 = vld [vmem:[%s405 + $0x200] sm:$0xff]
                  %440 = vst [vmem:[%s406 + $0x80] sm:$0xff] %v439
                  %v441 = vld [vmem:[%s405 + $0x220] sm:$0xff]
                  %442 = vst [vmem:[%s406 + $0x88] sm:$0xff] %v441
                  %v443 = vld [vmem:[%s405 + $0x240] sm:$0xff]
                  %444 = vst [vmem:[%s406 + $0x90] sm:$0xff] %v443
                  %v445 = vld [vmem:[%s405 + $0x260] sm:$0xff]
                  %446 = vst [vmem:[%s406 + $0x98] sm:$0xff] %v445
                  %v447 = vld [vmem:[%s405 + $0x280] sm:$0xff]
                  %448 = vst [vmem:[%s406 + $0xa0] sm:$0xff] %v447
                  %v449 = vld [vmem:[%s405 + $0x2a0] sm:$0xff]
                  %450 = vst [vmem:[%s406 + $0xa8] sm:$0xff] %v449
                  %v451 = vld [vmem:[%s405 + $0x2c0] sm:$0xff]
                  %452 = vst [vmem:[%s406 + $0xb0] sm:$0xff] %v451
                  %v453 = vld [vmem:[%s405 + $0x2e0] sm:$0xff]
                  %454 = vst [vmem:[%s406 + $0xb8] sm:$0xff] %v453
                  %v455 = vld [vmem:[%s405 + $0x300] sm:$0xff]
                  %456 = vst [vmem:[%s406 + $0xc0] sm:$0xff] %v455
                  %v457 = vld [vmem:[%s405 + $0x320] sm:$0xff]
                  %458 = vst [vmem:[%s406 + $0xc8] sm:$0xff] %v457
                  %v459 = vld [vmem:[%s405 + $0x340] sm:$0xff]
                  %460 = vst [vmem:[%s406 + $0xd0] sm:$0xff] %v459
                  %v461 = vld [vmem:[%s405 + $0x360] sm:$0xff]
                  %462 = vst [vmem:[%s406 + $0xd8] sm:$0xff] %v461
                  %v463 = vld [vmem:[%s405 + $0x380] sm:$0xff]
                  %464 = vst [vmem:[%s406 + $0xe0] sm:$0xff] %v463
                  %v465 = vld [vmem:[%s405 + $0x3a0] sm:$0xff]
                  %466 = vst [vmem:[%s406 + $0xe8] sm:$0xff] %v465
                  %v467 = vld [vmem:[%s405 + $0x3c0] sm:$0xff]
                  %468 = vst [vmem:[%s406 + $0xf0] sm:$0xff] %v467
                  %v469 = vld [vmem:[%s405 + $0x3e0] sm:$0xff]
                  %470 = vst [vmem:[%s406 + $0xf8] sm:$0xff] %v469
                  %v471 = vld [vmem:[%s405 + $0x400] sm:$0xff]
                  %472 = vst [vmem:[%s406 + $0x100] sm:$0xff] %v471
                  %v473 = vld [vmem:[%s405 + $0x420] sm:$0xff]
                  %474 = vst [vmem:[%s406 + $0x108] sm:$0xff] %v473
                  %v475 = vld [vmem:[%s405 + $0x440] sm:$0xff]
                  %476 = vst [vmem:[%s406 + $0x110] sm:$0xff] %v475
                  %v477 = vld [vmem:[%s405 + $0x460] sm:$0xff]
                  %478 = vst [vmem:[%s406 + $0x118] sm:$0xff] %v477
                  %v479 = vld [vmem:[%s405 + $0x480] sm:$0xff]
                  %480 = vst [vmem:[%s406 + $0x120] sm:$0xff] %v479
                  %v481 = vld [vmem:[%s405 + $0x4a0] sm:$0xff]
                  %482 = vst [vmem:[%s406 + $0x128] sm:$0xff] %v481
                  %v483 = vld [vmem:[%s405 + $0x4c0] sm:$0xff]
                  %484 = vst [vmem:[%s406 + $0x130] sm:$0xff] %v483
                  %v485 = vld [vmem:[%s405 + $0x4e0] sm:$0xff]
                  %486 = vst [vmem:[%s406 + $0x138] sm:$0xff] %v485
                  %v487 = vld [vmem:[%s405 + $0x500] sm:$0xff]
                  %488 = vst [vmem:[%s406 + $0x140] sm:$0xff] %v487
                  %v489 = vld [vmem:[%s405 + $0x520] sm:$0xff]
                  %490 = vst [vmem:[%s406 + $0x148] sm:$0xff] %v489
                  %v491 = vld [vmem:[%s405 + $0x540] sm:$0xff]
                  %492 = vst [vmem:[%s406 + $0x150] sm:$0xff] %v491
                  %v493 = vld [vmem:[%s405 + $0x560] sm:$0xff]
                  %494 = vst [vmem:[%s406 + $0x158] sm:$0xff] %v493
                  %v495 = vld [vmem:[%s405 + $0x580] sm:$0xff]
                  %496 = vst [vmem:[%s406 + $0x160] sm:$0xff] %v495
                  %v497 = vld [vmem:[%s405 + $0x5a0] sm:$0xff]
                  %498 = vst [vmem:[%s406 + $0x168] sm:$0xff] %v497
                  %v499 = vld [vmem:[%s405 + $0x5c0] sm:$0xff]
                  %500 = vst [vmem:[%s406 + $0x170] sm:$0xff] %v499
                  %v501 = vld [vmem:[%s405 + $0x5e0] sm:$0xff]
                  %502 = vst [vmem:[%s406 + $0x178] sm:$0xff] %v501
                  %v503 = vld [vmem:[%s405 + $0x600] sm:$0xff]
                  %504 = vst [vmem:[%s406 + $0x180] sm:$0xff] %v503
                  %v505 = vld [vmem:[%s405 + $0x620] sm:$0xff]
                  %506 = vst [vmem:[%s406 + $0x188] sm:$0xff] %v505
                  %v507 = vld [vmem:[%s405 + $0x640] sm:$0xff]
                  %508 = vst [vmem:[%s406 + $0x190] sm:$0xff] %v507
                  %v509 = vld [vmem:[%s405 + $0x660] sm:$0xff]
                  %510 = vst [vmem:[%s406 + $0x198] sm:$0xff] %v509
                  %v511 = vld [vmem:[%s405 + $0x680] sm:$0xff]
                  %512 = vst [vmem:[%s406 + $0x1a0] sm:$0xff] %v511
                  %v513 = vld [vmem:[%s405 + $0x6a0] sm:$0xff]
                  %514 = vst [vmem:[%s406 + $0x1a8] sm:$0xff] %v513
                  %v515 = vld [vmem:[%s405 + $0x6c0] sm:$0xff]
                  %516 = vst [vmem:[%s406 + $0x1b0] sm:$0xff] %v515
                  %v517 = vld [vmem:[%s405 + $0x6e0] sm:$0xff]
                  %518 = vst [vmem:[%s406 + $0x1b8] sm:$0xff] %v517
                  %v519 = vld [vmem:[%s405 + $0x700] sm:$0xff]
                  %520 = vst [vmem:[%s406 + $0x1c0] sm:$0xff] %v519
                  %v521 = vld [vmem:[%s405 + $0x720] sm:$0xff]
                  %522 = vst [vmem:[%s406 + $0x1c8] sm:$0xff] %v521
                  %v523 = vld [vmem:[%s405 + $0x740] sm:$0xff]
                  %524 = vst [vmem:[%s406 + $0x1d0] sm:$0xff] %v523
                  %v525 = vld [vmem:[%s405 + $0x760] sm:$0xff]
                  %526 = vst [vmem:[%s406 + $0x1d8] sm:$0xff] %v525
                  %v527 = vld [vmem:[%s405 + $0x780] sm:$0xff]
                  %528 = vst [vmem:[%s406 + $0x1e0] sm:$0xff] %v527
                  %v529 = vld [vmem:[%s405 + $0x7a0] sm:$0xff]
                  %530 = vst [vmem:[%s406 + $0x1e8] sm:$0xff] %v529
                  %v531 = vld [vmem:[%s405 + $0x7c0] sm:$0xff]
                  %532 = vst [vmem:[%s406 + $0x1f0] sm:$0xff] %v531
                  %v533 = vld [vmem:[%s405 + $0x7e0] sm:$0xff]
                  %534 = vst [vmem:[%s406 + $0x1f8] sm:$0xff] %v533
                $region60: #{discriminator_forward.6} parent=54 // loop_footer
                  %s404 = sadd.s32 1, %s400
                $region61: #{discriminator_forward.6} parent=54 // loop_footer_branch
                  %399 = sbr.rel target = $region57
                $region62: #{discriminator_forward.6} parent=54 // loop_exit
                  _
              $region55: #{discriminator_forward.6} parent=39 // pred_fallthru
                _
              // Predicated region
              $region63: #{discriminator_forward.6} parent=39 // pred_check
                _
              $region64: #{discriminator_forward.6} parent=39 // pred_check_branch
                %536 = sbr.rel target = $region66
              $region65: #{discriminator_forward.6} parent=39 // pred_region
                _
              $region66: #{discriminator_forward.6} parent=39 // pred_fallthru
                _
            $region40: #{discriminator_forward.6} parent=35 // pred_fallthru
              _
            // Predicated region
            $region41: #{discriminator_forward.6} parent=35 // pred_check
              _
            $region42: #{discriminator_forward.6} parent=35 // pred_check_branch
              %258 = sbr.rel target = $region44
            $region43: #{discriminator_forward.6} parent=35 // pred_region
              %s260 = ssub.s32 256, 1
              loop: start=0, step=1, limit=1
              $region45: #{discriminator_forward.6} parent=43 // loop_pre_header
                _
              $region46: #{discriminator_forward.6} parent=43 // loop_header
                %s262 = sphi 0, %s266
                %p263 = scmp.ge.s32.totalorder %s262, 1
                %s267 = sphi %s252, %s252
                %s268 = sphi %s246, %s246
              $region47: #{discriminator_forward.6} parent=43 // loop_header_branch
                %265 = sbr.rel (%p263) target = $region51
              $region48: #{discriminator_forward.6} parent=43 // loop_body
                %v269 = vld [vmem:[%s267] sm:%s260]
                %270 = vst [vmem:[%s268] sm:%s260] %v269
                %v271 = vld [vmem:[%s267 + $0x20] sm:%s260]
                %272 = vst [vmem:[%s268 + $0x8] sm:%s260] %v271
                %v273 = vld [vmem:[%s267 + $0x40] sm:%s260]
                %274 = vst [vmem:[%s268 + $0x10] sm:%s260] %v273
                %v275 = vld [vmem:[%s267 + $0x60] sm:%s260]
                %276 = vst [vmem:[%s268 + $0x18] sm:%s260] %v275
                %v277 = vld [vmem:[%s267 + $0x80] sm:%s260]
                %278 = vst [vmem:[%s268 + $0x20] sm:%s260] %v277
                %v279 = vld [vmem:[%s267 + $0xa0] sm:%s260]
                %280 = vst [vmem:[%s268 + $0x28] sm:%s260] %v279
                %v281 = vld [vmem:[%s267 + $0xc0] sm:%s260]
                %282 = vst [vmem:[%s268 + $0x30] sm:%s260] %v281
                %v283 = vld [vmem:[%s267 + $0xe0] sm:%s260]
                %284 = vst [vmem:[%s268 + $0x38] sm:%s260] %v283
                %v285 = vld [vmem:[%s267 + $0x100] sm:%s260]
                %286 = vst [vmem:[%s268 + $0x40] sm:%s260] %v285
                %v287 = vld [vmem:[%s267 + $0x120] sm:%s260]
                %288 = vst [vmem:[%s268 + $0x48] sm:%s260] %v287
                %v289 = vld [vmem:[%s267 + $0x140] sm:%s260]
                %290 = vst [vmem:[%s268 + $0x50] sm:%s260] %v289
                %v291 = vld [vmem:[%s267 + $0x160] sm:%s260]
                %292 = vst [vmem:[%s268 + $0x58] sm:%s260] %v291
                %v293 = vld [vmem:[%s267 + $0x180] sm:%s260]
                %294 = vst [vmem:[%s268 + $0x60] sm:%s260] %v293
                %v295 = vld [vmem:[%s267 + $0x1a0] sm:%s260]
                %296 = vst [vmem:[%s268 + $0x68] sm:%s260] %v295
                %v297 = vld [vmem:[%s267 + $0x1c0] sm:%s260]
                %298 = vst [vmem:[%s268 + $0x70] sm:%s260] %v297
                %v299 = vld [vmem:[%s267 + $0x1e0] sm:%s260]
                %300 = vst [vmem:[%s268 + $0x78] sm:%s260] %v299
                %v301 = vld [vmem:[%s267 + $0x200] sm:%s260]
                %302 = vst [vmem:[%s268 + $0x80] sm:%s260] %v301
                %v303 = vld [vmem:[%s267 + $0x220] sm:%s260]
                %304 = vst [vmem:[%s268 + $0x88] sm:%s260] %v303
                %v305 = vld [vmem:[%s267 + $0x240] sm:%s260]
                %306 = vst [vmem:[%s268 + $0x90] sm:%s260] %v305
                %v307 = vld [vmem:[%s267 + $0x260] sm:%s260]
                %308 = vst [vmem:[%s268 + $0x98] sm:%s260] %v307
                %v309 = vld [vmem:[%s267 + $0x280] sm:%s260]
                %310 = vst [vmem:[%s268 + $0xa0] sm:%s260] %v309
                %v311 = vld [vmem:[%s267 + $0x2a0] sm:%s260]
                %312 = vst [vmem:[%s268 + $0xa8] sm:%s260] %v311
                %v313 = vld [vmem:[%s267 + $0x2c0] sm:%s260]
                %314 = vst [vmem:[%s268 + $0xb0] sm:%s260] %v313
                %v315 = vld [vmem:[%s267 + $0x2e0] sm:%s260]
                %316 = vst [vmem:[%s268 + $0xb8] sm:%s260] %v315
                %v317 = vld [vmem:[%s267 + $0x300] sm:%s260]
                %318 = vst [vmem:[%s268 + $0xc0] sm:%s260] %v317
                %v319 = vld [vmem:[%s267 + $0x320] sm:%s260]
                %320 = vst [vmem:[%s268 + $0xc8] sm:%s260] %v319
                %v321 = vld [vmem:[%s267 + $0x340] sm:%s260]
                %322 = vst [vmem:[%s268 + $0xd0] sm:%s260] %v321
                %v323 = vld [vmem:[%s267 + $0x360] sm:%s260]
                %324 = vst [vmem:[%s268 + $0xd8] sm:%s260] %v323
                %v325 = vld [vmem:[%s267 + $0x380] sm:%s260]
                %326 = vst [vmem:[%s268 + $0xe0] sm:%s260] %v325
                %v327 = vld [vmem:[%s267 + $0x3a0] sm:%s260]
                %328 = vst [vmem:[%s268 + $0xe8] sm:%s260] %v327
                %v329 = vld [vmem:[%s267 + $0x3c0] sm:%s260]
                %330 = vst [vmem:[%s268 + $0xf0] sm:%s260] %v329
                %v331 = vld [vmem:[%s267 + $0x3e0] sm:%s260]
                %332 = vst [vmem:[%s268 + $0xf8] sm:%s260] %v331
                %v333 = vld [vmem:[%s267 + $0x400] sm:%s260]
                %334 = vst [vmem:[%s268 + $0x100] sm:%s260] %v333
                %v335 = vld [vmem:[%s267 + $0x420] sm:%s260]
                %336 = vst [vmem:[%s268 + $0x108] sm:%s260] %v335
                %v337 = vld [vmem:[%s267 + $0x440] sm:%s260]
                %338 = vst [vmem:[%s268 + $0x110] sm:%s260] %v337
                %v339 = vld [vmem:[%s267 + $0x460] sm:%s260]
                %340 = vst [vmem:[%s268 + $0x118] sm:%s260] %v339
                %v341 = vld [vmem:[%s267 + $0x480] sm:%s260]
                %342 = vst [vmem:[%s268 + $0x120] sm:%s260] %v341
                %v343 = vld [vmem:[%s267 + $0x4a0] sm:%s260]
                %344 = vst [vmem:[%s268 + $0x128] sm:%s260] %v343
                %v345 = vld [vmem:[%s267 + $0x4c0] sm:%s260]
                %346 = vst [vmem:[%s268 + $0x130] sm:%s260] %v345
                %v347 = vld [vmem:[%s267 + $0x4e0] sm:%s260]
                %348 = vst [vmem:[%s268 + $0x138] sm:%s260] %v347
                %v349 = vld [vmem:[%s267 + $0x500] sm:%s260]
                %350 = vst [vmem:[%s268 + $0x140] sm:%s260] %v349
                %v351 = vld [vmem:[%s267 + $0x520] sm:%s260]
                %352 = vst [vmem:[%s268 + $0x148] sm:%s260] %v351
                %v353 = vld [vmem:[%s267 + $0x540] sm:%s260]
                %354 = vst [vmem:[%s268 + $0x150] sm:%s260] %v353
                %v355 = vld [vmem:[%s267 + $0x560] sm:%s260]
                %356 = vst [vmem:[%s268 + $0x158] sm:%s260] %v355
                %v357 = vld [vmem:[%s267 + $0x580] sm:%s260]
                %358 = vst [vmem:[%s268 + $0x160] sm:%s260] %v357
                %v359 = vld [vmem:[%s267 + $0x5a0] sm:%s260]
                %360 = vst [vmem:[%s268 + $0x168] sm:%s260] %v359
                %v361 = vld [vmem:[%s267 + $0x5c0] sm:%s260]
                %362 = vst [vmem:[%s268 + $0x170] sm:%s260] %v361
                %v363 = vld [vmem:[%s267 + $0x5e0] sm:%s260]
                %364 = vst [vmem:[%s268 + $0x178] sm:%s260] %v363
                %v365 = vld [vmem:[%s267 + $0x600] sm:%s260]
                %366 = vst [vmem:[%s268 + $0x180] sm:%s260] %v365
                %v367 = vld [vmem:[%s267 + $0x620] sm:%s260]
                %368 = vst [vmem:[%s268 + $0x188] sm:%s260] %v367
                %v369 = vld [vmem:[%s267 + $0x640] sm:%s260]
                %370 = vst [vmem:[%s268 + $0x190] sm:%s260] %v369
                %v371 = vld [vmem:[%s267 + $0x660] sm:%s260]
                %372 = vst [vmem:[%s268 + $0x198] sm:%s260] %v371
                %v373 = vld [vmem:[%s267 + $0x680] sm:%s260]
                %374 = vst [vmem:[%s268 + $0x1a0] sm:%s260] %v373
                %v375 = vld [vmem:[%s267 + $0x6a0] sm:%s260]
                %376 = vst [vmem:[%s268 + $0x1a8] sm:%s260] %v375
                %v377 = vld [vmem:[%s267 + $0x6c0] sm:%s260]
                %378 = vst [vmem:[%s268 + $0x1b0] sm:%s260] %v377
                %v379 = vld [vmem:[%s267 + $0x6e0] sm:%s260]
                %380 = vst [vmem:[%s268 + $0x1b8] sm:%s260] %v379
                %v381 = vld [vmem:[%s267 + $0x700] sm:%s260]
                %382 = vst [vmem:[%s268 + $0x1c0] sm:%s260] %v381
                %v383 = vld [vmem:[%s267 + $0x720] sm:%s260]
                %384 = vst [vmem:[%s268 + $0x1c8] sm:%s260] %v383
                %v385 = vld [vmem:[%s267 + $0x740] sm:%s260]
                %386 = vst [vmem:[%s268 + $0x1d0] sm:%s260] %v385
                %v387 = vld [vmem:[%s267 + $0x760] sm:%s260]
                %388 = vst [vmem:[%s268 + $0x1d8] sm:%s260] %v387
                %v389 = vld [vmem:[%s267 + $0x780] sm:%s260]
                %390 = vst [vmem:[%s268 + $0x1e0] sm:%s260] %v389
                %v391 = vld [vmem:[%s267 + $0x7a0] sm:%s260]
                %392 = vst [vmem:[%s268 + $0x1e8] sm:%s260] %v391
                %v393 = vld [vmem:[%s267 + $0x7c0] sm:%s260]
                %394 = vst [vmem:[%s268 + $0x1f0] sm:%s260] %v393
                %v395 = vld [vmem:[%s267 + $0x7e0] sm:%s260]
                %396 = vst [vmem:[%s268 + $0x1f8] sm:%s260] %v395
              $region49: #{discriminator_forward.6} parent=43 // loop_footer
                %s266 = sadd.s32 1, %s262
              $region50: #{discriminator_forward.6} parent=43 // loop_footer_branch
                %261 = sbr.rel target = $region46
              $region51: #{discriminator_forward.6} parent=43 // loop_exit
                _
            $region44: #{discriminator_forward.6} parent=35 // pred_fallthru
              _
          $region36: #{discriminator_forward.6} parent=31 // pred_fallthru
            _
          %537 = vnop
        $region32: #{discriminator_forward.6} parent=15 // pred_fallthru
          _
        // Predicated region
        $region67: #{discriminator_forward.6} parent=15 // pred_check
          %p538 = pneg %p158
        $region68: #{discriminator_forward.6} parent=15 // pred_check_branch
          %540 = sbr.rel (%p538) target = $region70
        $region69: #{discriminator_forward.6} parent=15 // pred_region
          %s541 = smul.u32 2, %s19
          %p542 = scmp.lt.s32.totalorder %s541, 7
          %s543 = scalar_select %p542, %s541, 7
          %s544 = scalar_lea.vmem %s4, %s543
          %s545 = smul.u32 2, %s19
        $region70: #{discriminator_forward.6} parent=15 // pred_fallthru
          _
      $region16: #{discriminator_forward.6} parent=5 // pred_fallthru
        _
      %p546 = scmp.le.s32.totalorder 1, %s11
      %p547 = scmp.lt.s32.totalorder %s11, 17
      %p548 = pnand %p546, %p547
      %p549 = pneg %p548
      // Predicated region
      $region71: #{discriminator_forward.6} parent=5 // pred_check
        _
      $region72: #{discriminator_forward.6} parent=5 // pred_check_branch
        %551 = sbr.rel (%p548) target = $region74
      $region73: #{discriminator_forward.6} parent=5 // pred_region
        %s552 = ssub.s32 %s11, 1
        %s553 = sand.u32 %s125, 1
        %s554 = sand.u32 %s125, 1
        %s555 = smul.addr %s554, 512
        %s556 = scalar_lea.vmem [#allocation3], %s555
        // Predicated region
        $region75: #{discriminator_forward.6} parent=73 // pred_check
          %p557 = pneg %p138
        $region76: #{discriminator_forward.6} parent=73 // pred_check_branch
          %559 = sbr.rel (%p557) target = $region78
        $region77: #{discriminator_forward.6} parent=73 // pred_region
          _
        $region78: #{discriminator_forward.6} parent=73 // pred_fallthru
          _
        %s560 = smul.u32 4, %s23
        %p561 = scmp.lt.s32.totalorder %s21, 0
        %s562 = scalar_select %p561, %s21, 0
        %p563 = scmp.lt.s32.totalorder %s560, 15
        %s564 = scalar_select %p563, %s560, 15
        %s565 = smul.addr %s562, 16
        %s566 = sadd.s32 %s564, %s565
        %s567 = smul.addr %s566, 2
        %s568 = scalar_lea.vmem %s0, %s567
        %p569 = pneg %p58
        %p570 = pneg %p55
        %s571 = smul.u32 4, %s23
        %p572 = scmp.lt.s32.totalorder %s571, 15
        %s573 = scalar_select %p572, %s571, 15
        %s574 = scalar_lea.vmem %s1, %s573
        %p575 = pneg %p84
        %p576 = pneg %p81
        %s577 = smul.u32 4, %s23
        %p578 = scmp.lt.s32.totalorder %s577, 15
        %s579 = scalar_select %p578, %s577, 15
        %s580 = scalar_lea.vmem %s2, %s579
        %p581 = pneg %p110
        %p582 = pneg %p107
        %s583 = sand.u32 %s125, 1
        %s584 = sand.u32 %s125, 1
        %s585 = smul.addr %s584, 512
        %s586 = scalar_lea.vmem [#allocation3], %s585
        %p587 = pneg %p138
        %p588 = pneg %p135
        %s589 = smul.u32 2, %s22
        %p590 = scmp.lt.s32.totalorder %s589, 7
        %s591 = scalar_select %p590, %s589, 7
        %s592 = scalar_lea.vmem %s4, %s591
        %p593 = pneg %p164
        %p594 = pneg %p161
        %p595 = pneg %p192
        %p596 = pneg %p189
        %s597 = smul.u32 2, %s22
        %p598 = scmp.lt.s32.totalorder %s21, 0
        %s599 = scalar_select %p598, %s21, 0
        %p600 = scmp.lt.s32.totalorder %s597, 7
        %s601 = scalar_select %p600, %s597, 7
        %s602 = smul.addr %s599, 8
        %s603 = sadd.s32 %s601, %s602
        %s604 = smul.addr %s603, 2
        %s605 = scalar_lea.vmem %s5, %s604
        %s606 = smul.u32 4, %s23
        %p607 = scmp.lt.s32.totalorder %s21, 0
        %s608 = scalar_select %p607, %s21, 0
        %p609 = scmp.lt.s32.totalorder %s606, 15
        %s610 = scalar_select %p609, %s606, 15
        %s611 = smul.addr %s608, 16
        %s612 = sadd.s32 %s610, %s611
        %s613 = smul.addr %s612, 2
        %s614 = scalar_lea.vmem %s0, %s613
        %s615 = smul.u32 4, %s23
        %s616 = smul.u32 4, %s23
        %p617 = scmp.lt.s32.totalorder %s616, 15
        %s618 = scalar_select %p617, %s616, 15
        %s619 = scalar_lea.vmem %s1, %s618
        %s620 = smul.u32 4, %s23
        %s621 = smul.u32 4, %s23
        %p622 = scmp.lt.s32.totalorder %s621, 15
        %s623 = scalar_select %p622, %s621, 15
        %s624 = scalar_lea.vmem %s2, %s623
        %s625 = smul.u32 4, %s23
        %s626 = smul.u32 64, %s23
        %s627 = smul.u32 2, %s22
        %s628 = smul.u32 2, %s22
        %p629 = scmp.lt.s32.totalorder %s628, 7
        %s630 = scalar_select %p629, %s628, 7
        %s631 = scalar_lea.vmem %s4, %s630
        %s632 = smul.u32 2, %s22
        %s633 = smul.u32 2, %s22
        %p634 = scmp.lt.s32.totalorder %s21, 0
        %s635 = scalar_select %p634, %s21, 0
        %p636 = scmp.lt.s32.totalorder %s633, 7
        %s637 = scalar_select %p636, %s633, 7
        %s638 = smul.addr %s635, 8
        %s639 = sadd.s32 %s637, %s638
        %s640 = smul.addr %s639, 2
        %s641 = scalar_lea.vmem %s5, %s640
        %s642 = smul.u32 2, %s22
        %p643 = scmp.eq.s32.totalorder %s23, 0
        // Predicated region
        $region79: #{discriminator_forward.6} parent=73 // pred_check
          %p644 = pneg %p643
        $region80: #{discriminator_forward.6} parent=73 // pred_check_branch
          %646 = sbr.rel (%p644) target = $region82
        $region81: #{discriminator_forward.6} parent=73 // pred_region
          %647 = vst [vmem:[#allocation2] sm:$0xff] 0.0
        $region82: #{discriminator_forward.6} parent=73 // pred_fallthru
          _
        %v648 = vld [vmem:[%s614] sm:$0xff]
        %v649 = vunpack.c.l.bf16 %v648
        %v650 = vunpack.c.h.bf16 %v648
        %v651 = vld [vmem:[%s619] sm:$0xf]
        %v653 = vperm.slane %v651, 0
        %v654 = vperm.slane %v651, 1
        %v655 = vperm.slane %v651, 2
        %v656 = vperm.slane %v651, 3
        %v657 = vrot.slane %v654, 4
        %v658 = vrot.slane %v656, 4
        %vm659 = vcmask 1043456
        %v660 = vsel %vm659, %v653, %v657
        %v661 = vsel %vm659, %v655, %v658
        %v664 = vmul.f32 %v649, %v660
        %v665 = vmul.f32 %v650, %v661
        %v666 = vld [vmem:[%s624] sm:$0xf]
        %v668 = vperm.slane %v666, 0
        %v669 = vperm.slane %v666, 1
        %v670 = vperm.slane %v666, 2
        %v671 = vperm.slane %v666, 3
        %v672 = vrot.slane %v669, 4
        %v673 = vrot.slane %v671, 4
        %v674 = vsel %vm659, %v668, %v672
        %v675 = vsel %vm659, %v670, %v673
        %v678 = vadd.f32 %v664, %v674
        %v679 = vadd.f32 %v665, %v675
        %vm680 = vcmp.gt.f32.partialorder %v678, 0.0
        %vm681 = vcmp.gt.f32.partialorder %v679, 0.0
        %v682 = vmul.f32 %v678, 0.2
        %v683 = vmul.f32 %v679, 0.2
        %v684 = vsel %vm680, %v678, %v682
        %v685 = vsel %vm681, %v679, %v683
        %688 = vst [vmem:[#allocation1] ss:$2 sm:$0xff] %v684
        %s689 = scalar_lea.vmem [#allocation1], 16
        %690 = vst [vmem:[%s689] ss:$2 sm:$0xff] %v685
        %v691 = vld.sshfl [vmem:[#allocation1] sm:$0xff pattern:$0x75316420]
        %v692 = vld.sshfl [vmem:[#allocation1 + $0x8] sm:$0xff pattern:$0x75316420]
        %v693 = vld.sshfl [vmem:[#allocation1 + $0x10] sm:$0xff pattern:$0x75316420]
        %v694 = vld.sshfl [vmem:[#allocation1 + $0x18] sm:$0xff pattern:$0x75316420]
        %v699 = vpack.c.bf16 %v691, %v691
        %v700 = vpack.c.bf16 %v692, %v692
        %v701 = vpack.c.bf16 %v693, %v693
        %v702 = vpack.c.bf16 %v694, %v694
        %v703 = vld [vmem:[#allocation2] sm:$0xff]
        %v704 = vld [vmem:[%s556] sm:$0xff]
        %v705 = vld [vmem:[%s556 + $0x8] sm:$0xff]
        %v706 = vld [vmem:[%s556 + $0x10] sm:$0xff]
        %v707 = vld [vmem:[%s556 + $0x18] sm:$0xff]
        %v708 = vld [vmem:[%s556 + $0x20] sm:$0xff]
        %v709 = vld [vmem:[%s556 + $0x28] sm:$0xff]
        %v710 = vld [vmem:[%s556 + $0x30] sm:$0xff]
        %v711 = vld [vmem:[%s556 + $0x38] sm:$0xff]
        %v712 = vld [vmem:[%s556 + $0x40] sm:$0xff]
        %v713 = vld [vmem:[%s556 + $0x48] sm:$0xff]
        %v714 = vld [vmem:[%s556 + $0x50] sm:$0xff]
        %v715 = vld [vmem:[%s556 + $0x58] sm:$0xff]
        %v716 = vld [vmem:[%s556 + $0x60] sm:$0xff]
        %v717 = vld [vmem:[%s556 + $0x68] sm:$0xff]
        %v718 = vld [vmem:[%s556 + $0x70] sm:$0xff]
        %v719 = vld [vmem:[%s556 + $0x78] sm:$0xff]
        %v720 = vld [vmem:[%s556 + $0x80] sm:$0xff]
        %v721 = vld [vmem:[%s556 + $0x88] sm:$0xff]
        %v722 = vld [vmem:[%s556 + $0x90] sm:$0xff]
        %v723 = vld [vmem:[%s556 + $0x98] sm:$0xff]
        %v724 = vld [vmem:[%s556 + $0xa0] sm:$0xff]
        %v725 = vld [vmem:[%s556 + $0xa8] sm:$0xff]
        %v726 = vld [vmem:[%s556 + $0xb0] sm:$0xff]
        %v727 = vld [vmem:[%s556 + $0xb8] sm:$0xff]
        %v728 = vld [vmem:[%s556 + $0xc0] sm:$0xff]
        %v729 = vld [vmem:[%s556 + $0xc8] sm:$0xff]
        %v730 = vld [vmem:[%s556 + $0xd0] sm:$0xff]
        %v731 = vld [vmem:[%s556 + $0xd8] sm:$0xff]
        %v732 = vld [vmem:[%s556 + $0xe0] sm:$0xff]
        %v733 = vld [vmem:[%s556 + $0xe8] sm:$0xff]
        %v734 = vld [vmem:[%s556 + $0xf0] sm:$0xff]
        %v735 = vld [vmem:[%s556 + $0xf8] sm:$0xff]
        %v736 = vld [vmem:[%s556 + $0x100] sm:$0xff]
        %v737 = vld [vmem:[%s556 + $0x108] sm:$0xff]
        %v738 = vld [vmem:[%s556 + $0x110] sm:$0xff]
        %v739 = vld [vmem:[%s556 + $0x118] sm:$0xff]
        %v740 = vld [vmem:[%s556 + $0x120] sm:$0xff]
        %v741 = vld [vmem:[%s556 + $0x128] sm:$0xff]
        %v742 = vld [vmem:[%s556 + $0x130] sm:$0xff]
        %v743 = vld [vmem:[%s556 + $0x138] sm:$0xff]
        %v744 = vld [vmem:[%s556 + $0x140] sm:$0xff]
        %v745 = vld [vmem:[%s556 + $0x148] sm:$0xff]
        %v746 = vld [vmem:[%s556 + $0x150] sm:$0xff]
        %v747 = vld [vmem:[%s556 + $0x158] sm:$0xff]
        %v748 = vld [vmem:[%s556 + $0x160] sm:$0xff]
        %v749 = vld [vmem:[%s556 + $0x168] sm:$0xff]
        %v750 = vld [vmem:[%s556 + $0x170] sm:$0xff]
        %v751 = vld [vmem:[%s556 + $0x178] sm:$0xff]
        %v752 = vld [vmem:[%s556 + $0x180] sm:$0xff]
        %v753 = vld [vmem:[%s556 + $0x188] sm:$0xff]
        %v754 = vld [vmem:[%s556 + $0x190] sm:$0xff]
        %v755 = vld [vmem:[%s556 + $0x198] sm:$0xff]
        %v756 = vld [vmem:[%s556 + $0x1a0] sm:$0xff]
        %v757 = vld [vmem:[%s556 + $0x1a8] sm:$0xff]
        %v758 = vld [vmem:[%s556 + $0x1b0] sm:$0xff]
        %v759 = vld [vmem:[%s556 + $0x1b8] sm:$0xff]
        %v760 = vld [vmem:[%s556 + $0x1c0] sm:$0xff]
        %v761 = vld [vmem:[%s556 + $0x1c8] sm:$0xff]
        %v762 = vld [vmem:[%s556 + $0x1d0] sm:$0xff]
        %v763 = vld [vmem:[%s556 + $0x1d8] sm:$0xff]
        %v764 = vld [vmem:[%s556 + $0x1e0] sm:$0xff]
        %v765 = vld [vmem:[%s556 + $0x1e8] sm:$0xff]
        %v766 = vld [vmem:[%s556 + $0x1f0] sm:$0xff]
        %v767 = vld [vmem:[%s556 + $0x1f8] sm:$0xff]
        %v832 = vunpack.c.l.b16 %v704
        %v833 = vunpack.c.h.b16 %v704
        %v834 = vunpack.c.l.b16 %v705
        %v835 = vunpack.c.h.b16 %v705
        %v836 = vunpack.c.l.b16 %v706
        %v837 = vunpack.c.h.b16 %v706
        %v838 = vunpack.c.l.b16 %v707
        %v839 = vunpack.c.h.b16 %v707
        %v840 = vunpack.c.l.b16 %v708
        %v841 = vunpack.c.h.b16 %v708
        %v842 = vunpack.c.l.b16 %v709
        %v843 = vunpack.c.h.b16 %v709
        %v844 = vunpack.c.l.b16 %v710
        %v845 = vunpack.c.h.b16 %v710
        %v846 = vunpack.c.l.b16 %v711
        %v847 = vunpack.c.h.b16 %v711
        %v848 = vunpack.c.l.b16 %v712
        %v849 = vunpack.c.h.b16 %v712
        %v850 = vunpack.c.l.b16 %v713
        %v851 = vunpack.c.h.b16 %v713
        %v852 = vunpack.c.l.b16 %v714
        %v853 = vunpack.c.h.b16 %v714
        %v854 = vunpack.c.l.b16 %v715
        %v855 = vunpack.c.h.b16 %v715
        %v856 = vunpack.c.l.b16 %v716
        %v857 = vunpack.c.h.b16 %v716
        %v858 = vunpack.c.l.b16 %v717
        %v859 = vunpack.c.h.b16 %v717
        %v860 = vunpack.c.l.b16 %v718
        %v861 = vunpack.c.h.b16 %v718
        %v862 = vunpack.c.l.b16 %v719
        %v863 = vunpack.c.h.b16 %v719
        %v864 = vunpack.c.l.b16 %v720
        %v865 = vunpack.c.h.b16 %v720
        %v866 = vunpack.c.l.b16 %v721
        %v867 = vunpack.c.h.b16 %v721
        %v868 = vunpack.c.l.b16 %v722
        %v869 = vunpack.c.h.b16 %v722
        %v870 = vunpack.c.l.b16 %v723
        %v871 = vunpack.c.h.b16 %v723
        %v872 = vunpack.c.l.b16 %v724
        %v873 = vunpack.c.h.b16 %v724
        %v874 = vunpack.c.l.b16 %v725
        %v875 = vunpack.c.h.b16 %v725
        %v876 = vunpack.c.l.b16 %v726
        %v877 = vunpack.c.h.b16 %v726
        %v878 = vunpack.c.l.b16 %v727
        %v879 = vunpack.c.h.b16 %v727
        %v880 = vunpack.c.l.b16 %v728
        %v881 = vunpack.c.h.b16 %v728
        %v882 = vunpack.c.l.b16 %v729
        %v883 = vunpack.c.h.b16 %v729
        %v884 = vunpack.c.l.b16 %v730
        %v885 = vunpack.c.h.b16 %v730
        %v886 = vunpack.c.l.b16 %v731
        %v887 = vunpack.c.h.b16 %v731
        %v888 = vunpack.c.l.b16 %v732
        %v889 = vunpack.c.h.b16 %v732
        %v890 = vunpack.c.l.b16 %v733
        %v891 = vunpack.c.h.b16 %v733
        %v892 = vunpack.c.l.b16 %v734
        %v893 = vunpack.c.h.b16 %v734
        %v894 = vunpack.c.l.b16 %v735
        %v895 = vunpack.c.h.b16 %v735
        %v896 = vunpack.c.l.b16 %v736
        %v897 = vunpack.c.h.b16 %v736
        %v898 = vunpack.c.l.b16 %v737
        %v899 = vunpack.c.h.b16 %v737
        %v900 = vunpack.c.l.b16 %v738
        %v901 = vunpack.c.h.b16 %v738
        %v902 = vunpack.c.l.b16 %v739
        %v903 = vunpack.c.h.b16 %v739
        %v904 = vunpack.c.l.b16 %v740
        %v905 = vunpack.c.h.b16 %v740
        %v906 = vunpack.c.l.b16 %v741
        %v907 = vunpack.c.h.b16 %v741
        %v908 = vunpack.c.l.b16 %v742
        %v909 = vunpack.c.h.b16 %v742
        %v910 = vunpack.c.l.b16 %v743
        %v911 = vunpack.c.h.b16 %v743
        %v912 = vunpack.c.l.b16 %v744
        %v913 = vunpack.c.h.b16 %v744
        %v914 = vunpack.c.l.b16 %v745
        %v915 = vunpack.c.h.b16 %v745
        %v916 = vunpack.c.l.b16 %v746
        %v917 = vunpack.c.h.b16 %v746
        %v918 = vunpack.c.l.b16 %v747
        %v919 = vunpack.c.h.b16 %v747
        %v920 = vunpack.c.l.b16 %v748
        %v921 = vunpack.c.h.b16 %v748
        %v922 = vunpack.c.l.b16 %v749
        %v923 = vunpack.c.h.b16 %v749
        %v924 = vunpack.c.l.b16 %v750
        %v925 = vunpack.c.h.b16 %v750
        %v926 = vunpack.c.l.b16 %v751
        %v927 = vunpack.c.h.b16 %v751
        %v928 = vunpack.c.l.b16 %v752
        %v929 = vunpack.c.h.b16 %v752
        %v930 = vunpack.c.l.b16 %v753
        %v931 = vunpack.c.h.b16 %v753
        %v932 = vunpack.c.l.b16 %v754
        %v933 = vunpack.c.h.b16 %v754
        %v934 = vunpack.c.l.b16 %v755
        %v935 = vunpack.c.h.b16 %v755
        %v936 = vunpack.c.l.b16 %v756
        %v937 = vunpack.c.h.b16 %v756
        %v938 = vunpack.c.l.b16 %v757
        %v939 = vunpack.c.h.b16 %v757
        %v940 = vunpack.c.l.b16 %v758
        %v941 = vunpack.c.h.b16 %v758
        %v942 = vunpack.c.l.b16 %v759
        %v943 = vunpack.c.h.b16 %v759
        %v944 = vunpack.c.l.b16 %v760
        %v945 = vunpack.c.h.b16 %v760
        %v946 = vunpack.c.l.b16 %v761
        %v947 = vunpack.c.h.b16 %v761
        %v948 = vunpack.c.l.b16 %v762
        %v949 = vunpack.c.h.b16 %v762
        %v950 = vunpack.c.l.b16 %v763
        %v951 = vunpack.c.h.b16 %v763
        %v952 = vunpack.c.l.b16 %v764
        %v953 = vunpack.c.h.b16 %v764
        %v954 = vunpack.c.l.b16 %v765
        %v955 = vunpack.c.h.b16 %v765
        %v956 = vunpack.c.l.b16 %v766
        %v957 = vunpack.c.h.b16 %v766
        %v958 = vunpack.c.l.b16 %v767
        %v959 = vunpack.c.h.b16 %v767
        %v960 = vpack.c.b16 %v834, %v832
        %v961 = vpack.c.b16 %v835, %v833
        %v962 = vpack.c.b16 %v838, %v836
        %v963 = vpack.c.b16 %v839, %v837
        %v964 = vpack.c.b16 %v842, %v840
        %v965 = vpack.c.b16 %v843, %v841
        %v966 = vpack.c.b16 %v846, %v844
        %v967 = vpack.c.b16 %v847, %v845
        %v968 = vpack.c.b16 %v850, %v848
        %v969 = vpack.c.b16 %v851, %v849
        %v970 = vpack.c.b16 %v854, %v852
        %v971 = vpack.c.b16 %v855, %v853
        %v972 = vpack.c.b16 %v858, %v856
        %v973 = vpack.c.b16 %v859, %v857
        %v974 = vpack.c.b16 %v862, %v860
        %v975 = vpack.c.b16 %v863, %v861
        %v976 = vpack.c.b16 %v866, %v864
        %v977 = vpack.c.b16 %v867, %v865
        %v978 = vpack.c.b16 %v870, %v868
        %v979 = vpack.c.b16 %v871, %v869
        %v980 = vpack.c.b16 %v874, %v872
        %v981 = vpack.c.b16 %v875, %v873
        %v982 = vpack.c.b16 %v878, %v876
        %v983 = vpack.c.b16 %v879, %v877
        %v984 = vpack.c.b16 %v882, %v880
        %v985 = vpack.c.b16 %v883, %v881
        %v986 = vpack.c.b16 %v886, %v884
        %v987 = vpack.c.b16 %v887, %v885
        %v988 = vpack.c.b16 %v890, %v888
        %v989 = vpack.c.b16 %v891, %v889
        %v990 = vpack.c.b16 %v894, %v892
        %v991 = vpack.c.b16 %v895, %v893
        %v992 = vpack.c.b16 %v898, %v896
        %v993 = vpack.c.b16 %v899, %v897
        %v994 = vpack.c.b16 %v902, %v900
        %v995 = vpack.c.b16 %v903, %v901
        %v996 = vpack.c.b16 %v906, %v904
        %v997 = vpack.c.b16 %v907, %v905
        %v998 = vpack.c.b16 %v910, %v908
        %v999 = vpack.c.b16 %v911, %v909
        %v1000 = vpack.c.b16 %v914, %v912
        %v1001 = vpack.c.b16 %v915, %v913
        %v1002 = vpack.c.b16 %v918, %v916
        %v1003 = vpack.c.b16 %v919, %v917
        %v1004 = vpack.c.b16 %v922, %v920
        %v1005 = vpack.c.b16 %v923, %v921
        %v1006 = vpack.c.b16 %v926, %v924
        %v1007 = vpack.c.b16 %v927, %v925
        %v1008 = vpack.c.b16 %v930, %v928
        %v1009 = vpack.c.b16 %v931, %v929
        %v1010 = vpack.c.b16 %v934, %v932
        %v1011 = vpack.c.b16 %v935, %v933
        %v1012 = vpack.c.b16 %v938, %v936
        %v1013 = vpack.c.b16 %v939, %v937
        %v1014 = vpack.c.b16 %v942, %v940
        %v1015 = vpack.c.b16 %v943, %v941
        %v1016 = vpack.c.b16 %v946, %v944
        %v1017 = vpack.c.b16 %v947, %v945
        %v1018 = vpack.c.b16 %v950, %v948
        %v1019 = vpack.c.b16 %v951, %v949
        %v1020 = vpack.c.b16 %v954, %v952
        %v1021 = vpack.c.b16 %v955, %v953
        %v1022 = vpack.c.b16 %v958, %v956
        %v1023 = vpack.c.b16 %v959, %v957
        %1088 = vmatpush.bf16.msra.mxu0 %v974
        %1089 = vmatpush.bf16.msra.mxu0 %v972
        %1090 = vmatpush.bf16.msra.mxu0 %v970
        %1091 = vmatpush.bf16.msra.mxu0 %v968
        %1092 = vmatpush.bf16.msra.mxu0 %v966
        %1093 = vmatpush.bf16.msra.mxu0 %v964
        %1094 = vmatpush.bf16.msra.mxu0 %v962
        %1095 = vmatpush.bf16.msra.mxu0 %v960
        %1096 = vmatmul.bf16.gmra.mxu0 %v699
        %v1097 = vpop.f32.mrf.mxu0
        %v1098 = vadd.f32 0.0, %v1097
        %v1099 = vpop.f32.mrf.mxu0
        %1100 = vdwg.mxu0
        %1101 = vmatpush.bf16.msra.mxu0 %v990
        %1102 = vmatpush.bf16.msra.mxu0 %v988
        %1103 = vmatpush.bf16.msra.mxu0 %v986
        %1104 = vmatpush.bf16.msra.mxu0 %v984
        %1105 = vmatpush.bf16.msra.mxu0 %v982
        %1106 = vmatpush.bf16.msra.mxu0 %v980
        %1107 = vmatpush.bf16.msra.mxu0 %v978
        %1108 = vmatpush.bf16.msra.mxu0 %v976
        %1109 = vmatmul.bf16.gmra.mxu0 %v700
        %v1110 = vpop.f32.mrf.mxu0
        %v1111 = vadd.f32 %v1098, %v1110
        %v1112 = vpop.f32.mrf.mxu0
        %1113 = vdwg.mxu0
        %1114 = vmatpush.bf16.msra.mxu0 %v1006
        %1115 = vmatpush.bf16.msra.mxu0 %v1004
        %1116 = vmatpush.bf16.msra.mxu0 %v1002
        %1117 = vmatpush.bf16.msra.mxu0 %v1000
        %1118 = vmatpush.bf16.msra.mxu0 %v998
        %1119 = vmatpush.bf16.msra.mxu0 %v996
        %1120 = vmatpush.bf16.msra.mxu0 %v994
        %1121 = vmatpush.bf16.msra.mxu0 %v992
        %1122 = vmatmul.bf16.gmra.mxu0 %v701
        %v1123 = vpop.f32.mrf.mxu0
        %v1124 = vadd.f32 %v1111, %v1123
        %v1125 = vpop.f32.mrf.mxu0
        %1126 = vdwg.mxu0
        %1127 = vmatpush.bf16.msra.mxu0 %v1022
        %1128 = vmatpush.bf16.msra.mxu0 %v1020
        %1129 = vmatpush.bf16.msra.mxu0 %v1018
        %1130 = vmatpush.bf16.msra.mxu0 %v1016
        %1131 = vmatpush.bf16.msra.mxu0 %v1014
        %1132 = vmatpush.bf16.msra.mxu0 %v1012
        %1133 = vmatpush.bf16.msra.mxu0 %v1010
        %1134 = vmatpush.bf16.msra.mxu0 %v1008
        %1135 = vmatmul.bf16.gmra.mxu0 %v702
        %v1136 = vpop.f32.mrf.mxu0
        %v1137 = vadd.f32 %v1124, %v1136
        %v1138 = vpop.f32.mrf.mxu0
        %1139 = vdwg.mxu0
        %1140 = vmatpush.bf16.msra.mxu0 %v975
        %1141 = vmatpush.bf16.msra.mxu0 %v973
        %1142 = vmatpush.bf16.msra.mxu0 %v971
        %1143 = vmatpush.bf16.msra.mxu0 %v969
        %1144 = vmatpush.bf16.msra.mxu0 %v967
        %1145 = vmatpush.bf16.msra.mxu0 %v965
        %1146 = vmatpush.bf16.msra.mxu0 %v963
        %1147 = vmatpush.bf16.msra.mxu0 %v961
        %1148 = vmatmul.bf16.gmra.mxu0 %v699
        %v1149 = vpop.f32.mrf.mxu0
        %v1150 = vadd.f32 0.0, %v1149
        %v1151 = vpop.f32.mrf.mxu0
        %1152 = vdwg.mxu0
        %1153 = vmatpush.bf16.msra.mxu0 %v991
        %1154 = vmatpush.bf16.msra.mxu0 %v989
        %1155 = vmatpush.bf16.msra.mxu0 %v987
        %1156 = vmatpush.bf16.msra.mxu0 %v985
        %1157 = vmatpush.bf16.msra.mxu0 %v983
        %1158 = vmatpush.bf16.msra.mxu0 %v981
        %1159 = vmatpush.bf16.msra.mxu0 %v979
        %1160 = vmatpush.bf16.msra.mxu0 %v977
        %1161 = vmatmul.bf16.gmra.mxu0 %v700
        %v1162 = vpop.f32.mrf.mxu0
        %v1163 = vadd.f32 %v1150, %v1162
        %v1164 = vpop.f32.mrf.mxu0
        %1165 = vdwg.mxu0
        %1166 = vmatpush.bf16.msra.mxu0 %v1007
        %1167 = vmatpush.bf16.msra.mxu0 %v1005
        %1168 = vmatpush.bf16.msra.mxu0 %v1003
        %1169 = vmatpush.bf16.msra.mxu0 %v1001
        %1170 = vmatpush.bf16.msra.mxu0 %v999
        %1171 = vmatpush.bf16.msra.mxu0 %v997
        %1172 = vmatpush.bf16.msra.mxu0 %v995
        %1173 = vmatpush.bf16.msra.mxu0 %v993
        %1174 = vmatmul.bf16.gmra.mxu0 %v701
        %v1175 = vpop.f32.mrf.mxu0
        %v1176 = vadd.f32 %v1163, %v1175
        %v1177 = vpop.f32.mrf.mxu0
        %1178 = vdwg.mxu0
        %1179 = vmatpush.bf16.msra.mxu0 %v1023
        %1180 = vmatpush.bf16.msra.mxu0 %v1021
        %1181 = vmatpush.bf16.msra.mxu0 %v1019
        %1182 = vmatpush.bf16.msra.mxu0 %v1017
        %1183 = vmatpush.bf16.msra.mxu0 %v1015
        %1184 = vmatpush.bf16.msra.mxu0 %v1013
        %1185 = vmatpush.bf16.msra.mxu0 %v1011
        %1186 = vmatpush.bf16.msra.mxu0 %v1009
        %1187 = vmatmul.bf16.gmra.mxu0 %v702
        %v1188 = vpop.f32.mrf.mxu0
        %v1189 = vadd.f32 %v1176, %v1188
        %v1190 = vpop.f32.mrf.mxu0
        %1191 = vdwg.mxu0
        %v1194 = vrot.slane %v1189, 4
        %v1195 = vsel %vm659, %v1137, %v1194
        %v1197 = vadd.f32 %v703, %v1195
        %1198 = vst [vmem:[#allocation2] sm:$0xff] %v1197
        %p1199 = scmp.eq.s32.totalorder %s23, 3
        // Predicated region
        $region83: #{discriminator_forward.6} parent=73 // pred_check
          %p1200 = pneg %p1199
        $region84: #{discriminator_forward.6} parent=73 // pred_check_branch
          %1202 = sbr.rel (%p1200) target = $region86
        $region85: #{discriminator_forward.6} parent=73 // pred_region
          %v1203 = vld [vmem:[#allocation2] sm:$0xff]
          %v1204 = vld [vmem:[%s631] sm:$0x3]
          %v1206 = vperm.slane %v1204, 0
          %v1207 = vperm.slane %v1204, 1
          %v1208 = vrot.slane %v1207, 4
          %v1209 = vsel %vm659, %v1206, %v1208
          %v1211 = vadd.f32 %v1203, %v1209
          %1213 = vst [vmem:[#allocation1] ss:$2 sm:$0xff] %v1211
          %v1214 = vld.sshfl [vmem:[#allocation1] sm:$0xff pattern:$0x75316420]
          %v1215 = vld.sshfl [vmem:[#allocation1 + $0x8] sm:$0xff pattern:$0x75316420]
          %v1218 = vpack.c.bf16 %v1215, %v1214
          %v1220 = vrot.slane %v1218, 2
          %vm1221 = vcmask 1041408
          %v1224 = vsel %vm1221, %v1218, %v1220
          %1226 = vst [vmem:[%s641] sm:$0xf] %v1224
        $region86: #{discriminator_forward.6} parent=73 // pred_fallthru
          _
        %s1227 = smul.u32 2, %s22
        %p1228 = scmp.lt.s32.totalorder %s21, 0
        %s1229 = scalar_select %p1228, %s21, 0
        %p1230 = scmp.lt.s32.totalorder %s1227, 7
        %s1231 = scalar_select %p1230, %s1227, 7
        %s1232 = smul.addr %s1229, 8
        %s1233 = sadd.s32 %s1231, %s1232
        %s1234 = smul.addr %s1233, 2
        %s1235 = scalar_lea.vmem %s5, %s1234
        // Predicated region
        $region87: #{discriminator_forward.6} parent=73 // pred_check
          %p1236 = pneg %p189
        $region88: #{discriminator_forward.6} parent=73 // pred_check_branch
          %1238 = sbr.rel (%p1236) target = $region90
        $region89: #{discriminator_forward.6} parent=73 // pred_region
          %s1239 = smul.u32 2, %s22
        $region90: #{discriminator_forward.6} parent=73 // pred_fallthru
          _
      $region74: #{discriminator_forward.6} parent=5 // pred_fallthru
        _
      %p1240 = scmp.le.s32.totalorder 2, %s11
      // Predicated region
      $region91: #{discriminator_forward.6} parent=5 // pred_check
        %p1241 = pneg %p1240
      $region92: #{discriminator_forward.6} parent=5 // pred_check_branch
        %1243 = sbr.rel (%p1241) target = $region94
      $region93: #{discriminator_forward.6} parent=5 // pred_region
        %s1244 = ssub.s32 %s11, 2
        // Predicated region
        $region95: #{discriminator_forward.6} parent=93 // pred_check
          %p1245 = pneg %p195
        $region96: #{discriminator_forward.6} parent=93 // pred_check_branch
          %1247 = sbr.rel (%p1245) target = $region98
        $region97: #{discriminator_forward.6} parent=93 // pred_region
          %s1248 = smul.u32 2, %s25
          %p1249 = scmp.lt.s32.totalorder %s24, 0
          %s1250 = scalar_select %p1249, %s24, 0
          %p1251 = scmp.lt.s32.totalorder %s1248, 7
          %s1252 = scalar_select %p1251, %s1248, 7
          %s1253 = smul.addr %s1250, 8
          %s1254 = sadd.s32 %s1252, %s1253
          %s1255 = smul.addr %s1254, 2
          %s1256 = scalar_lea.vmem %s5, %s1255
        $region98: #{discriminator_forward.6} parent=93 // pred_fallthru
          _
      $region94: #{discriminator_forward.6} parent=5 // pred_fallthru
        _
    $region6: #{discriminator_forward.6} parent=1 // loop_footer
      %s15 = sadd.s32 1, %s11
    $region7: #{discriminator_forward.6} parent=1 // loop_footer_branch
      %10 = sbr.rel target = $region3
    $region8: #{discriminator_forward.6} parent=1 // loop_exit
      _

// kernel: discriminator_forward.7
$region0: #{discriminator_forward.7}
  #allocation0 [shape = 'u32[]', space=smem, size = 0x4, offset = 0x4, fixed_abs, tag = 'smem constant byte address 0x4 - core index']
  #allocation1 [shape = 'u32[72,128]{1,0:T(1,128)}', space=vmem, size = 0x9000, scoped, tag = 'internal scratch']
  #allocation2 [shape = 'f32[4,128]{1,0:T(4,128)}', space=vmem, size = 0x800, scoped, tag = 'scratch operand']
  %s0 = inlined_call_operand.vmem [shape: bf16[4,1024], index: 0, kind: input, shape index: {}]
  %s1 = inlined_call_operand.vmem [shape: f32[1,1024], index: 1, kind: input, shape index: {}]
  %s2 = inlined_call_operand.vmem [shape: f32[1,1024], index: 2, kind: input, shape index: {}]
  %s3 = inlined_call_operand.vmem [shape: bf16[1024,128], index: 3, kind: input, shape index: {}]
  %s4 = inlined_call_operand.vmem [shape: f32[1,128], index: 4, kind: input, shape index: {}]
  %s5 = inlined_call_operand.vmem [shape: f32[1,128], index: 5, kind: input, shape index: {}]
  %s6 = inlined_call_operand.vmem [shape: f32[4,128], index: 6, kind: output, shape index: {}]
  %s7 = sld [smem:[#allocation0]]
  $region65: #{discriminator_forward.7} parent=0
    _
  %s9 = ssub.s32 1, %s7
  %s10 = scalar_select 0, %s9, %s7
  loop: start=0, step=1, limit=4
  $region2: #{discriminator_forward.7} parent=0 // loop_pre_header
    _
  $region3: #{discriminator_forward.7} parent=0 // loop_header
    %s12 = sphi 0, %s16
    %p13 = scmp.ge.s32.totalorder %s12, 4
    %s19 = sphi 0, %s38
    %s20 = sphi 0, %s34
    %s21 = sphi 0, %s30
    %s22 = sphi 0, %s19
    %s23 = sphi 0, %s20
    %s24 = sphi 0, %s21
    %s25 = sphi 0, %s22
    %s26 = sphi 0, %s23
    %s27 = sphi 0, %s24
    %s43 = sphi 0, %s45
    %s46 = sphi 0, %s43
    %s47 = sphi 0, %s46
    %s63 = sphi 0, %s47
    %s69 = sphi 0, %s71
    %s72 = sphi 0, %s69
    %s73 = sphi 0, %s72
    %s89 = sphi 0, %s73
    %s95 = sphi 0, %s97
    %s98 = sphi 0, %s95
    %s99 = sphi 0, %s98
    %s115 = sphi 0, %s99
    %s123 = sphi 0, %s125
    %s126 = sphi 0, %s123
    %s127 = sphi 0, %s126
    %s143 = sphi 0, %s127
    %s149 = sphi 0, %s151
    %s152 = sphi 0, %s149
    %s153 = sphi 0, %s152
    %s169 = sphi 0, %s153
    %s175 = sphi 0, %s177
    %s178 = sphi 0, %s175
    %s179 = sphi 0, %s178
    %s195 = sphi 0, %s179
    %s203 = sphi 0, %s205
    %s206 = sphi 0, %s203
    %s207 = sphi 0, %s206
    %s223 = sphi 0, %s207
  $region4: #{discriminator_forward.7} parent=0 // loop_header_branch
    %15 = sbr.rel (%p13) target = $region8
  $region5: #{discriminator_forward.7} parent=0 // loop_body
    %s17 = ssub.s32 %s12, 1
    %s18 = ssub.s32 %s12, 2
    %s28 = sadd.s32 1, %s21
    %p29 = scmp.ge.s32.totalorder %s28, 2
    %s30 = scalar_select %p29, 0, %s28
    %s31 = sadd.s32 1, %s20
    %s32 = scalar_select %p29, %s31, %s20
    %p33 = scmp.ge.s32.totalorder %s32, 1
    %s34 = scalar_select %p33, 0, %s32
    %s35 = sadd.s32 1, %s19
    %s36 = scalar_select %p33, %s35, %s19
    %p37 = scmp.ge.s32.totalorder %s36, 1
    %s38 = scalar_select %p37, 0, %s36
    %s39 = ssub.s32 %s19, %s38
    %s40 = ssub.s32 %s21, %s30
    %s41 = sor.u32 %s39, %s40
    %p42 = scmp.eq.s32.totalorder %s41, 0
    %s44 = sadd.s32 %s43, 1
    %s45 = scalar_select %p42, %s43, %s44
    %p48 = pneg %p42
    %p49 = scmp.eq.s32.totalorder %s12, 1
    %p50 = por %p48, %p49
    %p51 = scmp.ne.s32.totalorder %s43, %s46
    %p52 = scmp.eq.s32.totalorder %s12, 0
    %p53 = por %p51, %p52
    %p54 = scmp.ne.s32.totalorder %s43, %s46
    %p55 = scmp.eq.s32.totalorder %s17, 1
    %p56 = por %p54, %p55
    %p57 = scmp.ne.s32.totalorder %s46, %s47
    %p58 = scmp.eq.s32.totalorder %s17, 0
    %p59 = por %p57, %p58
    %p60 = scmp.ne.s32.totalorder %s46, %s47
    %p61 = scmp.eq.s32.totalorder %s18, 1
    %p62 = por %p60, %p61
    %p64 = scmp.ne.s32.totalorder %s47, %s63
    %p65 = scmp.eq.s32.totalorder %s18, 0
    %p66 = por %p64, %p65
    %s67 = ssub.s32 %s21, %s30
    %p68 = scmp.eq.s32.totalorder %s67, 0
    %s70 = sadd.s32 %s69, 1
    %s71 = scalar_select %p68, %s69, %s70
    %p74 = pneg %p68
    %p75 = scmp.eq.s32.totalorder %s12, 1
    %p76 = por %p74, %p75
    %p77 = scmp.ne.s32.totalorder %s69, %s72
    %p78 = scmp.eq.s32.totalorder %s12, 0
    %p79 = por %p77, %p78
    %p80 = scmp.ne.s32.totalorder %s69, %s72
    %p81 = scmp.eq.s32.totalorder %s17, 1
    %p82 = por %p80, %p81
    %p83 = scmp.ne.s32.totalorder %s72, %s73
    %p84 = scmp.eq.s32.totalorder %s17, 0
    %p85 = por %p83, %p84
    %p86 = scmp.ne.s32.totalorder %s72, %s73
    %p87 = scmp.eq.s32.totalorder %s18, 1
    %p88 = por %p86, %p87
    %p90 = scmp.ne.s32.totalorder %s73, %s89
    %p91 = scmp.eq.s32.totalorder %s18, 0
    %p92 = por %p90, %p91
    %s93 = ssub.s32 %s21, %s30
    %p94 = scmp.eq.s32.totalorder %s93, 0
    %s96 = sadd.s32 %s95, 1
    %s97 = scalar_select %p94, %s95, %s96
    %p100 = pneg %p94
    %p101 = scmp.eq.s32.totalorder %s12, 1
    %p102 = por %p100, %p101
    %p103 = scmp.ne.s32.totalorder %s95, %s98
    %p104 = scmp.eq.s32.totalorder %s12, 0
    %p105 = por %p103, %p104
    %p106 = scmp.ne.s32.totalorder %s95, %s98
    %p107 = scmp.eq.s32.totalorder %s17, 1
    %p108 = por %p106, %p107
    %p109 = scmp.ne.s32.totalorder %s98, %s99
    %p110 = scmp.eq.s32.totalorder %s17, 0
    %p111 = por %p109, %p110
    %p112 = scmp.ne.s32.totalorder %s98, %s99
    %p113 = scmp.eq.s32.totalorder %s18, 1
    %p114 = por %p112, %p113
    %p116 = scmp.ne.s32.totalorder %s99, %s115
    %p117 = scmp.eq.s32.totalorder %s18, 0
    %p118 = por %p116, %p117
    %s119 = ssub.s32 %s21, %s30
    %s120 = ssub.s32 %s20, %s34
    %s121 = sor.u32 %s119, %s120
    %p122 = scmp.eq.s32.totalorder %s121, 0
    %s124 = sadd.s32 %s123, 1
    %s125 = scalar_select %p122, %s123, %s124
    %p128 = pneg %p122
    %p129 = scmp.eq.s32.totalorder %s12, 1
    %p130 = por %p128, %p129
    %p131 = scmp.ne.s32.totalorder %s123, %s126
    %p132 = scmp.eq.s32.totalorder %s12, 0
    %p133 = por %p131, %p132
    %p134 = scmp.ne.s32.totalorder %s123, %s126
    %p135 = scmp.eq.s32.totalorder %s17, 1
    %p136 = por %p134, %p135
    %p137 = scmp.ne.s32.totalorder %s126, %s127
    %p138 = scmp.eq.s32.totalorder %s17, 0
    %p139 = por %p137, %p138
    %p140 = scmp.ne.s32.totalorder %s126, %s127
    %p141 = scmp.eq.s32.totalorder %s18, 1
    %p142 = por %p140, %p141
    %p144 = scmp.ne.s32.totalorder %s127, %s143
    %p145 = scmp.eq.s32.totalorder %s18, 0
    %p146 = por %p144, %p145
    %s147 = ssub.s32 %s20, %s34
    %p148 = scmp.eq.s32.totalorder %s147, 0
    %s150 = sadd.s32 %s149, 1
    %s151 = scalar_select %p148, %s149, %s150
    %p154 = pneg %p148
    %p155 = scmp.eq.s32.totalorder %s12, 1
    %p156 = por %p154, %p155
    %p157 = scmp.ne.s32.totalorder %s149, %s152
    %p158 = scmp.eq.s32.totalorder %s12, 0
    %p159 = por %p157, %p158
    %p160 = scmp.ne.s32.totalorder %s149, %s152
    %p161 = scmp.eq.s32.totalorder %s17, 1
    %p162 = por %p160, %p161
    %p163 = scmp.ne.s32.totalorder %s152, %s153
    %p164 = scmp.eq.s32.totalorder %s17, 0
    %p165 = por %p163, %p164
    %p166 = scmp.ne.s32.totalorder %s152, %s153
    %p167 = scmp.eq.s32.totalorder %s18, 1
    %p168 = por %p166, %p167
    %p170 = scmp.ne.s32.totalorder %s153, %s169
    %p171 = scmp.eq.s32.totalorder %s18, 0
    %p172 = por %p170, %p171
    %s173 = ssub.s32 %s20, %s34
    %p174 = scmp.eq.s32.totalorder %s173, 0
    %s176 = sadd.s32 %s175, 1
    %s177 = scalar_select %p174, %s175, %s176
    %p180 = pneg %p174
    %p181 = scmp.eq.s32.totalorder %s12, 1
    %p182 = por %p180, %p181
    %p183 = scmp.ne.s32.totalorder %s175, %s178
    %p184 = scmp.eq.s32.totalorder %s12, 0
    %p185 = por %p183, %p184
    %p186 = scmp.ne.s32.totalorder %s175, %s178
    %p187 = scmp.eq.s32.totalorder %s17, 1
    %p188 = por %p186, %p187
    %p189 = scmp.ne.s32.totalorder %s178, %s179
    %p190 = scmp.eq.s32.totalorder %s17, 0
    %p191 = por %p189, %p190
    %p192 = scmp.ne.s32.totalorder %s178, %s179
    %p193 = scmp.eq.s32.totalorder %s18, 1
    %p194 = por %p192, %p193
    %p196 = scmp.ne.s32.totalorder %s179, %s195
    %p197 = scmp.eq.s32.totalorder %s18, 0
    %p198 = por %p196, %p197
    %s199 = ssub.s32 %s19, %s38
    %s200 = ssub.s32 %s20, %s34
    %s201 = sor.u32 %s199, %s200
    %p202 = scmp.eq.s32.totalorder %s201, 0
    %s204 = sadd.s32 %s203, 1
    %s205 = scalar_select %p202, %s203, %s204
    %p208 = pneg %p202
    %p209 = scmp.eq.s32.totalorder %s12, 1
    %p210 = por %p208, %p209
    %p211 = scmp.ne.s32.totalorder %s203, %s206
    %p212 = scmp.eq.s32.totalorder %s12, 0
    %p213 = por %p211, %p212
    %p214 = scmp.ne.s32.totalorder %s203, %s206
    %p215 = scmp.eq.s32.totalorder %s17, 1
    %p216 = por %p214, %p215
    %p217 = scmp.ne.s32.totalorder %s206, %s207
    %p218 = scmp.eq.s32.totalorder %s17, 0
    %p219 = por %p217, %p218
    %p220 = scmp.ne.s32.totalorder %s206, %s207
    %p221 = scmp.eq.s32.totalorder %s18, 1
    %p222 = por %p220, %p221
    %p224 = scmp.ne.s32.totalorder %s207, %s223
    %p225 = scmp.eq.s32.totalorder %s18, 0
    %p226 = por %p224, %p225
    %p227 = scmp.le.s32.totalorder 1, %s12
    %p228 = scmp.lt.s32.totalorder %s12, 3
    %p229 = pnand %p227, %p228
    %p230 = pneg %p229
    // Predicated region
    $region9: #{discriminator_forward.7} parent=5 // pred_check
      _
    $region10: #{discriminator_forward.7} parent=5 // pred_check_branch
      %232 = sbr.rel (%p229) target = $region12
    $region11: #{discriminator_forward.7} parent=5 // pred_region
      %s233 = ssub.s32 %s12, 1
      // Predicated region
      $region13: #{discriminator_forward.7} parent=11 // pred_check
        %p234 = pneg %p165
      $region14: #{discriminator_forward.7} parent=11 // pred_check_branch
        %236 = sbr.rel (%p234) target = $region16
      $region15: #{discriminator_forward.7} parent=11 // pred_region
        %p237 = scmp.lt.s32.totalorder %s23, 0
        %s238 = scalar_select %p237, %s23, 0
        %s239 = scalar_lea.vmem %s4, %s238
      $region16: #{discriminator_forward.7} parent=11 // pred_fallthru
        _
      // Predicated region
      $region17: #{discriminator_forward.7} parent=11 // pred_check
        %p240 = pneg %p191
      $region18: #{discriminator_forward.7} parent=11 // pred_check_branch
        %242 = sbr.rel (%p240) target = $region20
      $region19: #{discriminator_forward.7} parent=11 // pred_region
        %p243 = scmp.lt.s32.totalorder %s23, 0
        %s244 = scalar_select %p243, %s23, 0
        %s245 = scalar_lea.vmem %s5, %s244
      $region20: #{discriminator_forward.7} parent=11 // pred_fallthru
        _
    $region12: #{discriminator_forward.7} parent=5 // pred_fallthru
      _
    %p246 = scmp.lt.s32.totalorder %s12, 2
    // Predicated region
    $region21: #{discriminator_forward.7} parent=5 // pred_check
      %p247 = pneg %p246
    $region22: #{discriminator_forward.7} parent=5 // pred_check_branch
      %249 = sbr.rel (%p247) target = $region24
    $region23: #{discriminator_forward.7} parent=5 // pred_region
      // Predicated region
      $region25: #{discriminator_forward.7} parent=23 // pred_check
        %p250 = pneg %p53
      $region26: #{discriminator_forward.7} parent=23 // pred_check_branch
        %252 = sbr.rel (%p250) target = $region28
      $region27: #{discriminator_forward.7} parent=23 // pred_region
        %s253 = smul.u32 4, %s21
        %p254 = scmp.lt.s32.totalorder %s19, 0
        %s255 = scalar_select %p254, %s19, 0
        %p256 = scmp.lt.s32.totalorder %s253, 7
        %s257 = scalar_select %p256, %s253, 7
        %s258 = smul.addr %s255, 8
        %s259 = sadd.s32 %s257, %s258
        %s260 = smul.addr %s259, 2
        %s261 = scalar_lea.vmem %s0, %s260
        %s262 = smul.u32 4, %s21
      $region28: #{discriminator_forward.7} parent=23 // pred_fallthru
        _
      // Predicated region
      $region29: #{discriminator_forward.7} parent=23 // pred_check
        %p263 = pneg %p79
      $region30: #{discriminator_forward.7} parent=23 // pred_check_branch
        %265 = sbr.rel (%p263) target = $region32
      $region31: #{discriminator_forward.7} parent=23 // pred_region
        %s266 = smul.u32 4, %s21
        %p267 = scmp.lt.s32.totalorder %s266, 7
        %s268 = scalar_select %p267, %s266, 7
        %s269 = scalar_lea.vmem %s1, %s268
        %s270 = smul.u32 4, %s21
      $region32: #{discriminator_forward.7} parent=23 // pred_fallthru
        _
      // Predicated region
      $region33: #{discriminator_forward.7} parent=23 // pred_check
        %p271 = pneg %p105
      $region34: #{discriminator_forward.7} parent=23 // pred_check_branch
        %273 = sbr.rel (%p271) target = $region36
      $region35: #{discriminator_forward.7} parent=23 // pred_region
        %s274 = smul.u32 4, %s21
        %p275 = scmp.lt.s32.totalorder %s274, 7
        %s276 = scalar_select %p275, %s274, 7
        %s277 = scalar_lea.vmem %s2, %s276
        %s278 = smul.u32 4, %s21
      $region36: #{discriminator_forward.7} parent=23 // pred_fallthru
        _
      // Predicated region
      $region37: #{discriminator_forward.7} parent=23 // pred_check
        %p279 = pneg %p133
      $region38: #{discriminator_forward.7} parent=23 // pred_check_branch
        %281 = sbr.rel (%p279) target = $region40
      $region39: #{discriminator_forward.7} parent=23 // pred_region
        %s282 = smul.u32 64, %s21
        %p283 = scmp.lt.s32.totalorder %s282, 127
        %s284 = scalar_select %p283, %s282, 127
        %p285 = scmp.lt.s32.totalorder %s20, 0
        %s286 = scalar_select %p285, %s20, 0
        %s287 = sadd.s32 %s286, %s284
        %s288 = smul.addr %s287, 4
        %s289 = scalar_lea.vmem %s3, %s288
        %s290 = smul.u32 64, %s21
      $region40: #{discriminator_forward.7} parent=23 // pred_fallthru
        _
    $region24: #{discriminator_forward.7} parent=5 // pred_fallthru
      _
    %p291 = scmp.le.s32.totalorder 1, %s12
    %p292 = scmp.lt.s32.totalorder %s12, 3
    %p293 = pnand %p291, %p292
    %p294 = pneg %p293
    // Predicated region
    $region41: #{discriminator_forward.7} parent=5 // pred_check
      _
    $region42: #{discriminator_forward.7} parent=5 // pred_check_branch
      %296 = sbr.rel (%p293) target = $region44
    $region43: #{discriminator_forward.7} parent=5 // pred_region
      %s297 = ssub.s32 %s12, 1
      %s298 = smul.u32 4, %s24
      %p299 = scmp.lt.s32.totalorder %s22, 0
      %s300 = scalar_select %p299, %s22, 0
      %p301 = scmp.lt.s32.totalorder %s298, 7
      %s302 = scalar_select %p301, %s298, 7
      %s303 = smul.addr %s300, 8
      %s304 = sadd.s32 %s302, %s303
      %s305 = smul.addr %s304, 2
      %s306 = scalar_lea.vmem %s0, %s305
      %p307 = pneg %p59
      %p308 = pneg %p56
      %s309 = smul.u32 4, %s24
      %p310 = scmp.lt.s32.totalorder %s309, 7
      %s311 = scalar_select %p310, %s309, 7
      %s312 = scalar_lea.vmem %s1, %s311
      %p313 = pneg %p85
      %p314 = pneg %p82
      %s315 = smul.u32 4, %s24
      %p316 = scmp.lt.s32.totalorder %s315, 7
      %s317 = scalar_select %p316, %s315, 7
      %s318 = scalar_lea.vmem %s2, %s317
      %p319 = pneg %p111
      %p320 = pneg %p108
      %s321 = smul.u32 64, %s24
      %p322 = scmp.lt.s32.totalorder %s321, 127
      %s323 = scalar_select %p322, %s321, 127
      %p324 = scmp.lt.s32.totalorder %s23, 0
      %s325 = scalar_select %p324, %s23, 0
      %s326 = sadd.s32 %s325, %s323
      %s327 = smul.addr %s326, 4
      %s328 = scalar_lea.vmem %s3, %s327
      %p329 = pneg %p139
      %p330 = pneg %p136
      %p331 = scmp.lt.s32.totalorder %s23, 0
      %s332 = scalar_select %p331, %s23, 0
      %s333 = scalar_lea.vmem %s4, %s332
      %p334 = pneg %p165
      %p335 = pneg %p162
      %p336 = scmp.lt.s32.totalorder %s23, 0
      %s337 = scalar_select %p336, %s23, 0
      %s338 = scalar_lea.vmem %s5, %s337
      %p339 = pneg %p191
      %p340 = pneg %p188
      %p341 = pneg %p219
      %p342 = pneg %p216
      %p343 = scmp.lt.s32.totalorder %s22, 0
      %s344 = scalar_select %p343, %s22, 0
      %p345 = scmp.lt.s32.totalorder %s23, 0
      %s346 = scalar_select %p345, %s23, 0
      %s347 = sadd.s32 %s346, %s344
      %s348 = smul.addr %s347, 4
      %s349 = scalar_lea.vmem %s6, %s348
      %s350 = smul.u32 4, %s24
      %p351 = scmp.lt.s32.totalorder %s22, 0
      %s352 = scalar_select %p351, %s22, 0
      %p353 = scmp.lt.s32.totalorder %s350, 7
      %s354 = scalar_select %p353, %s350, 7
      %s355 = smul.addr %s352, 8
      %s356 = sadd.s32 %s354, %s355
      %s357 = smul.addr %s356, 2
      %s358 = scalar_lea.vmem %s0, %s357
      %s359 = smul.u32 4, %s24
      %s360 = smul.u32 4, %s24
      %p361 = scmp.lt.s32.totalorder %s360, 7
      %s362 = scalar_select %p361, %s360, 7
      %s363 = scalar_lea.vmem %s1, %s362
      %s364 = smul.u32 4, %s24
      %s365 = smul.u32 4, %s24
      %p366 = scmp.lt.s32.totalorder %s365, 7
      %s367 = scalar_select %p366, %s365, 7
      %s368 = scalar_lea.vmem %s2, %s367
      %s369 = smul.u32 4, %s24
      %s370 = smul.u32 64, %s24
      %p371 = scmp.lt.s32.totalorder %s370, 127
      %s372 = scalar_select %p371, %s370, 127
      %p373 = scmp.lt.s32.totalorder %s23, 0
      %s374 = scalar_select %p373, %s23, 0
      %s375 = sadd.s32 %s374, %s372
      %s376 = smul.addr %s375, 4
      %s377 = scalar_lea.vmem %s3, %s376
      %s378 = smul.u32 64, %s24
      %p379 = scmp.lt.s32.totalorder %s23, 0
      %s380 = scalar_select %p379, %s23, 0
      %s381 = scalar_lea.vmem %s4, %s380
      %p382 = scmp.lt.s32.totalorder %s23, 0
      %s383 = scalar_select %p382, %s23, 0
      %s384 = scalar_lea.vmem %s5, %s383
      %p385 = scmp.lt.s32.totalorder %s22, 0
      %s386 = scalar_select %p385, %s22, 0
      %p387 = scmp.lt.s32.totalorder %s23, 0
      %s388 = scalar_select %p387, %s23, 0
      %s389 = sadd.s32 %s388, %s386
      %s390 = smul.addr %s389, 4
      %s391 = scalar_lea.vmem %s6, %s390
      %p392 = scmp.eq.s32.totalorder %s24, 0
      // Predicated region
      $region45: #{discriminator_forward.7} parent=43 // pred_check
        %p393 = pneg %p392
      $region46: #{discriminator_forward.7} parent=43 // pred_check_branch
        %395 = sbr.rel (%p393) target = $region48
      $region47: #{discriminator_forward.7} parent=43 // pred_region
        %396 = vst [vmem:[#allocation2] sm:$0xf] 0.0
      $region48: #{discriminator_forward.7} parent=43 // pred_fallthru
        _
      %v397 = vld [vmem:[%s358] sm:$0xff]
      %v398 = vunpack.c.l.bf16 %v397
      %v399 = vunpack.c.h.bf16 %v397
      %v400 = vld [vmem:[%s363] sm:$0xf]
      %v402 = vperm.slane %v400, 0
      %v403 = vperm.slane %v400, 1
      %v404 = vperm.slane %v400, 2
      %v405 = vperm.slane %v400, 3
      %v406 = vrot.slane %v403, 4
      %v407 = vrot.slane %v405, 4
      %vm408 = vcmask 1043456
      %v409 = vsel %vm408, %v402, %v406
      %v410 = vsel %vm408, %v404, %v407
      %v413 = vmul.f32 %v398, %v409
      %v414 = vmul.f32 %v399, %v410
      %v415 = vld [vmem:[%s368] sm:$0xf]
      %v417 = vperm.slane %v415, 0
      %v418 = vperm.slane %v415, 1
      %v419 = vperm.slane %v415, 2
      %v420 = vperm.slane %v415, 3
      %v421 = vrot.slane %v418, 4
      %v422 = vrot.slane %v420, 4
      %v423 = vsel %vm408, %v417, %v421
      %v424 = vsel %vm408, %v419, %v422
      %v427 = vadd.f32 %v413, %v423
      %v428 = vadd.f32 %v414, %v424
      %vm429 = vcmp.gt.f32.partialorder %v427, 0.0
      %vm430 = vcmp.gt.f32.partialorder %v428, 0.0
      %v431 = vmul.f32 %v427, 0.2
      %v432 = vmul.f32 %v428, 0.2
      %v433 = vsel %vm429, %v427, %v431
      %v434 = vsel %vm430, %v428, %v432
      %437 = vst [vmem:[#allocation1] ss:$2 sm:$0xff] %v433
      %s438 = scalar_lea.vmem [#allocation1], 16
      %439 = vst [vmem:[%s438] ss:$2 sm:$0xff] %v434
      %v440 = vld.sshfl [vmem:[#allocation1] sm:$0xff pattern:$0x75316420]
      %v441 = vld.sshfl [vmem:[#allocation1 + $0x8] sm:$0xff pattern:$0x75316420]
      %v442 = vld.sshfl [vmem:[#allocation1 + $0x10] sm:$0xff pattern:$0x75316420]
      %v443 = vld.sshfl [vmem:[#allocation1 + $0x18] sm:$0xff pattern:$0x75316420]
      %v448 = vpack.c.bf16 %v440, %v440
      %v449 = vpack.c.bf16 %v441, %v441
      %v450 = vpack.c.bf16 %v442, %v442
      %v451 = vpack.c.bf16 %v443, %v443
      %v452 = vld [vmem:[#allocation2] sm:$0xf]
      %v453 = vld [vmem:[%s377] sm:$0xf]
      %v454 = vld [vmem:[%s377 + $0x4] sm:$0xf]
      %v455 = vld [vmem:[%s377 + $0x8] sm:$0xf]
      %v456 = vld [vmem:[%s377 + $0xc] sm:$0xf]
      %v457 = vld [vmem:[%s377 + $0x10] sm:$0xf]
      %v458 = vld [vmem:[%s377 + $0x14] sm:$0xf]
      %v459 = vld [vmem:[%s377 + $0x18] sm:$0xf]
      %v460 = vld [vmem:[%s377 + $0x1c] sm:$0xf]
      %v461 = vld [vmem:[%s377 + $0x20] sm:$0xf]
      %v462 = vld [vmem:[%s377 + $0x24] sm:$0xf]
      %v463 = vld [vmem:[%s377 + $0x28] sm:$0xf]
      %v464 = vld [vmem:[%s377 + $0x2c] sm:$0xf]
      %v465 = vld [vmem:[%s377 + $0x30] sm:$0xf]
      %v466 = vld [vmem:[%s377 + $0x34] sm:$0xf]
      %v467 = vld [vmem:[%s377 + $0x38] sm:$0xf]
      %v468 = vld [vmem:[%s377 + $0x3c] sm:$0xf]
      %v469 = vld [vmem:[%s377 + $0x40] sm:$0xf]
      %v470 = vld [vmem:[%s377 + $0x44] sm:$0xf]
      %v471 = vld [vmem:[%s377 + $0x48] sm:$0xf]
      %v472 = vld [vmem:[%s377 + $0x4c] sm:$0xf]
      %v473 = vld [vmem:[%s377 + $0x50] sm:$0xf]
      %v474 = vld [vmem:[%s377 + $0x54] sm:$0xf]
      %v475 = vld [vmem:[%s377 + $0x58] sm:$0xf]
      %v476 = vld [vmem:[%s377 + $0x5c] sm:$0xf]
      %v477 = vld [vmem:[%s377 + $0x60] sm:$0xf]
      %v478 = vld [vmem:[%s377 + $0x64] sm:$0xf]
      %v479 = vld [vmem:[%s377 + $0x68] sm:$0xf]
      %v480 = vld [vmem:[%s377 + $0x6c] sm:$0xf]
      %v481 = vld [vmem:[%s377 + $0x70] sm:$0xf]
      %v482 = vld [vmem:[%s377 + $0x74] sm:$0xf]
      %v483 = vld [vmem:[%s377 + $0x78] sm:$0xf]
      %v484 = vld [vmem:[%s377 + $0x7c] sm:$0xf]
      %v485 = vld [vmem:[%s377 + $0x80] sm:$0xf]
      %v486 = vld [vmem:[%s377 + $0x84] sm:$0xf]
      %v487 = vld [vmem:[%s377 + $0x88] sm:$0xf]
      %v488 = vld [vmem:[%s377 + $0x8c] sm:$0xf]
      %v489 = vld [vmem:[%s377 + $0x90] sm:$0xf]
      %v490 = vld [vmem:[%s377 + $0x94] sm:$0xf]
      %v491 = vld [vmem:[%s377 + $0x98] sm:$0xf]
      %v492 = vld [vmem:[%s377 + $0x9c] sm:$0xf]
      %v493 = vld [vmem:[%s377 + $0xa0] sm:$0xf]
      %v494 = vld [vmem:[%s377 + $0xa4] sm:$0xf]
      %v495 = vld [vmem:[%s377 + $0xa8] sm:$0xf]
      %v496 = vld [vmem:[%s377 + $0xac] sm:$0xf]
      %v497 = vld [vmem:[%s377 + $0xb0] sm:$0xf]
      %v498 = vld [vmem:[%s377 + $0xb4] sm:$0xf]
      %v499 = vld [vmem:[%s377 + $0xb8] sm:$0xf]
      %v500 = vld [vmem:[%s377 + $0xbc] sm:$0xf]
      %v501 = vld [vmem:[%s377 + $0xc0] sm:$0xf]
      %v502 = vld [vmem:[%s377 + $0xc4] sm:$0xf]
      %v503 = vld [vmem:[%s377 + $0xc8] sm:$0xf]
      %v504 = vld [vmem:[%s377 + $0xcc] sm:$0xf]
      %v505 = vld [vmem:[%s377 + $0xd0] sm:$0xf]
      %v506 = vld [vmem:[%s377 + $0xd4] sm:$0xf]
      %v507 = vld [vmem:[%s377 + $0xd8] sm:$0xf]
      %v508 = vld [vmem:[%s377 + $0xdc] sm:$0xf]
      %v509 = vld [vmem:[%s377 + $0xe0] sm:$0xf]
      %v510 = vld [vmem:[%s377 + $0xe4] sm:$0xf]
      %v511 = vld [vmem:[%s377 + $0xe8] sm:$0xf]
      %v512 = vld [vmem:[%s377 + $0xec] sm:$0xf]
      %v513 = vld [vmem:[%s377 + $0xf0] sm:$0xf]
      %v514 = vld [vmem:[%s377 + $0xf4] sm:$0xf]
      %v515 = vld [vmem:[%s377 + $0xf8] sm:$0xf]
      %v516 = vld [vmem:[%s377 + $0xfc] sm:$0xf]
      %v581 = vunpack.c.l.b16 %v453
      %v582 = vunpack.c.l.b16 %v454
      %v583 = vunpack.c.l.b16 %v455
      %v584 = vunpack.c.l.b16 %v456
      %v585 = vunpack.c.l.b16 %v457
      %v586 = vunpack.c.l.b16 %v458
      %v587 = vunpack.c.l.b16 %v459
      %v588 = vunpack.c.l.b16 %v460
      %v589 = vunpack.c.l.b16 %v461
      %v590 = vunpack.c.l.b16 %v462
      %v591 = vunpack.c.l.b16 %v463
      %v592 = vunpack.c.l.b16 %v464
      %v593 = vunpack.c.l.b16 %v465
      %v594 = vunpack.c.l.b16 %v466
      %v595 = vunpack.c.l.b16 %v467
      %v596 = vunpack.c.l.b16 %v468
      %v597 = vunpack.c.l.b16 %v469
      %v598 = vunpack.c.l.b16 %v470
      %v599 = vunpack.c.l.b16 %v471
      %v600 = vunpack.c.l.b16 %v472
      %v601 = vunpack.c.l.b16 %v473
      %v602 = vunpack.c.l.b16 %v474
      %v603 = vunpack.c.l.b16 %v475
      %v604 = vunpack.c.l.b16 %v476
      %v605 = vunpack.c.l.b16 %v477
      %v606 = vunpack.c.l.b16 %v478
      %v607 = vunpack.c.l.b16 %v479
      %v608 = vunpack.c.l.b16 %v480
      %v609 = vunpack.c.l.b16 %v481
      %v610 = vunpack.c.l.b16 %v482
      %v611 = vunpack.c.l.b16 %v483
      %v612 = vunpack.c.l.b16 %v484
      %v613 = vunpack.c.l.b16 %v485
      %v614 = vunpack.c.l.b16 %v486
      %v615 = vunpack.c.l.b16 %v487
      %v616 = vunpack.c.l.b16 %v488
      %v617 = vunpack.c.l.b16 %v489
      %v618 = vunpack.c.l.b16 %v490
      %v619 = vunpack.c.l.b16 %v491
      %v620 = vunpack.c.l.b16 %v492
      %v621 = vunpack.c.l.b16 %v493
      %v622 = vunpack.c.l.b16 %v494
      %v623 = vunpack.c.l.b16 %v495
      %v624 = vunpack.c.l.b16 %v496
      %v625 = vunpack.c.l.b16 %v497
      %v626 = vunpack.c.l.b16 %v498
      %v627 = vunpack.c.l.b16 %v499
      %v628 = vunpack.c.l.b16 %v500
      %v629 = vunpack.c.l.b16 %v501
      %v630 = vunpack.c.l.b16 %v502
      %v631 = vunpack.c.l.b16 %v503
      %v632 = vunpack.c.l.b16 %v504
      %v633 = vunpack.c.l.b16 %v505
      %v634 = vunpack.c.l.b16 %v506
      %v635 = vunpack.c.l.b16 %v507
      %v636 = vunpack.c.l.b16 %v508
      %v637 = vunpack.c.l.b16 %v509
      %v638 = vunpack.c.l.b16 %v510
      %v639 = vunpack.c.l.b16 %v511
      %v640 = vunpack.c.l.b16 %v512
      %v641 = vunpack.c.l.b16 %v513
      %v642 = vunpack.c.l.b16 %v514
      %v643 = vunpack.c.l.b16 %v515
      %v644 = vunpack.c.l.b16 %v516
      %v645 = vpack.c.b16 %v582, %v581
      %v646 = vpack.c.b16 %v584, %v583
      %v647 = vpack.c.b16 %v586, %v585
      %v648 = vpack.c.b16 %v588, %v587
      %v649 = vpack.c.b16 %v590, %v589
      %v650 = vpack.c.b16 %v592, %v591
      %v651 = vpack.c.b16 %v594, %v593
      %v652 = vpack.c.b16 %v596, %v595
      %v653 = vpack.c.b16 %v598, %v597
      %v654 = vpack.c.b16 %v600, %v599
      %v655 = vpack.c.b16 %v602, %v601
      %v656 = vpack.c.b16 %v604, %v603
      %v657 = vpack.c.b16 %v606, %v605
      %v658 = vpack.c.b16 %v608, %v607
      %v659 = vpack.c.b16 %v610, %v609
      %v660 = vpack.c.b16 %v612, %v611
      %v661 = vpack.c.b16 %v614, %v613
      %v662 = vpack.c.b16 %v616, %v615
      %v663 = vpack.c.b16 %v618, %v617
      %v664 = vpack.c.b16 %v620, %v619
      %v665 = vpack.c.b16 %v622, %v621
      %v666 = vpack.c.b16 %v624, %v623
      %v667 = vpack.c.b16 %v626, %v625
      %v668 = vpack.c.b16 %v628, %v627
      %v669 = vpack.c.b16 %v630, %v629
      %v670 = vpack.c.b16 %v632, %v631
      %v671 = vpack.c.b16 %v634, %v633
      %v672 = vpack.c.b16 %v636, %v635
      %v673 = vpack.c.b16 %v638, %v637
      %v674 = vpack.c.b16 %v640, %v639
      %v675 = vpack.c.b16 %v642, %v641
      %v676 = vpack.c.b16 %v644, %v643
      %709 = vmatpush.bf16.msra.mxu0 %v652
      %710 = vmatpush.bf16.msra.mxu0 %v651
      %711 = vmatpush.bf16.msra.mxu0 %v650
      %712 = vmatpush.bf16.msra.mxu0 %v649
      %713 = vmatpush.bf16.msra.mxu0 %v648
      %714 = vmatpush.bf16.msra.mxu0 %v647
      %715 = vmatpush.bf16.msra.mxu0 %v646
      %716 = vmatpush.bf16.msra.mxu0 %v645
      %717 = vmatmul.bf16.gmra.mxu0 %v448
      %v718 = vpop.f32.mrf.mxu0
      %v719 = vadd.f32 0.0, %v718
      %v720 = vpop.f32.mrf.mxu0
      %721 = vdwg.mxu0
      %722 = vmatpush.bf16.msra.mxu0 %v660
      %723 = vmatpush.bf16.msra.mxu0 %v659
      %724 = vmatpush.bf16.msra.mxu0 %v658
      %725 = vmatpush.bf16.msra.mxu0 %v657
      %726 = vmatpush.bf16.msra.mxu0 %v656
      %727 = vmatpush.bf16.msra.mxu0 %v655
      %728 = vmatpush.bf16.msra.mxu0 %v654
      %729 = vmatpush.bf16.msra.mxu0 %v653
      %730 = vmatmul.bf16.gmra.mxu0 %v449
      %v731 = vpop.f32.mrf.mxu0
      %v732 = vadd.f32 %v719, %v731
      %v733 = vpop.f32.mrf.mxu0
      %734 = vdwg.mxu0
      %735 = vmatpush.bf16.msra.mxu0 %v668
      %736 = vmatpush.bf16.msra.mxu0 %v667
      %737 = vmatpush.bf16.msra.mxu0 %v666
      %738 = vmatpush.bf16.msra.mxu0 %v665
      %739 = vmatpush.bf16.msra.mxu0 %v664
      %740 = vmatpush.bf16.msra.mxu0 %v663
      %741 = vmatpush.bf16.msra.mxu0 %v662
      %742 = vmatpush.bf16.msra.mxu0 %v661
      %743 = vmatmul.bf16.gmra.mxu0 %v450
      %v744 = vpop.f32.mrf.mxu0
      %v745 = vadd.f32 %v732, %v744
      %v746 = vpop.f32.mrf.mxu0
      %747 = vdwg.mxu0
      %748 = vmatpush.bf16.msra.mxu0 %v676
      %749 = vmatpush.bf16.msra.mxu0 %v675
      %750 = vmatpush.bf16.msra.mxu0 %v674
      %751 = vmatpush.bf16.msra.mxu0 %v673
      %752 = vmatpush.bf16.msra.mxu0 %v672
      %753 = vmatpush.bf16.msra.mxu0 %v671
      %754 = vmatpush.bf16.msra.mxu0 %v670
      %755 = vmatpush.bf16.msra.mxu0 %v669
      %756 = vmatmul.bf16.gmra.mxu0 %v451
      %v757 = vpop.f32.mrf.mxu0
      %v758 = vadd.f32 %v745, %v757
      %v759 = vpop.f32.mrf.mxu0
      %760 = vdwg.mxu0
      %v761 = vadd.f32 %v452, %v758
      %762 = vst [vmem:[#allocation2] sm:$0xf] %v761
      %p763 = scmp.eq.s32.totalorder %s24, 1
      // Predicated region
      $region49: #{discriminator_forward.7} parent=43 // pred_check
        %p764 = pneg %p763
      $region50: #{discriminator_forward.7} parent=43 // pred_check_branch
        %766 = sbr.rel (%p764) target = $region52
      $region51: #{discriminator_forward.7} parent=43 // pred_region
        %v767 = vld [vmem:[#allocation2] sm:$0xf]
        %v768 = vld [vmem:[%s381] sm:$0x1]
        %v770 = vperm.slane %v768, 0
        %v772 = vadd.f32 %v767, %v770
        %v773 = vld [vmem:[%s384] sm:$0x1]
        %v774 = vxor.u32 %v772, 2147483648
        %v775 = vmul.f32 %v774, 1.442695
        %v776 = vpow.pop %v775
        %v777 = vadd.f32 %v776, 1.0
        %v778 = vrcp.pop %v777
        %v779 = vmul.f32 %v777, %v778
        %v780 = vsub.f32 1.0, %v779
        %v781 = vmul.f32 %v778, %v780
        %v782 = vadd.f32 %v778, %v781
        %vm783 = vweird.f32 %v777
        %vm784 = vweird.f32 %v778
        %vm785 = vmor %vm783, %vm784
        %v786 = vsel %vm785, %v778, %v782
        %v787 = vand.u32 2147483647, %v777
        %vm788 = vcmp.eq.f32.partialorder %v787, 8.507059e+37
        %v789 = vand.u32 %v777, 2147483648
        %v790 = vor.u32 1.1754944e-38, %v789
        %v791 = vsel %vm788, %v790, %v786
        %v792 = vmul.f32 1.0, %v791
        %v794 = vperm.slane %v773, 0
        %v796 = vmul.f32 %v794, %v792
        %v797 = vsub.f32 1.0, %v773
        %v799 = vperm.slane %v797, 0
        %v801 = vmul.f32 %v799, %v772
        %v802 = vadd.f32 %v796, %v801
        %803 = vst [vmem:[%s391] sm:$0xf] %v802
      $region52: #{discriminator_forward.7} parent=43 // pred_fallthru
        _
      %p804 = scmp.lt.s32.totalorder %s22, 0
      %s805 = scalar_select %p804, %s22, 0
      %p806 = scmp.lt.s32.totalorder %s23, 0
      %s807 = scalar_select %p806, %s23, 0
      %s808 = sadd.s32 %s807, %s805
      %s809 = smul.addr %s808, 4
      %s810 = scalar_lea.vmem %s6, %s809
      // Predicated region
      $region53: #{discriminator_forward.7} parent=43 // pred_check
        %p811 = pneg %p216
      $region54: #{discriminator_forward.7} parent=43 // pred_check_branch
        %813 = sbr.rel (%p811) target = $region56
      $region55: #{discriminator_forward.7} parent=43 // pred_region
        _
      $region56: #{discriminator_forward.7} parent=43 // pred_fallthru
        _
      // Predicated region
      $region57: #{discriminator_forward.7} parent=43 // pred_check
        %p814 = pneg %p216
      $region58: #{discriminator_forward.7} parent=43 // pred_check_branch
        %816 = sbr.rel (%p814) target = $region60
      $region59: #{discriminator_forward.7} parent=43 // pred_region
        %p817 = scmp.lt.s32.totalorder %s22, 0
        %s818 = scalar_select %p817, %s22, 0
        %p819 = scmp.lt.s32.totalorder %s23, 0
        %s820 = scalar_select %p819, %s23, 0
        %s821 = sadd.s32 %s820, %s818
        %s822 = smul.addr %s821, 4
        %s823 = scalar_lea.vmem %s6, %s822
      $region60: #{discriminator_forward.7} parent=43 // pred_fallthru
        _
    $region44: #{discriminator_forward.7} parent=5 // pred_fallthru
      _
    %p824 = scmp.le.s32.totalorder 2, %s12
    // Predicated region
    $region61: #{discriminator_forward.7} parent=5 // pred_check
      %p825 = pneg %p824
    $region62: #{discriminator_forward.7} parent=5 // pred_check_branch
      %827 = sbr.rel (%p825) target = $region64
    $region63: #{discriminator_forward.7} parent=5 // pred_region
      %s828 = ssub.s32 %s12, 2
    $region64: #{discriminator_forward.7} parent=5 // pred_fallthru
      _
  $region6: #{discriminator_forward.7} parent=0 // loop_footer
    %s16 = sadd.s32 1, %s12
  $region7: #{discriminator_forward.7} parent=0 // loop_footer_branch
    %11 = sbr.rel target = $region3
  $region8: #{discriminator_forward.7} parent=0 // loop_exit
    _

</llo_original>
